<compile_context>
chip_gen: v5e
topology: v5e:2x2
jax: 0.10.0
libtpu: 0.0.40
codegen_flags: <defaults>
</compile_context>

<pallas_src>
import functools

import jax
import jax.numpy as jnp
from jax.experimental import pallas as pl
from jax.experimental.pallas import tpu as pltpu

EPS = 1e-5  # torch.nn.InstanceNorm2d default eps


def _residential_kernel(xcol_ref, xres_ref, w1_ref, w2_ref, g1_ref, be1_ref,
                        g2_ref, be2_ref, out_ref, hpad_ref, hcol_ref,
                        *, Cp, H, W):
    """One grid step = one batch sample.

    xcol_ref : (9*Cp, HW) bf16  im2col of reflection-padded x (tap-major)
    xres_ref : (Cp, HW)   f32   residual x (flattened, channel-padded)
    w1_ref   : (Cp, 9*Cp) bf16  conv1 weight, columns ordered [tap, c_in]
    w2_ref   : (Cp, 9*Cp) bf16  conv2 weight, same ordering
    g*/be*   : (Cp, 1)    f32   InstanceNorm affine params
    out_ref  : (Cp, HW)   f32   output sample
    hpad_ref : (Cp, H+2, W+2) f32 scratch — reflection-padded intermediate h
    hcol_ref : (9*Cp, HW) f32   scratch — im2col of h for stage 2
    """
    HW = H * W
    inv_hw = 1.0 / HW

    def instance_norm(y, g, b):
        # biased variance, eps inside rsqrt (PyTorch InstanceNorm2d semantics)
        mean = jnp.sum(y, axis=1, keepdims=True) * inv_hw
        yc = y - mean
        var = jnp.sum(yc * yc, axis=1, keepdims=True) * inv_hw
        return yc * jax.lax.rsqrt(var + EPS) * g + b

    # ---------------- stage 1: conv1 (single MXU contraction) -> IN1 -> ReLU
    y1 = jnp.dot(w1_ref[...], xcol_ref[...],
                 preferred_element_type=jnp.float32)          # (Cp, HW) f32
    h = jnp.maximum(instance_norm(y1, g1_ref[...], be1_ref[...]), 0.0)

    # ---------------- in-VMEM ReflectionPad2d(1) of h ----------------------
    h3 = h.reshape(Cp, H, W)
    hpad_ref[:, 1:H + 1, 1:W + 1] = h3                         # interior
    hpad_ref[:, 0:1, 1:W + 1] = h3[:, 1:2, :]                  # top row  <- row 1
    hpad_ref[:, H + 1:H + 2, 1:W + 1] = h3[:, H - 2:H - 1, :]  # bottom   <- row H-2
    hpad_ref[:, :, 0:1] = hpad_ref[:, :, 2:3]                  # left col (incl. corners)
    hpad_ref[:, :, W + 1:W + 2] = hpad_ref[:, :, W - 1:W]      # right col (incl. corners)

    # ---------------- im2col of h (tap-major, matches weight packing) ------
    for dy in range(3):
        for dx in range(3):
            k = dy * 3 + dx
            hcol_ref[k * Cp:(k + 1) * Cp, :] = (
                hpad_ref[:, dy:dy + H, dx:dx + W].reshape(Cp, HW))

    # ---------------- stage 2: conv2 -> IN2 -> + residual ------------------
    y2 = jnp.dot(w2_ref[...], hcol_ref[...].astype(jnp.bfloat16),
                 preferred_element_type=jnp.float32)           # (Cp, HW) f32
    out_ref[...] = instance_norm(y2, g2_ref[...], be2_ref[...]) + xres_ref[...]


# --------------------------- JAX wrapper (glue) -----------------------------
def _pack_weight(w, Cp):
    """(C,C,3,3) -> zero-padded (Cp, 9*Cp) bf16 with columns ordered [tap, c_in]."""
    C = w.shape[0]
    wp = jnp.zeros((Cp, Cp, 3, 3), jnp.float32).at[:C, :C].set(w)
    # element [o, dy, dx, i] -> flat column (dy*3+dx)*Cp + i
    return jnp.transpose(wp, (0, 2, 3, 1)).reshape(Cp, 9 * Cp).astype(jnp.bfloat16)


def _pack_vec(v, Cp):
    C = v.shape[0]
    return jnp.zeros((Cp, 1), jnp.float32).at[:C, 0].set(v)


def _im2col(xpad, H, W):
    """(N, Cp, H+2, W+2) -> (N, 9*Cp, H*W), tap-major (matches _pack_weight)."""
    N, Cp = xpad.shape[:2]
    cols = [xpad[:, :, dy:dy + H, dx:dx + W].reshape(N, Cp, H * W)
            for dy in range(3) for dx in range(3)]
    return jnp.concatenate(cols, axis=1)


@jax.jit
def residential_forward(x, params):
    """x: (N, C, H, W) float32.  Reproduces Residential.forward."""
    w1, b1, g1, be1, w2, b2, g2, be2 = params
    del b1, b2  # conv bias before InstanceNorm is cancelled by mean subtraction
    N, C, H, W = x.shape
    HW = H * W
    Cp = max(8, ((C + 7) // 8) * 8)          # channel padding to sublane tile

    # channel-pad, reflection-pad and im2col stage-1 input (data movement only)
    xp = jnp.zeros((N, Cp, H, W), jnp.float32).at[:, :C].set(x)
    xpad = jnp.pad(xp, ((0, 0), (0, 0), (1, 1), (1, 1)), mode="reflect")
    xcol = _im2col(xpad, H, W).astype(jnp.bfloat16)   # (N, 9*Cp, HW) bf16
    xres = xp.reshape(N, Cp, HW)                       # (N, Cp, HW)   f32

    w1f, w2f = _pack_weight(w1, Cp), _pack_weight(w2, Cp)
    g1p, be1p = _pack_vec(g1, Cp), _pack_vec(be1, Cp)
    g2p, be2p = _pack_vec(g2, Cp), _pack_vec(be2, Cp)

    kern = functools.partial(_residential_kernel, Cp=Cp, H=H, W=W)

    out_flat = pl.pallas_call(
        kern,
        out_shape=jax.ShapeDtypeStruct((N, Cp, HW), jnp.float32),
        grid_spec=pltpu.PrefetchScalarGridSpec(
            num_scalar_prefetch=0,
            grid=(N,),
            in_specs=[
                pl.BlockSpec((None, 9 * Cp, HW), lambda n: (n, 0, 0)),  # xcol
                pl.BlockSpec((None, Cp, HW), lambda n: (n, 0, 0)),      # xres
                pl.BlockSpec((Cp, 9 * Cp), lambda n: (0, 0)),           # w1
                pl.BlockSpec((Cp, 9 * Cp), lambda n: (0, 0)),           # w2
                pl.BlockSpec((Cp, 1), lambda n: (0, 0)),                # gamma1
                pl.BlockSpec((Cp, 1), lambda n: (0, 0)),                # beta1
                pl.BlockSpec((Cp, 1), lambda n: (0, 0)),                # gamma2
                pl.BlockSpec((Cp, 1), lambda n: (0, 0)),                # beta2
            ],
            out_specs=pl.BlockSpec((None, Cp, HW), lambda n: (n, 0, 0)),
            scratch_shapes=[
                pltpu.VMEM((Cp, H + 2, W + 2), jnp.float32),   # hpad
                pltpu.VMEM((9 * Cp, HW), jnp.float32),         # hcol
            ],
        ),
        compiler_params=pltpu.CompilerParams(
            dimension_semantics=("parallel",)),
    )(xcol, xres, w1f, w2f, g1p, be1p, g2p, be2p)

    return out_flat[:, :C].reshape(N, C, H, W)


# ----------------------- pure-JAX reference (for checking) ------------------
def _ref_forward(x, params):
    w1, b1, g1, be1, w2, b2, g2, be2 = params

    def conv(z, w, b):
        zp = jnp.pad(z, ((0, 0), (0, 0), (1, 1), (1, 1)), mode="reflect")
        y = jax.lax.conv_general_dilated(
            zp, w, (1, 1), "VALID",
            dimension_numbers=("NCHW", "OIHW", "NCHW"),
            precision=jax.lax.Precision.HIGHEST)
        return y + b[None, :, None, None]

    def inorm(y, g, be):
        m = y.mean(axis=(2, 3), keepdims=True)
        v = ((y - m) ** 2).mean(axis=(2, 3), keepdims=True)
        return ((y - m) * jax.lax.rsqrt(v + EPS)
                * g[None, :, None, None] + be[None, :, None, None])

    h = jax.nn.relu(inorm(conv(x, w1, b1), g1, be1))
    h = inorm(conv(h, w2, b2), g2, be2)
    return x + h


def init_params(key, C):
    ks = jax.random.split(key, 8)
    w1 = 0.2 * jax.random.normal(ks[0], (C, C, 3, 3), jnp.float32)
    b1 = 0.1 * jax.random.normal(ks[1], (C,), jnp.float32)
    g1 = 1.0 + 0.1 * jax.random.normal(ks[2], (C,), jnp.float32)
    be1 = 0.1 * jax.random.normal(ks[3], (C,), jnp.float32)
    w2 = 0.2 * jax.random.normal(ks[4], (C, C, 3, 3), jnp.float32)
    b2 = 0.1 * jax.random.normal(ks[5], (C,), jnp.float32)
    g2 = 1.0 + 0.1 * jax.random.normal(ks[6], (C,), jnp.float32)
    be2 = 0.1 * jax.random.normal(ks[7], (C,), jnp.float32)
    return (w1, b1, g1, be1, w2, b2, g2, be2)


if __name__ == "__main__":
    key = jax.random.PRNGKey(0)
    kx, kp = jax.random.split(key)

    N, C, H, W = 2, 4, 16, 16
    x = jax.random.normal(kx, (N, C, H, W), jnp.float32)
    params = init_params(kp, C)

    out = residential_forward(x, params)
    out = jax.block_until_ready(out)

    ref = _ref_forward(x, params)
    assert out.shape == (N, C, H, W)
    # bf16 MXU operands (f32 accumulate) vs an f32 HIGHEST reference: expected
    # max-abs deviation ~1e-2; InstanceNorm renormalizes most of it away.
    max_err = float(jnp.max(jnp.abs(out - ref)))
    assert max_err < 3e-2, f"mismatch vs reference, max abs err = {max_err}"

    print("KERNEL_OK")
</pallas_src>

<mosaic_0001>
module attributes {stable_mosaic.version = 11 : i64} {
  func.func @_residential_kernel(%arg0: i32, %arg1: memref<1x72x256xbf16, #tpu.memory_space<vmem>>, %arg2: memref<1x8x256xf32, #tpu.memory_space<vmem>>, %arg3: memref<8x72xbf16, #tpu.memory_space<vmem>>, %arg4: memref<8x72xbf16, #tpu.memory_space<vmem>>, %arg5: memref<8x1xf32, #tpu.memory_space<vmem>>, %arg6: memref<8x1xf32, #tpu.memory_space<vmem>>, %arg7: memref<8x1xf32, #tpu.memory_space<vmem>>, %arg8: memref<8x1xf32, #tpu.memory_space<vmem>>, %arg9: memref<1x8x256xf32, #tpu.memory_space<vmem>>, %arg10: memref<8x18x18xf32, #tpu.memory_space<vmem>>, %arg11: memref<72x256xf32, #tpu.memory_space<vmem>>) attributes {dimension_semantics = [#tpu.dimension_semantics<parallel>], iteration_bounds = array<i64: 2>, scalar_prefetch = 0 : i64, scratch_operands = 2 : i64, tpu.core_type = #tpu.core_type<tc>, window_params = [{transform_indices = @transform_0, window_bounds = array<i64: 1, 72, 256>}, {transform_indices = @transform_1, window_bounds = array<i64: 1, 8, 256>}, {pipeline_mode = #tpu.pipeline_mode<synchronous>, transform_indices = @transform_2, window_bounds = array<i64: 8, 72>}, {pipeline_mode = #tpu.pipeline_mode<synchronous>, transform_indices = @transform_3, window_bounds = array<i64: 8, 72>}, {pipeline_mode = #tpu.pipeline_mode<synchronous>, transform_indices = @transform_4, window_bounds = array<i64: 8, 1>}, {pipeline_mode = #tpu.pipeline_mode<synchronous>, transform_indices = @transform_5, window_bounds = array<i64: 8, 1>}, {pipeline_mode = #tpu.pipeline_mode<synchronous>, transform_indices = @transform_6, window_bounds = array<i64: 8, 1>}, {pipeline_mode = #tpu.pipeline_mode<synchronous>, transform_indices = @transform_7, window_bounds = array<i64: 8, 1>}, {transform_indices = @transform_8, window_bounds = array<i64: 1, 8, 256>}]} {
    %c0 = arith.constant 0 : index
    %c0_0 = arith.constant 0 : index
    %0 = vector.load %arg3[%c0, %c0_0] : memref<8x72xbf16, #tpu.memory_space<vmem>>, vector<8x72xbf16>
    %c0_1 = arith.constant 0 : index
    %c0_2 = arith.constant 0 : index
    %c0_3 = arith.constant 0 : index
    %1 = vector.load %arg1[%c0_1, %c0_2, %c0_3] : memref<1x72x256xbf16, #tpu.memory_space<vmem>>, vector<1x72x256xbf16>
    %2 = vector.shape_cast %1 : vector<1x72x256xbf16> to vector<72x256xbf16>
    %cst = arith.constant dense<0.000000e+00> : vector<8x256xf32>
    %3 = tpu.matmul %0, %2, %cst {dimension_numbers = #tpu.dot_dimension_numbers<[1], [0], [0], [1], [0, 0, 1, 1], [], []>} : vector<8x72xbf16>, vector<72x256xbf16>, vector<8x256xf32> -> vector<8x256xf32>
    %c0_4 = arith.constant 0 : index
    %c0_5 = arith.constant 0 : index
    %4 = vector.load %arg5[%c0_4, %c0_5] : memref<8x1xf32, #tpu.memory_space<vmem>>, vector<8x1xf32>
    %c0_6 = arith.constant 0 : index
    %c0_7 = arith.constant 0 : index
    %5 = vector.load %arg6[%c0_6, %c0_7] : memref<8x1xf32, #tpu.memory_space<vmem>>, vector<8x1xf32>
    %cst_8 = arith.constant dense<0.000000e+00> : vector<8xf32>
    %6 = vector.multi_reduction <add>, %3, %cst_8 [1] : vector<8x256xf32> to vector<8xf32>
    %7 = vector.shape_cast %6 : vector<8xf32> to vector<8x1xf32>
    %cst_9 = arith.constant 3.906250e-03 : f32
    %8 = vector.broadcast %cst_9 : f32 to vector<8x1xf32>
    %9 = arith.mulf %7, %8 : vector<8x1xf32>
    %10 = vector.broadcast %9 : vector<8x1xf32> to vector<8x256xf32>
    %11 = arith.subf %3, %10 : vector<8x256xf32>
    %12 = arith.mulf %11, %11 : vector<8x256xf32>
    %cst_10 = arith.constant dense<0.000000e+00> : vector<8xf32>
    %13 = vector.multi_reduction <add>, %12, %cst_10 [1] : vector<8x256xf32> to vector<8xf32>
    %14 = vector.shape_cast %13 : vector<8xf32> to vector<8x1xf32>
    %cst_11 = arith.constant 3.906250e-03 : f32
    %15 = vector.broadcast %cst_11 : f32 to vector<8x1xf32>
    %16 = arith.mulf %14, %15 : vector<8x1xf32>
    %cst_12 = arith.constant 9.99999974E-6 : f32
    %17 = vector.broadcast %cst_12 : f32 to vector<8x1xf32>
    %18 = arith.addf %16, %17 : vector<8x1xf32>
    %19 = math.rsqrt %18 : vector<8x1xf32>
    %20 = vector.broadcast %19 : vector<8x1xf32> to vector<8x256xf32>
    %21 = arith.mulf %11, %20 : vector<8x256xf32>
    %22 = vector.broadcast %4 : vector<8x1xf32> to vector<8x256xf32>
    %23 = arith.mulf %21, %22 : vector<8x256xf32>
    %24 = vector.broadcast %5 : vector<8x1xf32> to vector<8x256xf32>
    %25 = arith.addf %23, %24 : vector<8x256xf32>
    %cst_13 = arith.constant 0.000000e+00 : f32
    %26 = vector.broadcast %cst_13 : f32 to vector<8x256xf32>
    %27 = arith.maximumf %25, %26 : vector<8x256xf32>
    %28 = vector.shape_cast %27 : vector<8x256xf32> to vector<8x16x16xf32>
    %c0_14 = arith.constant 0 : index
    %c1 = arith.constant 1 : index
    %c1_15 = arith.constant 1 : index
    %29 = vector.load %arg10[%c0_14, %c1, %c1_15] : memref<8x18x18xf32, #tpu.memory_space<vmem>>, vector<8x16x16xf32>
    tpu.vector_store %arg10[%c0_14, %c1, %c1_15], %28 {strides = array<i32>} : memref<8x18x18xf32, #tpu.memory_space<vmem>>, vector<8x16x16xf32>,
    %30 = vector.extract_strided_slice %28 {offsets = [0, 1, 0], sizes = [8, 1, 16], strides = [1, 1, 1]} : vector<8x16x16xf32> to vector<8x1x16xf32>
    %c0_16 = arith.constant 0 : index
    %c0_17 = arith.constant 0 : index
    %c1_18 = arith.constant 1 : index
    %31 = vector.load %arg10[%c0_16, %c0_17, %c1_18] : memref<8x18x18xf32, #tpu.memory_space<vmem>>, vector<8x1x16xf32>
    tpu.vector_store %arg10[%c0_16, %c0_17, %c1_18], %30 {strides = array<i32>} : memref<8x18x18xf32, #tpu.memory_space<vmem>>, vector<8x1x16xf32>,
    %32 = vector.extract_strided_slice %28 {offsets = [0, 14, 0], sizes = [8, 1, 16], strides = [1, 1, 1]} : vector<8x16x16xf32> to vector<8x1x16xf32>
    %c0_19 = arith.constant 0 : index
    %c17 = arith.constant 17 : index
    %c1_20 = arith.constant 1 : index
    %33 = vector.load %arg10[%c0_19, %c17, %c1_20] : memref<8x18x18xf32, #tpu.memory_space<vmem>>, vector<8x1x16xf32>
    tpu.vector_store %arg10[%c0_19, %c17, %c1_20], %32 {strides = array<i32>} : memref<8x18x18xf32, #tpu.memory_space<vmem>>, vector<8x1x16xf32>,
    %c0_21 = arith.constant 0 : index
    %c0_22 = arith.constant 0 : index
    %c2 = arith.constant 2 : index
    %34 = vector.load %arg10[%c0_21, %c0_22, %c2] : memref<8x18x18xf32, #tpu.memory_space<vmem>>, vector<8x18x1xf32>
    %c0_23 = arith.constant 0 : index
    %c0_24 = arith.constant 0 : index
    %c0_25 = arith.constant 0 : index
    %35 = vector.load %arg10[%c0_23, %c0_24, %c0_25] : memref<8x18x18xf32, #tpu.memory_space<vmem>>, vector<8x18x1xf32>
    tpu.vector_store %arg10[%c0_23, %c0_24, %c0_25], %34 {strides = array<i32>} : memref<8x18x18xf32, #tpu.memory_space<vmem>>, vector<8x18x1xf32>,
    %c0_26 = arith.constant 0 : index
    %c0_27 = arith.constant 0 : index
    %c15 = arith.constant 15 : index
    %36 = vector.load %arg10[%c0_26, %c0_27, %c15] : memref<8x18x18xf32, #tpu.memory_space<vmem>>, vector<8x18x1xf32>
    %c0_28 = arith.constant 0 : index
    %c0_29 = arith.constant 0 : index
    %c17_30 = arith.constant 17 : index
    %37 = vector.load %arg10[%c0_28, %c0_29, %c17_30] : memref<8x18x18xf32, #tpu.memory_space<vmem>>, vector<8x18x1xf32>
    tpu.vector_store %arg10[%c0_28, %c0_29, %c17_30], %36 {strides = array<i32>} : memref<8x18x18xf32, #tpu.memory_space<vmem>>, vector<8x18x1xf32>,
    %c0_31 = arith.constant 0 : index
    %c0_32 = arith.constant 0 : index
    %c0_33 = arith.constant 0 : index
    %38 = vector.load %arg10[%c0_31, %c0_32, %c0_33] : memref<8x18x18xf32, #tpu.memory_space<vmem>>, vector<8x16x16xf32>
    %39 = vector.shape_cast %38 : vector<8x16x16xf32> to vector<8x256xf32>
    %c0_34 = arith.constant 0 : index
    %c0_35 = arith.constant 0 : index
    %40 = vector.load %arg11[%c0_34, %c0_35] : memref<72x256xf32, #tpu.memory_space<vmem>>, vector<8x256xf32>
    tpu.vector_store %arg11[%c0_34, %c0_35], %39 {strides = array<i32>} : memref<72x256xf32, #tpu.memory_space<vmem>>, vector<8x256xf32>,
    %c0_36 = arith.constant 0 : index
    %c0_37 = arith.constant 0 : index
    %c1_38 = arith.constant 1 : index
    %41 = vector.load %arg10[%c0_36, %c0_37, %c1_38] : memref<8x18x18xf32, #tpu.memory_space<vmem>>, vector<8x16x16xf32>
    %42 = vector.shape_cast %41 : vector<8x16x16xf32> to vector<8x256xf32>
    %c8 = arith.constant 8 : index
    %c0_39 = arith.constant 0 : index
    %43 = vector.load %arg11[%c8, %c0_39] : memref<72x256xf32, #tpu.memory_space<vmem>>, vector<8x256xf32>
    tpu.vector_store %arg11[%c8, %c0_39], %42 {strides = array<i32>} : memref<72x256xf32, #tpu.memory_space<vmem>>, vector<8x256xf32>,
    %c0_40 = arith.constant 0 : index
    %c0_41 = arith.constant 0 : index
    %c2_42 = arith.constant 2 : index
    %44 = vector.load %arg10[%c0_40, %c0_41, %c2_42] : memref<8x18x18xf32, #tpu.memory_space<vmem>>, vector<8x16x16xf32>
    %45 = vector.shape_cast %44 : vector<8x16x16xf32> to vector<8x256xf32>
    %c16 = arith.constant 16 : index
    %c0_43 = arith.constant 0 : index
    %46 = vector.load %arg11[%c16, %c0_43] : memref<72x256xf32, #tpu.memory_space<vmem>>, vector<8x256xf32>
    tpu.vector_store %arg11[%c16, %c0_43], %45 {strides = array<i32>} : memref<72x256xf32, #tpu.memory_space<vmem>>, vector<8x256xf32>,
    %c0_44 = arith.constant 0 : index
    %c1_45 = arith.constant 1 : index
    %c0_46 = arith.constant 0 : index
    %47 = vector.load %arg10[%c0_44, %c1_45, %c0_46] : memref<8x18x18xf32, #tpu.memory_space<vmem>>, vector<8x16x16xf32>
    %48 = vector.shape_cast %47 : vector<8x16x16xf32> to vector<8x256xf32>
    %c24 = arith.constant 24 : index
    %c0_47 = arith.constant 0 : index
    %49 = vector.load %arg11[%c24, %c0_47] : memref<72x256xf32, #tpu.memory_space<vmem>>, vector<8x256xf32>
    tpu.vector_store %arg11[%c24, %c0_47], %48 {strides = array<i32>} : memref<72x256xf32, #tpu.memory_space<vmem>>, vector<8x256xf32>,
    %c0_48 = arith.constant 0 : index
    %c1_49 = arith.constant 1 : index
    %c1_50 = arith.constant 1 : index
    %50 = vector.load %arg10[%c0_48, %c1_49, %c1_50] : memref<8x18x18xf32, #tpu.memory_space<vmem>>, vector<8x16x16xf32>
    %51 = vector.shape_cast %50 : vector<8x16x16xf32> to vector<8x256xf32>
    %c32 = arith.constant 32 : index
    %c0_51 = arith.constant 0 : index
    %52 = vector.load %arg11[%c32, %c0_51] : memref<72x256xf32, #tpu.memory_space<vmem>>, vector<8x256xf32>
    tpu.vector_store %arg11[%c32, %c0_51], %51 {strides = array<i32>} : memref<72x256xf32, #tpu.memory_space<vmem>>, vector<8x256xf32>,
    %c0_52 = arith.constant 0 : index
    %c1_53 = arith.constant 1 : index
    %c2_54 = arith.constant 2 : index
    %53 = vector.load %arg10[%c0_52, %c1_53, %c2_54] : memref<8x18x18xf32, #tpu.memory_space<vmem>>, vector<8x16x16xf32>
    %54 = vector.shape_cast %53 : vector<8x16x16xf32> to vector<8x256xf32>
    %c40 = arith.constant 40 : index
    %c0_55 = arith.constant 0 : index
    %55 = vector.load %arg11[%c40, %c0_55] : memref<72x256xf32, #tpu.memory_space<vmem>>, vector<8x256xf32>
    tpu.vector_store %arg11[%c40, %c0_55], %54 {strides = array<i32>} : memref<72x256xf32, #tpu.memory_space<vmem>>, vector<8x256xf32>,
    %c0_56 = arith.constant 0 : index
    %c2_57 = arith.constant 2 : index
    %c0_58 = arith.constant 0 : index
    %56 = vector.load %arg10[%c0_56, %c2_57, %c0_58] : memref<8x18x18xf32, #tpu.memory_space<vmem>>, vector<8x16x16xf32>
    %57 = vector.shape_cast %56 : vector<8x16x16xf32> to vector<8x256xf32>
    %c48 = arith.constant 48 : index
    %c0_59 = arith.constant 0 : index
    %58 = vector.load %arg11[%c48, %c0_59] : memref<72x256xf32, #tpu.memory_space<vmem>>, vector<8x256xf32>
    tpu.vector_store %arg11[%c48, %c0_59], %57 {strides = array<i32>} : memref<72x256xf32, #tpu.memory_space<vmem>>, vector<8x256xf32>,
    %c0_60 = arith.constant 0 : index
    %c2_61 = arith.constant 2 : index
    %c1_62 = arith.constant 1 : index
    %59 = vector.load %arg10[%c0_60, %c2_61, %c1_62] : memref<8x18x18xf32, #tpu.memory_space<vmem>>, vector<8x16x16xf32>
    %60 = vector.shape_cast %59 : vector<8x16x16xf32> to vector<8x256xf32>
    %c56 = arith.constant 56 : index
    %c0_63 = arith.constant 0 : index
    %61 = vector.load %arg11[%c56, %c0_63] : memref<72x256xf32, #tpu.memory_space<vmem>>, vector<8x256xf32>
    tpu.vector_store %arg11[%c56, %c0_63], %60 {strides = array<i32>} : memref<72x256xf32, #tpu.memory_space<vmem>>, vector<8x256xf32>,
    %c0_64 = arith.constant 0 : index
    %c2_65 = arith.constant 2 : index
    %c2_66 = arith.constant 2 : index
    %62 = vector.load %arg10[%c0_64, %c2_65, %c2_66] : memref<8x18x18xf32, #tpu.memory_space<vmem>>, vector<8x16x16xf32>
    %63 = vector.shape_cast %62 : vector<8x16x16xf32> to vector<8x256xf32>
    %c64 = arith.constant 64 : index
    %c0_67 = arith.constant 0 : index
    %64 = vector.load %arg11[%c64, %c0_67] : memref<72x256xf32, #tpu.memory_space<vmem>>, vector<8x256xf32>
    tpu.vector_store %arg11[%c64, %c0_67], %63 {strides = array<i32>} : memref<72x256xf32, #tpu.memory_space<vmem>>, vector<8x256xf32>,
    %c0_68 = arith.constant 0 : index
    %c0_69 = arith.constant 0 : index
    %65 = vector.load %arg4[%c0_68, %c0_69] : memref<8x72xbf16, #tpu.memory_space<vmem>>, vector<8x72xbf16>
    %c0_70 = arith.constant 0 : index
    %c0_71 = arith.constant 0 : index
    %66 = vector.load %arg11[%c0_70, %c0_71] : memref<72x256xf32, #tpu.memory_space<vmem>>, vector<72x256xf32>
    %67 = arith.truncf %66 : vector<72x256xf32> to vector<72x256xbf16>
    %cst_72 = arith.constant dense<0.000000e+00> : vector<8x256xf32>
    %68 = tpu.matmul %65, %67, %cst_72 {dimension_numbers = #tpu.dot_dimension_numbers<[1], [0], [0], [1], [0, 0, 1, 1], [], []>} : vector<8x72xbf16>, vector<72x256xbf16>, vector<8x256xf32> -> vector<8x256xf32>
    %c0_73 = arith.constant 0 : index
    %c0_74 = arith.constant 0 : index
    %69 = vector.load %arg7[%c0_73, %c0_74] : memref<8x1xf32, #tpu.memory_space<vmem>>, vector<8x1xf32>
    %c0_75 = arith.constant 0 : index
    %c0_76 = arith.constant 0 : index
    %70 = vector.load %arg8[%c0_75, %c0_76] : memref<8x1xf32, #tpu.memory_space<vmem>>, vector<8x1xf32>
    %cst_77 = arith.constant dense<0.000000e+00> : vector<8xf32>
    %71 = vector.multi_reduction <add>, %68, %cst_77 [1] : vector<8x256xf32> to vector<8xf32>
    %72 = vector.shape_cast %71 : vector<8xf32> to vector<8x1xf32>
    %cst_78 = arith.constant 3.906250e-03 : f32
    %73 = vector.broadcast %cst_78 : f32 to vector<8x1xf32>
    %74 = arith.mulf %72, %73 : vector<8x1xf32>
    %75 = vector.broadcast %74 : vector<8x1xf32> to vector<8x256xf32>
    %76 = arith.subf %68, %75 : vector<8x256xf32>
    %77 = arith.mulf %76, %76 : vector<8x256xf32>
    %cst_79 = arith.constant dense<0.000000e+00> : vector<8xf32>
    %78 = vector.multi_reduction <add>, %77, %cst_79 [1] : vector<8x256xf32> to vector<8xf32>
    %79 = vector.shape_cast %78 : vector<8xf32> to vector<8x1xf32>
    %cst_80 = arith.constant 3.906250e-03 : f32
    %80 = vector.broadcast %cst_80 : f32 to vector<8x1xf32>
    %81 = arith.mulf %79, %80 : vector<8x1xf32>
    %cst_81 = arith.constant 9.99999974E-6 : f32
    %82 = vector.broadcast %cst_81 : f32 to vector<8x1xf32>
    %83 = arith.addf %81, %82 : vector<8x1xf32>
    %84 = math.rsqrt %83 : vector<8x1xf32>
    %85 = vector.broadcast %84 : vector<8x1xf32> to vector<8x256xf32>
    %86 = arith.mulf %76, %85 : vector<8x256xf32>
    %87 = vector.broadcast %69 : vector<8x1xf32> to vector<8x256xf32>
    %88 = arith.mulf %86, %87 : vector<8x256xf32>
    %89 = vector.broadcast %70 : vector<8x1xf32> to vector<8x256xf32>
    %90 = arith.addf %88, %89 : vector<8x256xf32>
    %c0_82 = arith.constant 0 : index
    %c0_83 = arith.constant 0 : index
    %c0_84 = arith.constant 0 : index
    %91 = vector.load %arg2[%c0_82, %c0_83, %c0_84] : memref<1x8x256xf32, #tpu.memory_space<vmem>>, vector<1x8x256xf32>
    %92 = vector.shape_cast %91 : vector<1x8x256xf32> to vector<8x256xf32>
    %93 = arith.addf %90, %92 : vector<8x256xf32>
    %c0_85 = arith.constant 0 : index
    %c0_86 = arith.constant 0 : index
    %c0_87 = arith.constant 0 : index
    %94 = vector.load %arg9[%c0_85, %c0_86, %c0_87] : memref<1x8x256xf32, #tpu.memory_space<vmem>>, vector<1x8x256xf32>
    %95 = vector.shape_cast %94 : vector<1x8x256xf32> to vector<8x256xf32>
    %96 = vector.shape_cast %93 : vector<8x256xf32> to vector<1x8x256xf32>
    tpu.vector_store %arg9[%c0_85, %c0_86, %c0_87], %96 {strides = array<i32>} : memref<1x8x256xf32, #tpu.memory_space<vmem>>, vector<1x8x256xf32>,
    return
  }
  func.func @transform_0(%arg0: i32) -> (i32, i32, i32) {
    %c0_i32 = arith.constant 0 : i32
    %c0_i32_0 = arith.constant 0 : i32
    %c0_i32_1 = arith.constant 0 : i32
    return %arg0, %c0_i32, %c0_i32_0 : i32, i32, i32
  }
  func.func @transform_1(%arg0: i32) -> (i32, i32, i32) {
    %c0_i32 = arith.constant 0 : i32
    %c0_i32_0 = arith.constant 0 : i32
    %c0_i32_1 = arith.constant 0 : i32
    return %arg0, %c0_i32, %c0_i32_0 : i32, i32, i32
  }
  func.func @transform_2(%arg0: i32) -> (i32, i32) {
    %c0_i32 = arith.constant 0 : i32
    %c0_i32_0 = arith.constant 0 : i32
    %c0_i32_1 = arith.constant 0 : i32
    return %c0_i32, %c0_i32_0 : i32, i32
  }
  func.func @transform_3(%arg0: i32) -> (i32, i32) {
    %c0_i32 = arith.constant 0 : i32
    %c0_i32_0 = arith.constant 0 : i32
    %c0_i32_1 = arith.constant 0 : i32
    return %c0_i32, %c0_i32_0 : i32, i32
  }
  func.func @transform_4(%arg0: i32) -> (i32, i32) {
    %c0_i32 = arith.constant 0 : i32
    %c0_i32_0 = arith.constant 0 : i32
    %c0_i32_1 = arith.constant 0 : i32
    return %c0_i32, %c0_i32_0 : i32, i32
  }
  func.func @transform_5(%arg0: i32) -> (i32, i32) {
    %c0_i32 = arith.constant 0 : i32
    %c0_i32_0 = arith.constant 0 : i32
    %c0_i32_1 = arith.constant 0 : i32
    return %c0_i32, %c0_i32_0 : i32, i32
  }
  func.func @transform_6(%arg0: i32) -> (i32, i32) {
    %c0_i32 = arith.constant 0 : i32
    %c0_i32_0 = arith.constant 0 : i32
    %c0_i32_1 = arith.constant 0 : i32
    return %c0_i32, %c0_i32_0 : i32, i32
  }
  func.func @transform_7(%arg0: i32) -> (i32, i32) {
    %c0_i32 = arith.constant 0 : i32
    %c0_i32_0 = arith.constant 0 : i32
    %c0_i32_1 = arith.constant 0 : i32
    return %c0_i32, %c0_i32_0 : i32, i32
  }
  func.func @transform_8(%arg0: i32) -> (i32, i32, i32) {
    %c0_i32 = arith.constant 0 : i32
    %c0_i32_0 = arith.constant 0 : i32
    %c0_i32_1 = arith.constant 0 : i32
    return %arg0, %c0_i32, %c0_i32_0 : i32, i32, i32
  }
}

</mosaic_0001>

<llo_original>
// kernel: residential_forward.1
$region0: #{residential_forward.1}
  #allocation0 [shape = 'u32[]', space=smem, size = 0x4, offset = 0x4, fixed_abs, tag = 'smem constant byte address 0x4 - core index']
  #allocation1 [shape = 'u32[72,128]{1,0:T(1,128)}', space=vmem, size = 0x9000, scoped, tag = 'internal scratch']
  #allocation2 [shape = 'f32[8,18,18]{2,1,0:T(8,128)}', space=vmem, size = 0x18000, scoped, tag = 'scratch operand']
  #allocation3 [shape = 'f32[72,256]{1,0:T(8,128)}', space=vmem, size = 0x12000, scoped, tag = 'scratch operand']
  %s0 = inlined_call_operand.vmem [shape: bf16[2,72,256], index: 0, kind: input, shape index: {}]
  %s1 = inlined_call_operand.vmem [shape: f32[2,8,256], index: 1, kind: input, shape index: {}]
  %s2 = inlined_call_operand.vmem [shape: bf16[8,72], index: 2, kind: input, shape index: {}]
  %s3 = inlined_call_operand.vmem [shape: bf16[8,72], index: 3, kind: input, shape index: {}]
  %s4 = inlined_call_operand.vmem [shape: f32[8,1], index: 4, kind: input, shape index: {}]
  %s5 = inlined_call_operand.vmem [shape: f32[8,1], index: 5, kind: input, shape index: {}]
  %s6 = inlined_call_operand.vmem [shape: f32[8,1], index: 6, kind: input, shape index: {}]
  %s7 = inlined_call_operand.vmem [shape: f32[8,1], index: 7, kind: input, shape index: {}]
  %s8 = inlined_call_operand.vmem [shape: f32[2,8,256], index: 8, kind: output, shape index: {}]
  %s9 = sld [smem:[#allocation0]]
  $region65: #{residential_forward.1} parent=0
    _
  %s11 = ssub.s32 1, %s9
  %s12 = scalar_select 0, %s11, %s9
  loop: start=0, step=1, limit=4
  $region2: #{residential_forward.1} parent=0 // loop_pre_header
    _
  $region3: #{residential_forward.1} parent=0 // loop_header
    %s14 = sphi 0, %s18
    %p15 = scmp.ge.s32.totalorder %s14, 4
    %s24 = sphi 0, %s26
    %s27 = sphi 0, %s24
    %s28 = sphi 0, %s27
    %s44 = sphi 0, %s28
    %s50 = sphi 0, %s52
    %s53 = sphi 0, %s50
    %s54 = sphi 0, %s53
    %s70 = sphi 0, %s54
    %s74 = sphi 0, %s74
    %s76 = sphi 0, %s74
    %s77 = sphi 0, %s76
    %s91 = sphi 0, %s77
    %s95 = sphi 0, %s95
    %s97 = sphi 0, %s95
    %s98 = sphi 0, %s97
    %s112 = sphi 0, %s98
    %s116 = sphi 0, %s116
    %s118 = sphi 0, %s116
    %s119 = sphi 0, %s118
    %s133 = sphi 0, %s119
    %s137 = sphi 0, %s137
    %s139 = sphi 0, %s137
    %s140 = sphi 0, %s139
    %s154 = sphi 0, %s140
    %s158 = sphi 0, %s158
    %s160 = sphi 0, %s158
    %s161 = sphi 0, %s160
    %s175 = sphi 0, %s161
    %s179 = sphi 0, %s179
    %s181 = sphi 0, %s179
    %s182 = sphi 0, %s181
    %s196 = sphi 0, %s182
    %s202 = sphi 0, %s204
    %s205 = sphi 0, %s202
    %s206 = sphi 0, %s205
    %s222 = sphi 0, %s206
  $region4: #{residential_forward.1} parent=0 // loop_header_branch
    %17 = sbr.rel (%p15) target = $region8
  $region5: #{residential_forward.1} parent=0 // loop_body
    %s19 = ssub.s32 %s14, 1
    %s20 = ssub.s32 %s14, 2
    %s21 = sadd.s32 %s14, 1
    %s22 = ssub.s32 %s14, %s21
    %p23 = scmp.eq.s32.totalorder %s22, 0
    %s25 = sadd.s32 %s24, 1
    %s26 = scalar_select %p23, %s24, %s25
    %p29 = pneg %p23
    %p30 = scmp.eq.s32.totalorder %s14, 1
    %p31 = por %p29, %p30
    %p32 = scmp.ne.s32.totalorder %s24, %s27
    %p33 = scmp.eq.s32.totalorder %s14, 0
    %p34 = por %p32, %p33
    %p35 = scmp.ne.s32.totalorder %s24, %s27
    %p36 = scmp.eq.s32.totalorder %s19, 1
    %p37 = por %p35, %p36
    %p38 = scmp.ne.s32.totalorder %s27, %s28
    %p39 = scmp.eq.s32.totalorder %s19, 0
    %p40 = por %p38, %p39
    %p41 = scmp.ne.s32.totalorder %s27, %s28
    %p42 = scmp.eq.s32.totalorder %s20, 1
    %p43 = por %p41, %p42
    %p45 = scmp.ne.s32.totalorder %s28, %s44
    %p46 = scmp.eq.s32.totalorder %s20, 0
    %p47 = por %p45, %p46
    %s48 = ssub.s32 %s14, %s21
    %p49 = scmp.eq.s32.totalorder %s48, 0
    %s51 = sadd.s32 %s50, 1
    %s52 = scalar_select %p49, %s50, %s51
    %p55 = pneg %p49
    %p56 = scmp.eq.s32.totalorder %s14, 1
    %p57 = por %p55, %p56
    %p58 = scmp.ne.s32.totalorder %s50, %s53
    %p59 = scmp.eq.s32.totalorder %s14, 0
    %p60 = por %p58, %p59
    %p61 = scmp.ne.s32.totalorder %s50, %s53
    %p62 = scmp.eq.s32.totalorder %s19, 1
    %p63 = por %p61, %p62
    %p64 = scmp.ne.s32.totalorder %s53, %s54
    %p65 = scmp.eq.s32.totalorder %s19, 0
    %p66 = por %p64, %p65
    %p67 = scmp.ne.s32.totalorder %s53, %s54
    %p68 = scmp.eq.s32.totalorder %s20, 1
    %p69 = por %p67, %p68
    %p71 = scmp.ne.s32.totalorder %s54, %s70
    %p72 = scmp.eq.s32.totalorder %s20, 0
    %p73 = por %p71, %p72
    %s75 = sadd.s32 %s74, 1
    %p78 = scmp.eq.s32.totalorder %s14, 1
    %p79 = scmp.ne.s32.totalorder %s74, %s76
    %p80 = scmp.eq.s32.totalorder %s14, 0
    %p81 = por %p79, %p80
    %p82 = scmp.ne.s32.totalorder %s74, %s76
    %p83 = scmp.eq.s32.totalorder %s19, 1
    %p84 = por %p82, %p83
    %p85 = scmp.ne.s32.totalorder %s76, %s77
    %p86 = scmp.eq.s32.totalorder %s19, 0
    %p87 = por %p85, %p86
    %p88 = scmp.ne.s32.totalorder %s76, %s77
    %p89 = scmp.eq.s32.totalorder %s20, 1
    %p90 = por %p88, %p89
    %p92 = scmp.ne.s32.totalorder %s77, %s91
    %p93 = scmp.eq.s32.totalorder %s20, 0
    %p94 = por %p92, %p93
    %s96 = sadd.s32 %s95, 1
    %p99 = scmp.eq.s32.totalorder %s14, 1
    %p100 = scmp.ne.s32.totalorder %s95, %s97
    %p101 = scmp.eq.s32.totalorder %s14, 0
    %p102 = por %p100, %p101
    %p103 = scmp.ne.s32.totalorder %s95, %s97
    %p104 = scmp.eq.s32.totalorder %s19, 1
    %p105 = por %p103, %p104
    %p106 = scmp.ne.s32.totalorder %s97, %s98
    %p107 = scmp.eq.s32.totalorder %s19, 0
    %p108 = por %p106, %p107
    %p109 = scmp.ne.s32.totalorder %s97, %s98
    %p110 = scmp.eq.s32.totalorder %s20, 1
    %p111 = por %p109, %p110
    %p113 = scmp.ne.s32.totalorder %s98, %s112
    %p114 = scmp.eq.s32.totalorder %s20, 0
    %p115 = por %p113, %p114
    %s117 = sadd.s32 %s116, 1
    %p120 = scmp.eq.s32.totalorder %s14, 1
    %p121 = scmp.ne.s32.totalorder %s116, %s118
    %p122 = scmp.eq.s32.totalorder %s14, 0
    %p123 = por %p121, %p122
    %p124 = scmp.ne.s32.totalorder %s116, %s118
    %p125 = scmp.eq.s32.totalorder %s19, 1
    %p126 = por %p124, %p125
    %p127 = scmp.ne.s32.totalorder %s118, %s119
    %p128 = scmp.eq.s32.totalorder %s19, 0
    %p129 = por %p127, %p128
    %p130 = scmp.ne.s32.totalorder %s118, %s119
    %p131 = scmp.eq.s32.totalorder %s20, 1
    %p132 = por %p130, %p131
    %p134 = scmp.ne.s32.totalorder %s119, %s133
    %p135 = scmp.eq.s32.totalorder %s20, 0
    %p136 = por %p134, %p135
    %s138 = sadd.s32 %s137, 1
    %p141 = scmp.eq.s32.totalorder %s14, 1
    %p142 = scmp.ne.s32.totalorder %s137, %s139
    %p143 = scmp.eq.s32.totalorder %s14, 0
    %p144 = por %p142, %p143
    %p145 = scmp.ne.s32.totalorder %s137, %s139
    %p146 = scmp.eq.s32.totalorder %s19, 1
    %p147 = por %p145, %p146
    %p148 = scmp.ne.s32.totalorder %s139, %s140
    %p149 = scmp.eq.s32.totalorder %s19, 0
    %p150 = por %p148, %p149
    %p151 = scmp.ne.s32.totalorder %s139, %s140
    %p152 = scmp.eq.s32.totalorder %s20, 1
    %p153 = por %p151, %p152
    %p155 = scmp.ne.s32.totalorder %s140, %s154
    %p156 = scmp.eq.s32.totalorder %s20, 0
    %p157 = por %p155, %p156
    %s159 = sadd.s32 %s158, 1
    %p162 = scmp.eq.s32.totalorder %s14, 1
    %p163 = scmp.ne.s32.totalorder %s158, %s160
    %p164 = scmp.eq.s32.totalorder %s14, 0
    %p165 = por %p163, %p164
    %p166 = scmp.ne.s32.totalorder %s158, %s160
    %p167 = scmp.eq.s32.totalorder %s19, 1
    %p168 = por %p166, %p167
    %p169 = scmp.ne.s32.totalorder %s160, %s161
    %p170 = scmp.eq.s32.totalorder %s19, 0
    %p171 = por %p169, %p170
    %p172 = scmp.ne.s32.totalorder %s160, %s161
    %p173 = scmp.eq.s32.totalorder %s20, 1
    %p174 = por %p172, %p173
    %p176 = scmp.ne.s32.totalorder %s161, %s175
    %p177 = scmp.eq.s32.totalorder %s20, 0
    %p178 = por %p176, %p177
    %s180 = sadd.s32 %s179, 1
    %p183 = scmp.eq.s32.totalorder %s14, 1
    %p184 = scmp.ne.s32.totalorder %s179, %s181
    %p185 = scmp.eq.s32.totalorder %s14, 0
    %p186 = por %p184, %p185
    %p187 = scmp.ne.s32.totalorder %s179, %s181
    %p188 = scmp.eq.s32.totalorder %s19, 1
    %p189 = por %p187, %p188
    %p190 = scmp.ne.s32.totalorder %s181, %s182
    %p191 = scmp.eq.s32.totalorder %s19, 0
    %p192 = por %p190, %p191
    %p193 = scmp.ne.s32.totalorder %s181, %s182
    %p194 = scmp.eq.s32.totalorder %s20, 1
    %p195 = por %p193, %p194
    %p197 = scmp.ne.s32.totalorder %s182, %s196
    %p198 = scmp.eq.s32.totalorder %s20, 0
    %p199 = por %p197, %p198
    %s200 = ssub.s32 %s14, %s21
    %p201 = scmp.eq.s32.totalorder %s200, 0
    %s203 = sadd.s32 %s202, 1
    %s204 = scalar_select %p201, %s202, %s203
    %p207 = pneg %p201
    %p208 = scmp.eq.s32.totalorder %s14, 1
    %p209 = por %p207, %p208
    %p210 = scmp.ne.s32.totalorder %s202, %s205
    %p211 = scmp.eq.s32.totalorder %s14, 0
    %p212 = por %p210, %p211
    %p213 = scmp.ne.s32.totalorder %s202, %s205
    %p214 = scmp.eq.s32.totalorder %s19, 1
    %p215 = por %p213, %p214
    %p216 = scmp.ne.s32.totalorder %s205, %s206
    %p217 = scmp.eq.s32.totalorder %s19, 0
    %p218 = por %p216, %p217
    %p219 = scmp.ne.s32.totalorder %s205, %s206
    %p220 = scmp.eq.s32.totalorder %s20, 1
    %p221 = por %p219, %p220
    %p223 = scmp.ne.s32.totalorder %s206, %s222
    %p224 = scmp.eq.s32.totalorder %s20, 0
    %p225 = por %p223, %p224
    %p226 = scmp.le.s32.totalorder 1, %s14
    %p227 = scmp.lt.s32.totalorder %s14, 3
    %p228 = pnand %p226, %p227
    %p229 = pneg %p228
    // Predicated region
    $region9: #{residential_forward.1} parent=5 // pred_check
      _
    $region10: #{residential_forward.1} parent=5 // pred_check_branch
      %231 = sbr.rel (%p228) target = $region12
    $region11: #{residential_forward.1} parent=5 // pred_region
      %s232 = ssub.s32 %s14, 1
      // Predicated region
      $region13: #{residential_forward.1} parent=11 // pred_check
        %p233 = pneg %p87
      $region14: #{residential_forward.1} parent=11 // pred_check_branch
        %235 = sbr.rel (%p233) target = $region16
      $region15: #{residential_forward.1} parent=11 // pred_region
        _
      $region16: #{residential_forward.1} parent=11 // pred_fallthru
        _
      // Predicated region
      $region17: #{residential_forward.1} parent=11 // pred_check
        %p236 = pneg %p108
      $region18: #{residential_forward.1} parent=11 // pred_check_branch
        %238 = sbr.rel (%p236) target = $region20
      $region19: #{residential_forward.1} parent=11 // pred_region
        _
      $region20: #{residential_forward.1} parent=11 // pred_fallthru
        _
      // Predicated region
      $region21: #{residential_forward.1} parent=11 // pred_check
        %p239 = pneg %p129
      $region22: #{residential_forward.1} parent=11 // pred_check_branch
        %241 = sbr.rel (%p239) target = $region24
      $region23: #{residential_forward.1} parent=11 // pred_region
        _
      $region24: #{residential_forward.1} parent=11 // pred_fallthru
        _
      // Predicated region
      $region25: #{residential_forward.1} parent=11 // pred_check
        %p242 = pneg %p150
      $region26: #{residential_forward.1} parent=11 // pred_check_branch
        %244 = sbr.rel (%p242) target = $region28
      $region27: #{residential_forward.1} parent=11 // pred_region
        _
      $region28: #{residential_forward.1} parent=11 // pred_fallthru
        _
      // Predicated region
      $region29: #{residential_forward.1} parent=11 // pred_check
        %p245 = pneg %p171
      $region30: #{residential_forward.1} parent=11 // pred_check_branch
        %247 = sbr.rel (%p245) target = $region32
      $region31: #{residential_forward.1} parent=11 // pred_region
        _
      $region32: #{residential_forward.1} parent=11 // pred_fallthru
        _
      // Predicated region
      $region33: #{residential_forward.1} parent=11 // pred_check
        %p248 = pneg %p192
      $region34: #{residential_forward.1} parent=11 // pred_check_branch
        %250 = sbr.rel (%p248) target = $region36
      $region35: #{residential_forward.1} parent=11 // pred_region
        _
      $region36: #{residential_forward.1} parent=11 // pred_fallthru
        _
    $region12: #{residential_forward.1} parent=5 // pred_fallthru
      _
    %p251 = scmp.lt.s32.totalorder %s14, 2
    // Predicated region
    $region37: #{residential_forward.1} parent=5 // pred_check
      %p252 = pneg %p251
    $region38: #{residential_forward.1} parent=5 // pred_check_branch
      %254 = sbr.rel (%p252) target = $region40
    $region39: #{residential_forward.1} parent=5 // pred_region
      // Predicated region
      $region41: #{residential_forward.1} parent=39 // pred_check
        %p255 = pneg %p34
      $region42: #{residential_forward.1} parent=39 // pred_check_branch
        %257 = sbr.rel (%p255) target = $region44
      $region43: #{residential_forward.1} parent=39 // pred_region
        %p258 = scmp.lt.s32.totalorder %s14, 1
        %s259 = scalar_select %p258, %s14, 1
        %s260 = smul.addr %s259, 18
        %s261 = smul.addr %s260, 4
        %s262 = scalar_lea.vmem %s0, %s261
      $region44: #{residential_forward.1} parent=39 // pred_fallthru
        _
      // Predicated region
      $region45: #{residential_forward.1} parent=39 // pred_check
        %p263 = pneg %p60
      $region46: #{residential_forward.1} parent=39 // pred_check_branch
        %265 = sbr.rel (%p263) target = $region48
      $region47: #{residential_forward.1} parent=39 // pred_region
        %p266 = scmp.lt.s32.totalorder %s14, 1
        %s267 = scalar_select %p266, %s14, 1
        %s268 = smul.addr %s267, 2
        %s269 = smul.addr %s268, 8
        %s270 = scalar_lea.vmem %s1, %s269
      $region48: #{residential_forward.1} parent=39 // pred_fallthru
        _
    $region40: #{residential_forward.1} parent=5 // pred_fallthru
      _
    %p271 = scmp.le.s32.totalorder 1, %s14
    %p272 = scmp.lt.s32.totalorder %s14, 3
    %p273 = pnand %p271, %p272
    %p274 = pneg %p273
    // Predicated region
    $region49: #{residential_forward.1} parent=5 // pred_check
      _
    $region50: #{residential_forward.1} parent=5 // pred_check_branch
      %276 = sbr.rel (%p273) target = $region52
    $region51: #{residential_forward.1} parent=5 // pred_region
      %s277 = ssub.s32 %s14, 1
      %p278 = scmp.lt.s32.totalorder %s19, 1
      %s279 = scalar_select %p278, %s19, 1
      %s280 = smul.addr %s279, 18
      %s281 = smul.addr %s280, 4
      %s282 = scalar_lea.vmem %s0, %s281
      %p283 = pneg %p40
      %p284 = pneg %p37
      %p285 = scmp.lt.s32.totalorder %s19, 1
      %s286 = scalar_select %p285, %s19, 1
      %s287 = smul.addr %s286, 2
      %s288 = smul.addr %s287, 8
      %s289 = scalar_lea.vmem %s1, %s288
      %p290 = pneg %p66
      %p291 = pneg %p63
      %p292 = pneg %p87
      %p293 = pneg %p84
      %p294 = pneg %p108
      %p295 = pneg %p105
      %p296 = pneg %p129
      %p297 = pneg %p126
      %p298 = pneg %p150
      %p299 = pneg %p147
      %p300 = pneg %p171
      %p301 = pneg %p168
      %p302 = pneg %p192
      %p303 = pneg %p189
      %p304 = pneg %p218
      %p305 = pneg %p215
      %p306 = scmp.lt.s32.totalorder %s19, 1
      %s307 = scalar_select %p306, %s19, 1
      %s308 = smul.addr %s307, 2
      %s309 = smul.addr %s308, 8
      %s310 = scalar_lea.vmem %s8, %s309
      %p311 = scmp.lt.s32.totalorder %s19, 1
      %s312 = scalar_select %p311, %s19, 1
      %s313 = smul.addr %s312, 18
      %s314 = smul.addr %s313, 4
      %s315 = scalar_lea.vmem %s0, %s314
      %p316 = scmp.lt.s32.totalorder %s19, 1
      %s317 = scalar_select %p316, %s19, 1
      %s318 = smul.addr %s317, 2
      %s319 = smul.addr %s318, 8
      %s320 = scalar_lea.vmem %s1, %s319
      %p321 = scmp.lt.s32.totalorder %s19, 1
      %s322 = scalar_select %p321, %s19, 1
      %s323 = smul.addr %s322, 2
      %s324 = smul.addr %s323, 8
      %s325 = scalar_lea.vmem %s8, %s324
      %v327 = vld [vmem:[%s2] sm:$0xf]
      %v328 = vld [vmem:[%s315] sm:$0xff]
      %v329 = vld [vmem:[%s315 + $0x8] sm:$0xff]
      %v330 = vld [vmem:[%s315 + $0x10] sm:$0xff]
      %v331 = vld [vmem:[%s315 + $0x18] sm:$0xff]
      %v332 = vld [vmem:[%s315 + $0x20] sm:$0xff]
      %v333 = vld [vmem:[%s315 + $0x28] sm:$0xff]
      %v334 = vld [vmem:[%s315 + $0x30] sm:$0xff]
      %v335 = vld [vmem:[%s315 + $0x38] sm:$0xff]
      %v336 = vld [vmem:[%s315 + $0x40] sm:$0xff]
      %v346 = vunpack.c.l.b16 %v328
      %v347 = vunpack.c.h.b16 %v328
      %v348 = vunpack.c.l.b16 %v329
      %v349 = vunpack.c.h.b16 %v329
      %v350 = vunpack.c.l.b16 %v330
      %v351 = vunpack.c.h.b16 %v330
      %v352 = vunpack.c.l.b16 %v331
      %v353 = vunpack.c.h.b16 %v331
      %v354 = vunpack.c.l.b16 %v332
      %v355 = vunpack.c.h.b16 %v332
      %v356 = vunpack.c.l.b16 %v333
      %v357 = vunpack.c.h.b16 %v333
      %v358 = vunpack.c.l.b16 %v334
      %v359 = vunpack.c.h.b16 %v334
      %v360 = vunpack.c.l.b16 %v335
      %v361 = vunpack.c.h.b16 %v335
      %v362 = vunpack.c.l.b16 %v336
      %v363 = vunpack.c.h.b16 %v336
      %v364 = vpack.c.b16 %v348, %v346
      %v365 = vpack.c.b16 %v349, %v347
      %v366 = vpack.c.b16 %v352, %v350
      %v367 = vpack.c.b16 %v353, %v351
      %v368 = vpack.c.b16 %v356, %v354
      %v369 = vpack.c.b16 %v357, %v355
      %v370 = vpack.c.b16 %v360, %v358
      %v371 = vpack.c.b16 %v361, %v359
      %v372 = vpack.c.b16 %v362, %v362
      %v373 = vpack.c.b16 %v363, %v363
      %vm382 = vcmask 588800
      %v384 = vsel %vm382, %v327, 0
      %vm386 = vcmask 1043456
      %v388 = vsel %vm386, %v372, 0
      %v391 = vsel %vm386, %v373, 0
      %393 = vmatpush.bf16.msra.mxu0 0
      %394 = vmatpush.bf16.msra.mxu0 0
      %395 = vmatpush.bf16.msra.mxu0 0
      %396 = vmatpush.bf16.msra.mxu0 %v388
      %397 = vmatpush.bf16.msra.mxu0 %v370
      %398 = vmatpush.bf16.msra.mxu0 %v368
      %399 = vmatpush.bf16.msra.mxu0 %v366
      %400 = vmatpush.bf16.msra.mxu0 %v364
      %401 = vmatmul.bf16.gmra.mxu0 %v384
      %v402 = vpop.f32.mrf.mxu0
      %v403 = vadd.f32 0.0, %v402
      %v404 = vpop.f32.mrf.mxu0
      %405 = vdwg.mxu0
      %406 = vmatpush.bf16.msra.mxu0 0
      %407 = vmatpush.bf16.msra.mxu0 0
      %408 = vmatpush.bf16.msra.mxu0 0
      %409 = vmatpush.bf16.msra.mxu0 %v391
      %410 = vmatpush.bf16.msra.mxu0 %v371
      %411 = vmatpush.bf16.msra.mxu0 %v369
      %412 = vmatpush.bf16.msra.mxu0 %v367
      %413 = vmatpush.bf16.msra.mxu0 %v365
      %414 = vmatmul.bf16.gmra.mxu0 %v384
      %v415 = vpop.f32.mrf.mxu0
      %v416 = vadd.f32 0.0, %v415
      %v417 = vpop.f32.mrf.mxu0
      %418 = vdwg.mxu0
      %v419 = vld [vmem:[%s4] sm:$0xff]
      %v420 = vld [vmem:[%s5] sm:$0xff]
      %v421 = vadd.f32 %v403, %v416
      %422 = vadd.xlane.f32.xlu0 %v421
      %v423 = vpop.xlane.xlu0 %422
      %v424 = vmul.f32 %v423, 0.00390625
      %v425 = vsub.f32 %v403, %v424
      %v426 = vsub.f32 %v416, %v424
      %v427 = vmul.f32 %v425, %v425
      %v428 = vmul.f32 %v426, %v426
      %v429 = vadd.f32 %v427, %v428
      %430 = vadd.xlane.f32.xlu0 %v429
      %v431 = vpop.xlane.xlu0 %430
      %v432 = vmul.f32 %v431, 0.00390625
      %v433 = vadd.f32 %v432, 1e-05
      %v434 = vrsqrt.pop %v433
      %v435 = vmul.f32 %v434, %v433
      %v436 = vmul.f32 %v435, %v434
      %v437 = vmul.f32 0.5, %v436
      %v438 = vsub.f32 1.5, %v437
      %v439 = vmul.f32 %v434, %v438
      %vm440 = vweird.f32 %v433
      %vm441 = vweird.f32 %v434
      %vm442 = vmor %vm440, %vm441
      %v443 = vsel %vm442, %v434, %v439
      %v444 = vmul.f32 %v425, %v443
      %v445 = vmul.f32 %v426, %v443
      %447 = vset.pattern.permute.xlu0 0
      %448 = vperm.xlu0 %447, %v419
      %v449 = vpop.permute.xlu0 %448
      %v451 = vmul.f32 %v444, %v449
      %v452 = vmul.f32 %v445, %v449
      %454 = vset.pattern.permute.xlu0 0
      %455 = vperm.xlu0 %454, %v420
      %v456 = vpop.permute.xlu0 %455
      %v458 = vadd.f32 %v451, %v456
      %v459 = vadd.f32 %v452, %v456
      %v460 = vmax.f32 %v458, 0.0
      %v461 = vmax.f32 %v459, 0.0
      %463 = vrot.lane.b32.xlu0 %v460, 112
      %v464 = vpop.permute.xlu0 %463
      %466 = vrot.lane.b32.xlu0 %v460, 96
      %v467 = vpop.permute.xlu0 %466
      %469 = vrot.lane.b32.xlu0 %v460, 80
      %v470 = vpop.permute.xlu0 %469
      %472 = vrot.lane.b32.xlu0 %v460, 64
      %v473 = vpop.permute.xlu0 %472
      %475 = vrot.lane.b32.xlu0 %v460, 48
      %v476 = vpop.permute.xlu0 %475
      %478 = vrot.lane.b32.xlu0 %v460, 32
      %v479 = vpop.permute.xlu0 %478
      %481 = vrot.lane.b32.xlu0 %v460, 16
      %v482 = vpop.permute.xlu0 %481
      %485 = vrot.lane.b32.xlu0 %v461, 112
      %v486 = vpop.permute.xlu0 %485
      %488 = vrot.lane.b32.xlu0 %v461, 96
      %v489 = vpop.permute.xlu0 %488
      %491 = vrot.lane.b32.xlu0 %v461, 80
      %v492 = vpop.permute.xlu0 %491
      %494 = vrot.lane.b32.xlu0 %v461, 64
      %v495 = vpop.permute.xlu0 %494
      %497 = vrot.lane.b32.xlu0 %v461, 48
      %v498 = vpop.permute.xlu0 %497
      %500 = vrot.lane.b32.xlu0 %v461, 32
      %v501 = vpop.permute.xlu0 %500
      %503 = vrot.lane.b32.xlu0 %v461, 16
      %v504 = vpop.permute.xlu0 %503
      %v506 = vrot.slane %v467, 4
      %vm507 = vcmask 1047556
      %v508 = vsel %vm507, %v506, %v460
      %v509 = vrot.slane %v460, 4
      %v510 = vsel %vm507, %v467, %v509
      %v512 = vunpack.c.l.s4 1983009808
      %v513 = vunpack.c.0.s8 %v512
      %v514 = vperm.slane %v508, %v513
      %v516 = vunpack.c.l.s4 1983009808
      %v517 = vunpack.c.0.s8 %v516
      %v518 = vperm.slane %v510, %v517
      %v519 = vrot.slane %v470, 4
      %v520 = vsel %vm507, %v519, %v464
      %v521 = vrot.slane %v464, 4
      %v522 = vsel %vm507, %v470, %v521
      %v524 = vunpack.c.l.s4 1983009808
      %v525 = vunpack.c.0.s8 %v524
      %v526 = vperm.slane %v520, %v525
      %v528 = vunpack.c.l.s4 1983009808
      %v529 = vunpack.c.0.s8 %v528
      %v530 = vperm.slane %v522, %v529
      %v531 = vrot.slane %v479, 4
      %v532 = vsel %vm507, %v531, %v473
      %v533 = vrot.slane %v473, 4
      %v534 = vsel %vm507, %v479, %v533
      %v536 = vunpack.c.l.s4 1983009808
      %v537 = vunpack.c.0.s8 %v536
      %v538 = vperm.slane %v532, %v537
      %v540 = vunpack.c.l.s4 1983009808
      %v541 = vunpack.c.0.s8 %v540
      %v542 = vperm.slane %v534, %v541
      %v543 = vrot.slane %v482, 4
      %v544 = vsel %vm507, %v543, %v476
      %v545 = vrot.slane %v476, 4
      %v546 = vsel %vm507, %v482, %v545
      %v548 = vunpack.c.l.s4 1983009808
      %v549 = vunpack.c.0.s8 %v548
      %v550 = vperm.slane %v544, %v549
      %v552 = vunpack.c.l.s4 1983009808
      %v553 = vunpack.c.0.s8 %v552
      %v554 = vperm.slane %v546, %v553
      %v555 = vrot.slane %v526, 4
      %v556 = vsel %vm507, %v555, %v514
      %v557 = vrot.slane %v514, 4
      %v558 = vsel %vm507, %v526, %v557
      %v560 = vunpack.c.l.s4 1934713408
      %v561 = vunpack.c.0.s8 %v560
      %v562 = vperm.slane %v556, %v561
      %v564 = vunpack.c.l.s4 1934713408
      %v565 = vunpack.c.0.s8 %v564
      %v566 = vperm.slane %v558, %v565
      %v567 = vrot.slane %v530, 4
      %v568 = vsel %vm507, %v567, %v518
      %v569 = vrot.slane %v518, 4
      %v570 = vsel %vm507, %v530, %v569
      %v572 = vunpack.c.l.s4 1934713408
      %v573 = vunpack.c.0.s8 %v572
      %v574 = vperm.slane %v568, %v573
      %v576 = vunpack.c.l.s4 1934713408
      %v577 = vunpack.c.0.s8 %v576
      %v578 = vperm.slane %v570, %v577
      %v579 = vrot.slane %v550, 4
      %v580 = vsel %vm507, %v579, %v538
      %v581 = vrot.slane %v538, 4
      %v582 = vsel %vm507, %v550, %v581
      %v584 = vunpack.c.l.s4 1934713408
      %v585 = vunpack.c.0.s8 %v584
      %v586 = vperm.slane %v580, %v585
      %v588 = vunpack.c.l.s4 1934713408
      %v589 = vunpack.c.0.s8 %v588
      %v590 = vperm.slane %v582, %v589
      %v591 = vrot.slane %v554, 4
      %v592 = vsel %vm507, %v591, %v542
      %v593 = vrot.slane %v542, 4
      %v594 = vsel %vm507, %v554, %v593
      %v596 = vunpack.c.l.s4 1934713408
      %v597 = vunpack.c.0.s8 %v596
      %v598 = vperm.slane %v592, %v597
      %v600 = vunpack.c.l.s4 1934713408
      %v601 = vunpack.c.0.s8 %v600
      %v602 = vperm.slane %v594, %v601
      %v603 = vrot.slane %v586, 4
      %v604 = vsel %vm507, %v603, %v562
      %v605 = vrot.slane %v562, 4
      %v606 = vsel %vm507, %v586, %v605
      %v607 = vrot.slane %v590, 4
      %v608 = vsel %vm507, %v607, %v566
      %v609 = vrot.slane %v566, 4
      %v610 = vsel %vm507, %v590, %v609
      %v611 = vrot.slane %v598, 4
      %v612 = vsel %vm507, %v611, %v574
      %v613 = vrot.slane %v574, 4
      %v614 = vsel %vm507, %v598, %v613
      %v615 = vrot.slane %v602, 4
      %v616 = vsel %vm507, %v615, %v578
      %v617 = vrot.slane %v578, 4
      %v618 = vsel %vm507, %v602, %v617
      %v619 = vrot.slane %v489, 4
      %v620 = vsel %vm507, %v619, %v461
      %v621 = vrot.slane %v461, 4
      %v622 = vsel %vm507, %v489, %v621
      %v624 = vunpack.c.l.s4 1983009808
      %v625 = vunpack.c.0.s8 %v624
      %v626 = vperm.slane %v620, %v625
      %v628 = vunpack.c.l.s4 1983009808
      %v629 = vunpack.c.0.s8 %v628
      %v630 = vperm.slane %v622, %v629
      %v631 = vrot.slane %v492, 4
      %v632 = vsel %vm507, %v631, %v486
      %v633 = vrot.slane %v486, 4
      %v634 = vsel %vm507, %v492, %v633
      %v636 = vunpack.c.l.s4 1983009808
      %v637 = vunpack.c.0.s8 %v636
      %v638 = vperm.slane %v632, %v637
      %v640 = vunpack.c.l.s4 1983009808
      %v641 = vunpack.c.0.s8 %v640
      %v642 = vperm.slane %v634, %v641
      %v643 = vrot.slane %v501, 4
      %v644 = vsel %vm507, %v643, %v495
      %v645 = vrot.slane %v495, 4
      %v646 = vsel %vm507, %v501, %v645
      %v648 = vunpack.c.l.s4 1983009808
      %v649 = vunpack.c.0.s8 %v648
      %v650 = vperm.slane %v644, %v649
      %v652 = vunpack.c.l.s4 1983009808
      %v653 = vunpack.c.0.s8 %v652
      %v654 = vperm.slane %v646, %v653
      %v655 = vrot.slane %v504, 4
      %v656 = vsel %vm507, %v655, %v498
      %v657 = vrot.slane %v498, 4
      %v658 = vsel %vm507, %v504, %v657
      %v660 = vunpack.c.l.s4 1983009808
      %v661 = vunpack.c.0.s8 %v660
      %v662 = vperm.slane %v656, %v661
      %v664 = vunpack.c.l.s4 1983009808
      %v665 = vunpack.c.0.s8 %v664
      %v666 = vperm.slane %v658, %v665
      %v667 = vrot.slane %v638, 4
      %v668 = vsel %vm507, %v667, %v626
      %v669 = vrot.slane %v626, 4
      %v670 = vsel %vm507, %v638, %v669
      %v672 = vunpack.c.l.s4 1934713408
      %v673 = vunpack.c.0.s8 %v672
      %v674 = vperm.slane %v668, %v673
      %v676 = vunpack.c.l.s4 1934713408
      %v677 = vunpack.c.0.s8 %v676
      %v678 = vperm.slane %v670, %v677
      %v679 = vrot.slane %v642, 4
      %v680 = vsel %vm507, %v679, %v630
      %v681 = vrot.slane %v630, 4
      %v682 = vsel %vm507, %v642, %v681
      %v684 = vunpack.c.l.s4 1934713408
      %v685 = vunpack.c.0.s8 %v684
      %v686 = vperm.slane %v680, %v685
      %v688 = vunpack.c.l.s4 1934713408
      %v689 = vunpack.c.0.s8 %v688
      %v690 = vperm.slane %v682, %v689
      %v691 = vrot.slane %v662, 4
      %v692 = vsel %vm507, %v691, %v650
      %v693 = vrot.slane %v650, 4
      %v694 = vsel %vm507, %v662, %v693
      %v696 = vunpack.c.l.s4 1934713408
      %v697 = vunpack.c.0.s8 %v696
      %v698 = vperm.slane %v692, %v697
      %v700 = vunpack.c.l.s4 1934713408
      %v701 = vunpack.c.0.s8 %v700
      %v702 = vperm.slane %v694, %v701
      %v703 = vrot.slane %v666, 4
      %v704 = vsel %vm507, %v703, %v654
      %v705 = vrot.slane %v654, 4
      %v706 = vsel %vm507, %v666, %v705
      %v708 = vunpack.c.l.s4 1934713408
      %v709 = vunpack.c.0.s8 %v708
      %v710 = vperm.slane %v704, %v709
      %v712 = vunpack.c.l.s4 1934713408
      %v713 = vunpack.c.0.s8 %v712
      %v714 = vperm.slane %v706, %v713
      %v715 = vrot.slane %v698, 4
      %v716 = vsel %vm507, %v715, %v674
      %v717 = vrot.slane %v674, 4
      %v718 = vsel %vm507, %v698, %v717
      %v719 = vrot.slane %v702, 4
      %v720 = vsel %vm507, %v719, %v678
      %v721 = vrot.slane %v678, 4
      %v722 = vsel %vm507, %v702, %v721
      %v723 = vrot.slane %v710, 4
      %v724 = vsel %vm507, %v723, %v686
      %v725 = vrot.slane %v686, 4
      %v726 = vsel %vm507, %v710, %v725
      %v727 = vrot.slane %v714, 4
      %v728 = vsel %vm507, %v727, %v690
      %v729 = vrot.slane %v690, 4
      %v730 = vsel %vm507, %v714, %v729
      %747 = vrot.lane.b32.xlu0 %v604, 1
      %v748 = vpop.permute.xlu0 %747
      %749 = vrot.lane.b32.xlu0 %v716, 1
      %v750 = vpop.permute.xlu0 %749
      %751 = vrot.lane.b32.xlu0 %v606, 1
      %v752 = vpop.permute.xlu0 %751
      %753 = vrot.lane.b32.xlu0 %v718, 1
      %v754 = vpop.permute.xlu0 %753
      %755 = vrot.lane.b32.xlu0 %v608, 1
      %v756 = vpop.permute.xlu0 %755
      %757 = vrot.lane.b32.xlu0 %v720, 1
      %v758 = vpop.permute.xlu0 %757
      %759 = vrot.lane.b32.xlu0 %v610, 1
      %v760 = vpop.permute.xlu0 %759
      %761 = vrot.lane.b32.xlu0 %v722, 1
      %v762 = vpop.permute.xlu0 %761
      %763 = vrot.lane.b32.xlu0 %v612, 1
      %v764 = vpop.permute.xlu0 %763
      %765 = vrot.lane.b32.xlu0 %v724, 1
      %v766 = vpop.permute.xlu0 %765
      %767 = vrot.lane.b32.xlu0 %v614, 1
      %v768 = vpop.permute.xlu0 %767
      %769 = vrot.lane.b32.xlu0 %v726, 1
      %v770 = vpop.permute.xlu0 %769
      %771 = vrot.lane.b32.xlu0 %v616, 1
      %v772 = vpop.permute.xlu0 %771
      %773 = vrot.lane.b32.xlu0 %v728, 1
      %v774 = vpop.permute.xlu0 %773
      %775 = vrot.lane.b32.xlu0 %v618, 1
      %v776 = vpop.permute.xlu0 %775
      %777 = vrot.lane.b32.xlu0 %v730, 1
      %v778 = vpop.permute.xlu0 %777
      %vm795 = vcmask 138248
      %796 = vst.msk [vmem:[#allocation2 + $0x1] sm:$0xff] %vm795, %v748
      %797 = vst.msk [vmem:[#allocation2 + $0x9] sm:$0xff] %vm795, %v750
      %798 = vst.msk [vmem:[#allocation2 + $0x19] sm:$0xff] %vm795, %v752
      %799 = vst.msk [vmem:[#allocation2 + $0x21] sm:$0xff] %vm795, %v754
      %800 = vst.msk [vmem:[#allocation2 + $0x31] sm:$0xff] %vm795, %v756
      %801 = vst.msk [vmem:[#allocation2 + $0x39] sm:$0xff] %vm795, %v758
      %802 = vst.msk [vmem:[#allocation2 + $0x49] sm:$0xff] %vm795, %v760
      %803 = vst.msk [vmem:[#allocation2 + $0x51] sm:$0xff] %vm795, %v762
      %804 = vst.msk [vmem:[#allocation2 + $0x61] sm:$0xff] %vm795, %v764
      %805 = vst.msk [vmem:[#allocation2 + $0x69] sm:$0xff] %vm795, %v766
      %806 = vst.msk [vmem:[#allocation2 + $0x79] sm:$0xff] %vm795, %v768
      %807 = vst.msk [vmem:[#allocation2 + $0x81] sm:$0xff] %vm795, %v770
      %808 = vst.msk [vmem:[#allocation2 + $0x91] sm:$0xff] %vm795, %v772
      %809 = vst.msk [vmem:[#allocation2 + $0x99] sm:$0xff] %vm795, %v774
      %810 = vst.msk [vmem:[#allocation2 + $0xa9] sm:$0xff] %vm795, %v776
      %811 = vst.msk [vmem:[#allocation2 + $0xb1] sm:$0xff] %vm795, %v778
      %vm812 = vcmask 132105
      %813 = vst.msk [vmem:[#allocation2 - $0x1] sm:$0x2] %vm812, %v748
      %814 = vst.msk [vmem:[#allocation2 + $0x17] sm:$0x2] %vm812, %v752
      %815 = vst.msk [vmem:[#allocation2 + $0x2f] sm:$0x2] %vm812, %v756
      %816 = vst.msk [vmem:[#allocation2 + $0x47] sm:$0x2] %vm812, %v760
      %817 = vst.msk [vmem:[#allocation2 + $0x5f] sm:$0x2] %vm812, %v764
      %818 = vst.msk [vmem:[#allocation2 + $0x77] sm:$0x2] %vm812, %v768
      %819 = vst.msk [vmem:[#allocation2 + $0x8f] sm:$0x2] %vm812, %v772
      %820 = vst.msk [vmem:[#allocation2 + $0xa7] sm:$0x2] %vm812, %v776
      %vm821 = vcmask 137230
      %822 = vst.msk [vmem:[#allocation2 + $0xb] sm:$0x40] %vm821, %v750
      %823 = vst.msk [vmem:[#allocation2 + $0x23] sm:$0x40] %vm821, %v754
      %824 = vst.msk [vmem:[#allocation2 + $0x3b] sm:$0x40] %vm821, %v758
      %825 = vst.msk [vmem:[#allocation2 + $0x53] sm:$0x40] %vm821, %v762
      %826 = vst.msk [vmem:[#allocation2 + $0x6b] sm:$0x40] %vm821, %v766
      %827 = vst.msk [vmem:[#allocation2 + $0x83] sm:$0x40] %vm821, %v770
      %828 = vst.msk [vmem:[#allocation2 + $0x9b] sm:$0x40] %vm821, %v774
      %829 = vst.msk [vmem:[#allocation2 + $0xb3] sm:$0x40] %vm821, %v778
      %v830 = vld [vmem:[#allocation2] sm:$0xff]
      %v831 = vld [vmem:[#allocation2 + $0x8] sm:$0xff]
      %v832 = vld [vmem:[#allocation2 + $0x10] sm:$0x3]
      %v833 = vld [vmem:[#allocation2 + $0x18] sm:$0xff]
      %v834 = vld [vmem:[#allocation2 + $0x20] sm:$0xff]
      %v835 = vld [vmem:[#allocation2 + $0x28] sm:$0x3]
      %v836 = vld [vmem:[#allocation2 + $0x30] sm:$0xff]
      %v837 = vld [vmem:[#allocation2 + $0x38] sm:$0xff]
      %v838 = vld [vmem:[#allocation2 + $0x40] sm:$0x3]
      %v839 = vld [vmem:[#allocation2 + $0x48] sm:$0xff]
      %v840 = vld [vmem:[#allocation2 + $0x50] sm:$0xff]
      %v841 = vld [vmem:[#allocation2 + $0x58] sm:$0x3]
      %v842 = vld [vmem:[#allocation2 + $0x60] sm:$0xff]
      %v843 = vld [vmem:[#allocation2 + $0x68] sm:$0xff]
      %v844 = vld [vmem:[#allocation2 + $0x70] sm:$0x3]
      %v845 = vld [vmem:[#allocation2 + $0x78] sm:$0xff]
      %v846 = vld [vmem:[#allocation2 + $0x80] sm:$0xff]
      %v847 = vld [vmem:[#allocation2 + $0x88] sm:$0x3]
      %v848 = vld [vmem:[#allocation2 + $0x90] sm:$0xff]
      %v849 = vld [vmem:[#allocation2 + $0x98] sm:$0xff]
      %v850 = vld [vmem:[#allocation2 + $0xa0] sm:$0x3]
      %v851 = vld [vmem:[#allocation2 + $0xa8] sm:$0xff]
      %v852 = vld [vmem:[#allocation2 + $0xb0] sm:$0xff]
      %v853 = vld [vmem:[#allocation2 + $0xb8] sm:$0x3]
      %878 = vrot.lane.b32.xlu0 %v830, 126
      %v879 = vpop.permute.xlu0 %878
      %880 = vrot.lane.b32.xlu0 %v831, 126
      %v881 = vpop.permute.xlu0 %880
      %882 = vrot.lane.b32.xlu0 %v832, 126
      %v883 = vpop.permute.xlu0 %882
      %884 = vrot.lane.b32.xlu0 %v833, 126
      %v885 = vpop.permute.xlu0 %884
      %886 = vrot.lane.b32.xlu0 %v834, 126
      %v887 = vpop.permute.xlu0 %886
      %888 = vrot.lane.b32.xlu0 %v835, 126
      %v889 = vpop.permute.xlu0 %888
      %890 = vrot.lane.b32.xlu0 %v836, 126
      %v891 = vpop.permute.xlu0 %890
      %892 = vrot.lane.b32.xlu0 %v837, 126
      %v893 = vpop.permute.xlu0 %892
      %894 = vrot.lane.b32.xlu0 %v838, 126
      %v895 = vpop.permute.xlu0 %894
      %896 = vrot.lane.b32.xlu0 %v839, 126
      %v897 = vpop.permute.xlu0 %896
      %898 = vrot.lane.b32.xlu0 %v840, 126
      %v899 = vpop.permute.xlu0 %898
      %900 = vrot.lane.b32.xlu0 %v841, 126
      %v901 = vpop.permute.xlu0 %900
      %902 = vrot.lane.b32.xlu0 %v842, 126
      %v903 = vpop.permute.xlu0 %902
      %904 = vrot.lane.b32.xlu0 %v843, 126
      %v905 = vpop.permute.xlu0 %904
      %906 = vrot.lane.b32.xlu0 %v844, 126
      %v907 = vpop.permute.xlu0 %906
      %908 = vrot.lane.b32.xlu0 %v845, 126
      %v909 = vpop.permute.xlu0 %908
      %910 = vrot.lane.b32.xlu0 %v846, 126
      %v911 = vpop.permute.xlu0 %910
      %912 = vrot.lane.b32.xlu0 %v847, 126
      %v913 = vpop.permute.xlu0 %912
      %914 = vrot.lane.b32.xlu0 %v848, 126
      %v915 = vpop.permute.xlu0 %914
      %916 = vrot.lane.b32.xlu0 %v849, 126
      %v917 = vpop.permute.xlu0 %916
      %918 = vrot.lane.b32.xlu0 %v850, 126
      %v919 = vpop.permute.xlu0 %918
      %920 = vrot.lane.b32.xlu0 %v851, 126
      %v921 = vpop.permute.xlu0 %920
      %922 = vrot.lane.b32.xlu0 %v852, 126
      %v923 = vpop.permute.xlu0 %922
      %924 = vrot.lane.b32.xlu0 %v853, 126
      %v925 = vpop.permute.xlu0 %924
      %vm950 = vcmask 7168
      %951 = vst.msk [vmem:[#allocation2] sm:$0xff] %vm950, %v879
      %952 = vst.msk [vmem:[#allocation2 + $0x8] sm:$0xff] %vm950, %v881
      %vm953 = vcmask 1024
      %954 = vst.msk [vmem:[#allocation2 + $0x10] sm:$0x3] %vm953, %v883
      %955 = vst.msk [vmem:[#allocation2 + $0x18] sm:$0xff] %vm950, %v885
      %956 = vst.msk [vmem:[#allocation2 + $0x20] sm:$0xff] %vm950, %v887
      %957 = vst.msk [vmem:[#allocation2 + $0x28] sm:$0x3] %vm953, %v889
      %958 = vst.msk [vmem:[#allocation2 + $0x30] sm:$0xff] %vm950, %v891
      %959 = vst.msk [vmem:[#allocation2 + $0x38] sm:$0xff] %vm950, %v893
      %960 = vst.msk [vmem:[#allocation2 + $0x40] sm:$0x3] %vm953, %v895
      %961 = vst.msk [vmem:[#allocation2 + $0x48] sm:$0xff] %vm950, %v897
      %962 = vst.msk [vmem:[#allocation2 + $0x50] sm:$0xff] %vm950, %v899
      %963 = vst.msk [vmem:[#allocation2 + $0x58] sm:$0x3] %vm953, %v901
      %964 = vst.msk [vmem:[#allocation2 + $0x60] sm:$0xff] %vm950, %v903
      %965 = vst.msk [vmem:[#allocation2 + $0x68] sm:$0xff] %vm950, %v905
      %966 = vst.msk [vmem:[#allocation2 + $0x70] sm:$0x3] %vm953, %v907
      %967 = vst.msk [vmem:[#allocation2 + $0x78] sm:$0xff] %vm950, %v909
      %968 = vst.msk [vmem:[#allocation2 + $0x80] sm:$0xff] %vm950, %v911
      %969 = vst.msk [vmem:[#allocation2 + $0x88] sm:$0x3] %vm953, %v913
      %970 = vst.msk [vmem:[#allocation2 + $0x90] sm:$0xff] %vm950, %v915
      %971 = vst.msk [vmem:[#allocation2 + $0x98] sm:$0xff] %vm950, %v917
      %972 = vst.msk [vmem:[#allocation2 + $0xa0] sm:$0x3] %vm953, %v919
      %973 = vst.msk [vmem:[#allocation2 + $0xa8] sm:$0xff] %vm950, %v921
      %974 = vst.msk [vmem:[#allocation2 + $0xb0] sm:$0xff] %vm950, %v923
      %975 = vst.msk [vmem:[#allocation2 + $0xb8] sm:$0x3] %vm953, %v925
      %v976 = vld [vmem:[#allocation2] sm:$0xff]
      %v977 = vld [vmem:[#allocation2 + $0x8] sm:$0xff]
      %v978 = vld [vmem:[#allocation2 + $0x10] sm:$0x3]
      %v979 = vld [vmem:[#allocation2 + $0x18] sm:$0xff]
      %v980 = vld [vmem:[#allocation2 + $0x20] sm:$0xff]
      %v981 = vld [vmem:[#allocation2 + $0x28] sm:$0x3]
      %v982 = vld [vmem:[#allocation2 + $0x30] sm:$0xff]
      %v983 = vld [vmem:[#allocation2 + $0x38] sm:$0xff]
      %v984 = vld [vmem:[#allocation2 + $0x40] sm:$0x3]
      %v985 = vld [vmem:[#allocation2 + $0x48] sm:$0xff]
      %v986 = vld [vmem:[#allocation2 + $0x50] sm:$0xff]
      %v987 = vld [vmem:[#allocation2 + $0x58] sm:$0x3]
      %v988 = vld [vmem:[#allocation2 + $0x60] sm:$0xff]
      %v989 = vld [vmem:[#allocation2 + $0x68] sm:$0xff]
      %v990 = vld [vmem:[#allocation2 + $0x70] sm:$0x3]
      %v991 = vld [vmem:[#allocation2 + $0x78] sm:$0xff]
      %v992 = vld [vmem:[#allocation2 + $0x80] sm:$0xff]
      %v993 = vld [vmem:[#allocation2 + $0x88] sm:$0x3]
      %v994 = vld [vmem:[#allocation2 + $0x90] sm:$0xff]
      %v995 = vld [vmem:[#allocation2 + $0x98] sm:$0xff]
      %v996 = vld [vmem:[#allocation2 + $0xa0] sm:$0x3]
      %v997 = vld [vmem:[#allocation2 + $0xa8] sm:$0xff]
      %v998 = vld [vmem:[#allocation2 + $0xb0] sm:$0xff]
      %v999 = vld [vmem:[#allocation2 + $0xb8] sm:$0x3]
      %1024 = vrot.lane.b32.xlu0 %v976, 2
      %v1025 = vpop.permute.xlu0 %1024
      %1026 = vrot.lane.b32.xlu0 %v977, 2
      %v1027 = vpop.permute.xlu0 %1026
      %1028 = vrot.lane.b32.xlu0 %v978, 2
      %v1029 = vpop.permute.xlu0 %1028
      %1030 = vrot.lane.b32.xlu0 %v979, 2
      %v1031 = vpop.permute.xlu0 %1030
      %1032 = vrot.lane.b32.xlu0 %v980, 2
      %v1033 = vpop.permute.xlu0 %1032
      %1034 = vrot.lane.b32.xlu0 %v981, 2
      %v1035 = vpop.permute.xlu0 %1034
      %1036 = vrot.lane.b32.xlu0 %v982, 2
      %v1037 = vpop.permute.xlu0 %1036
      %1038 = vrot.lane.b32.xlu0 %v983, 2
      %v1039 = vpop.permute.xlu0 %1038
      %1040 = vrot.lane.b32.xlu0 %v984, 2
      %v1041 = vpop.permute.xlu0 %1040
      %1042 = vrot.lane.b32.xlu0 %v985, 2
      %v1043 = vpop.permute.xlu0 %1042
      %1044 = vrot.lane.b32.xlu0 %v986, 2
      %v1045 = vpop.permute.xlu0 %1044
      %1046 = vrot.lane.b32.xlu0 %v987, 2
      %v1047 = vpop.permute.xlu0 %1046
      %1048 = vrot.lane.b32.xlu0 %v988, 2
      %v1049 = vpop.permute.xlu0 %1048
      %1050 = vrot.lane.b32.xlu0 %v989, 2
      %v1051 = vpop.permute.xlu0 %1050
      %1052 = vrot.lane.b32.xlu0 %v990, 2
      %v1053 = vpop.permute.xlu0 %1052
      %1054 = vrot.lane.b32.xlu0 %v991, 2
      %v1055 = vpop.permute.xlu0 %1054
      %1056 = vrot.lane.b32.xlu0 %v992, 2
      %v1057 = vpop.permute.xlu0 %1056
      %1058 = vrot.lane.b32.xlu0 %v993, 2
      %v1059 = vpop.permute.xlu0 %1058
      %1060 = vrot.lane.b32.xlu0 %v994, 2
      %v1061 = vpop.permute.xlu0 %1060
      %1062 = vrot.lane.b32.xlu0 %v995, 2
      %v1063 = vpop.permute.xlu0 %1062
      %1064 = vrot.lane.b32.xlu0 %v996, 2
      %v1065 = vpop.permute.xlu0 %1064
      %1066 = vrot.lane.b32.xlu0 %v997, 2
      %v1067 = vpop.permute.xlu0 %1066
      %1068 = vrot.lane.b32.xlu0 %v998, 2
      %v1069 = vpop.permute.xlu0 %1068
      %1070 = vrot.lane.b32.xlu0 %v999, 2
      %v1071 = vpop.permute.xlu0 %1070
      %vm1096 = vcmask 146568
      %1097 = vst.msk [vmem:[#allocation2] sm:$0xff] %vm1096, %v1025
      %1098 = vst.msk [vmem:[#allocation2 + $0x8] sm:$0xff] %vm1096, %v1027
      %vm1099 = vcmask 140424
      %1100 = vst.msk [vmem:[#allocation2 + $0x10] sm:$0x3] %vm1099, %v1029
      %1101 = vst.msk [vmem:[#allocation2 + $0x18] sm:$0xff] %vm1096, %v1031
      %1102 = vst.msk [vmem:[#allocation2 + $0x20] sm:$0xff] %vm1096, %v1033
      %1103 = vst.msk [vmem:[#allocation2 + $0x28] sm:$0x3] %vm1099, %v1035
      %1104 = vst.msk [vmem:[#allocation2 + $0x30] sm:$0xff] %vm1096, %v1037
      %1105 = vst.msk [vmem:[#allocation2 + $0x38] sm:$0xff] %vm1096, %v1039
      %1106 = vst.msk [vmem:[#allocation2 + $0x40] sm:$0x3] %vm1099, %v1041
      %1107 = vst.msk [vmem:[#allocation2 + $0x48] sm:$0xff] %vm1096, %v1043
      %1108 = vst.msk [vmem:[#allocation2 + $0x50] sm:$0xff] %vm1096, %v1045
      %1109 = vst.msk [vmem:[#allocation2 + $0x58] sm:$0x3] %vm1099, %v1047
      %1110 = vst.msk [vmem:[#allocation2 + $0x60] sm:$0xff] %vm1096, %v1049
      %1111 = vst.msk [vmem:[#allocation2 + $0x68] sm:$0xff] %vm1096, %v1051
      %1112 = vst.msk [vmem:[#allocation2 + $0x70] sm:$0x3] %vm1099, %v1053
      %1113 = vst.msk [vmem:[#allocation2 + $0x78] sm:$0xff] %vm1096, %v1055
      %1114 = vst.msk [vmem:[#allocation2 + $0x80] sm:$0xff] %vm1096, %v1057
      %1115 = vst.msk [vmem:[#allocation2 + $0x88] sm:$0x3] %vm1099, %v1059
      %1116 = vst.msk [vmem:[#allocation2 + $0x90] sm:$0xff] %vm1096, %v1061
      %1117 = vst.msk [vmem:[#allocation2 + $0x98] sm:$0xff] %vm1096, %v1063
      %1118 = vst.msk [vmem:[#allocation2 + $0xa0] sm:$0x3] %vm1099, %v1065
      %1119 = vst.msk [vmem:[#allocation2 + $0xa8] sm:$0xff] %vm1096, %v1067
      %1120 = vst.msk [vmem:[#allocation2 + $0xb0] sm:$0xff] %vm1096, %v1069
      %1121 = vst.msk [vmem:[#allocation2 + $0xb8] sm:$0x3] %vm1099, %v1071
      %v1122 = vld [vmem:[#allocation2] sm:$0xff]
      %v1123 = vld [vmem:[#allocation2 + $0x8] sm:$0xff]
      %v1124 = vld [vmem:[#allocation2 + $0x18] sm:$0xff]
      %v1125 = vld [vmem:[#allocation2 + $0x20] sm:$0xff]
      %v1126 = vld [vmem:[#allocation2 + $0x30] sm:$0xff]
      %v1127 = vld [vmem:[#allocation2 + $0x38] sm:$0xff]
      %v1128 = vld [vmem:[#allocation2 + $0x48] sm:$0xff]
      %v1129 = vld [vmem:[#allocation2 + $0x50] sm:$0xff]
      %v1130 = vld [vmem:[#allocation2 + $0x60] sm:$0xff]
      %v1131 = vld [vmem:[#allocation2 + $0x68] sm:$0xff]
      %v1132 = vld [vmem:[#allocation2 + $0x78] sm:$0xff]
      %v1133 = vld [vmem:[#allocation2 + $0x80] sm:$0xff]
      %v1134 = vld [vmem:[#allocation2 + $0x90] sm:$0xff]
      %v1135 = vld [vmem:[#allocation2 + $0x98] sm:$0xff]
      %v1136 = vld [vmem:[#allocation2 + $0xa8] sm:$0xff]
      %v1137 = vld [vmem:[#allocation2 + $0xb0] sm:$0xff]
      %v1138 = vrot.slane %v1126, 4
      %v1139 = vsel %vm507, %v1138, %v1122
      %v1140 = vrot.slane %v1122, 4
      %v1141 = vsel %vm507, %v1126, %v1140
      %v1143 = vunpack.c.l.s4 1983009808
      %v1144 = vunpack.c.0.s8 %v1143
      %v1145 = vperm.slane %v1139, %v1144
      %v1147 = vunpack.c.l.s4 1983009808
      %v1148 = vunpack.c.0.s8 %v1147
      %v1149 = vperm.slane %v1141, %v1148
      %v1150 = vrot.slane %v1128, 4
      %v1151 = vsel %vm507, %v1150, %v1124
      %v1152 = vrot.slane %v1124, 4
      %v1153 = vsel %vm507, %v1128, %v1152
      %v1155 = vunpack.c.l.s4 1983009808
      %v1156 = vunpack.c.0.s8 %v1155
      %v1157 = vperm.slane %v1151, %v1156
      %v1159 = vunpack.c.l.s4 1983009808
      %v1160 = vunpack.c.0.s8 %v1159
      %v1161 = vperm.slane %v1153, %v1160
      %v1162 = vrot.slane %v1134, 4
      %v1163 = vsel %vm507, %v1162, %v1130
      %v1164 = vrot.slane %v1130, 4
      %v1165 = vsel %vm507, %v1134, %v1164
      %v1167 = vunpack.c.l.s4 1983009808
      %v1168 = vunpack.c.0.s8 %v1167
      %v1169 = vperm.slane %v1163, %v1168
      %v1171 = vunpack.c.l.s4 1983009808
      %v1172 = vunpack.c.0.s8 %v1171
      %v1173 = vperm.slane %v1165, %v1172
      %v1174 = vrot.slane %v1136, 4
      %v1175 = vsel %vm507, %v1174, %v1132
      %v1176 = vrot.slane %v1132, 4
      %v1177 = vsel %vm507, %v1136, %v1176
      %v1179 = vunpack.c.l.s4 1983009808
      %v1180 = vunpack.c.0.s8 %v1179
      %v1181 = vperm.slane %v1175, %v1180
      %v1183 = vunpack.c.l.s4 1983009808
      %v1184 = vunpack.c.0.s8 %v1183
      %v1185 = vperm.slane %v1177, %v1184
      %v1186 = vrot.slane %v1157, 4
      %v1187 = vsel %vm507, %v1186, %v1145
      %v1188 = vrot.slane %v1145, 4
      %v1189 = vsel %vm507, %v1157, %v1188
      %v1191 = vunpack.c.l.s4 1934713408
      %v1192 = vunpack.c.0.s8 %v1191
      %v1193 = vperm.slane %v1187, %v1192
      %v1195 = vunpack.c.l.s4 1934713408
      %v1196 = vunpack.c.0.s8 %v1195
      %v1197 = vperm.slane %v1189, %v1196
      %v1198 = vrot.slane %v1161, 4
      %v1199 = vsel %vm507, %v1198, %v1149
      %v1200 = vrot.slane %v1149, 4
      %v1201 = vsel %vm507, %v1161, %v1200
      %v1203 = vunpack.c.l.s4 1934713408
      %v1204 = vunpack.c.0.s8 %v1203
      %v1205 = vperm.slane %v1199, %v1204
      %v1207 = vunpack.c.l.s4 1934713408
      %v1208 = vunpack.c.0.s8 %v1207
      %v1209 = vperm.slane %v1201, %v1208
      %v1210 = vrot.slane %v1181, 4
      %v1211 = vsel %vm507, %v1210, %v1169
      %v1212 = vrot.slane %v1169, 4
      %v1213 = vsel %vm507, %v1181, %v1212
      %v1215 = vunpack.c.l.s4 1934713408
      %v1216 = vunpack.c.0.s8 %v1215
      %v1217 = vperm.slane %v1211, %v1216
      %v1219 = vunpack.c.l.s4 1934713408
      %v1220 = vunpack.c.0.s8 %v1219
      %v1221 = vperm.slane %v1213, %v1220
      %v1222 = vrot.slane %v1185, 4
      %v1223 = vsel %vm507, %v1222, %v1173
      %v1224 = vrot.slane %v1173, 4
      %v1225 = vsel %vm507, %v1185, %v1224
      %v1227 = vunpack.c.l.s4 1934713408
      %v1228 = vunpack.c.0.s8 %v1227
      %v1229 = vperm.slane %v1223, %v1228
      %v1231 = vunpack.c.l.s4 1934713408
      %v1232 = vunpack.c.0.s8 %v1231
      %v1233 = vperm.slane %v1225, %v1232
      %v1234 = vrot.slane %v1217, 4
      %v1235 = vsel %vm507, %v1234, %v1193
      %v1236 = vrot.slane %v1193, 4
      %v1237 = vsel %vm507, %v1217, %v1236
      %v1238 = vrot.slane %v1221, 4
      %v1239 = vsel %vm507, %v1238, %v1197
      %v1240 = vrot.slane %v1197, 4
      %v1241 = vsel %vm507, %v1221, %v1240
      %v1242 = vrot.slane %v1229, 4
      %v1243 = vsel %vm507, %v1242, %v1205
      %v1244 = vrot.slane %v1205, 4
      %v1245 = vsel %vm507, %v1229, %v1244
      %v1246 = vrot.slane %v1233, 4
      %v1247 = vsel %vm507, %v1246, %v1209
      %v1248 = vrot.slane %v1209, 4
      %v1249 = vsel %vm507, %v1233, %v1248
      %v1250 = vrot.slane %v1127, 4
      %v1251 = vsel %vm507, %v1250, %v1123
      %v1252 = vrot.slane %v1123, 4
      %v1253 = vsel %vm507, %v1127, %v1252
      %v1255 = vunpack.c.l.s4 1983009808
      %v1256 = vunpack.c.0.s8 %v1255
      %v1257 = vperm.slane %v1251, %v1256
      %v1259 = vunpack.c.l.s4 1983009808
      %v1260 = vunpack.c.0.s8 %v1259
      %v1261 = vperm.slane %v1253, %v1260
      %v1262 = vrot.slane %v1129, 4
      %v1263 = vsel %vm507, %v1262, %v1125
      %v1264 = vrot.slane %v1125, 4
      %v1265 = vsel %vm507, %v1129, %v1264
      %v1267 = vunpack.c.l.s4 1983009808
      %v1268 = vunpack.c.0.s8 %v1267
      %v1269 = vperm.slane %v1263, %v1268
      %v1271 = vunpack.c.l.s4 1983009808
      %v1272 = vunpack.c.0.s8 %v1271
      %v1273 = vperm.slane %v1265, %v1272
      %v1274 = vrot.slane %v1135, 4
      %v1275 = vsel %vm507, %v1274, %v1131
      %v1276 = vrot.slane %v1131, 4
      %v1277 = vsel %vm507, %v1135, %v1276
      %v1279 = vunpack.c.l.s4 1983009808
      %v1280 = vunpack.c.0.s8 %v1279
      %v1281 = vperm.slane %v1275, %v1280
      %v1283 = vunpack.c.l.s4 1983009808
      %v1284 = vunpack.c.0.s8 %v1283
      %v1285 = vperm.slane %v1277, %v1284
      %v1286 = vrot.slane %v1137, 4
      %v1287 = vsel %vm507, %v1286, %v1133
      %v1288 = vrot.slane %v1133, 4
      %v1289 = vsel %vm507, %v1137, %v1288
      %v1291 = vunpack.c.l.s4 1983009808
      %v1292 = vunpack.c.0.s8 %v1291
      %v1293 = vperm.slane %v1287, %v1292
      %v1295 = vunpack.c.l.s4 1983009808
      %v1296 = vunpack.c.0.s8 %v1295
      %v1297 = vperm.slane %v1289, %v1296
      %v1298 = vrot.slane %v1269, 4
      %v1299 = vsel %vm507, %v1298, %v1257
      %v1300 = vrot.slane %v1257, 4
      %v1301 = vsel %vm507, %v1269, %v1300
      %v1303 = vunpack.c.l.s4 1934713408
      %v1304 = vunpack.c.0.s8 %v1303
      %v1305 = vperm.slane %v1299, %v1304
      %v1307 = vunpack.c.l.s4 1934713408
      %v1308 = vunpack.c.0.s8 %v1307
      %v1309 = vperm.slane %v1301, %v1308
      %v1310 = vrot.slane %v1273, 4
      %v1311 = vsel %vm507, %v1310, %v1261
      %v1312 = vrot.slane %v1261, 4
      %v1313 = vsel %vm507, %v1273, %v1312
      %v1315 = vunpack.c.l.s4 1934713408
      %v1316 = vunpack.c.0.s8 %v1315
      %v1317 = vperm.slane %v1311, %v1316
      %v1319 = vunpack.c.l.s4 1934713408
      %v1320 = vunpack.c.0.s8 %v1319
      %v1321 = vperm.slane %v1313, %v1320
      %v1322 = vrot.slane %v1293, 4
      %v1323 = vsel %vm507, %v1322, %v1281
      %v1324 = vrot.slane %v1281, 4
      %v1325 = vsel %vm507, %v1293, %v1324
      %v1327 = vunpack.c.l.s4 1934713408
      %v1328 = vunpack.c.0.s8 %v1327
      %v1329 = vperm.slane %v1323, %v1328
      %v1331 = vunpack.c.l.s4 1934713408
      %v1332 = vunpack.c.0.s8 %v1331
      %v1333 = vperm.slane %v1325, %v1332
      %v1334 = vrot.slane %v1297, 4
      %v1335 = vsel %vm507, %v1334, %v1285
      %v1336 = vrot.slane %v1285, 4
      %v1337 = vsel %vm507, %v1297, %v1336
      %v1339 = vunpack.c.l.s4 1934713408
      %v1340 = vunpack.c.0.s8 %v1339
      %v1341 = vperm.slane %v1335, %v1340
      %v1343 = vunpack.c.l.s4 1934713408
      %v1344 = vunpack.c.0.s8 %v1343
      %v1345 = vperm.slane %v1337, %v1344
      %v1346 = vrot.slane %v1329, 4
      %v1347 = vsel %vm507, %v1346, %v1305
      %v1348 = vrot.slane %v1305, 4
      %v1349 = vsel %vm507, %v1329, %v1348
      %v1350 = vrot.slane %v1333, 4
      %v1351 = vsel %vm507, %v1350, %v1309
      %v1352 = vrot.slane %v1309, 4
      %v1353 = vsel %vm507, %v1333, %v1352
      %v1354 = vrot.slane %v1341, 4
      %v1355 = vsel %vm507, %v1354, %v1317
      %v1356 = vrot.slane %v1317, 4
      %v1357 = vsel %vm507, %v1341, %v1356
      %v1358 = vrot.slane %v1345, 4
      %v1359 = vsel %vm507, %v1358, %v1321
      %v1360 = vrot.slane %v1321, 4
      %v1361 = vsel %vm507, %v1345, %v1360
      %1363 = vrot.lane.b32.xlu0 %v1237, 16
      %v1364 = vpop.permute.xlu0 %1363
      %1367 = vrot.lane.b32.xlu0 %v1239, 32
      %v1368 = vpop.permute.xlu0 %1367
      %1371 = vrot.lane.b32.xlu0 %v1241, 48
      %v1372 = vpop.permute.xlu0 %1371
      %1375 = vrot.lane.b32.xlu0 %v1243, 64
      %v1376 = vpop.permute.xlu0 %1375
      %1379 = vrot.lane.b32.xlu0 %v1245, 80
      %v1380 = vpop.permute.xlu0 %1379
      %1383 = vrot.lane.b32.xlu0 %v1247, 96
      %v1384 = vpop.permute.xlu0 %1383
      %1387 = vrot.lane.b32.xlu0 %v1249, 112
      %v1388 = vpop.permute.xlu0 %1387
      %1391 = vrot.lane.b32.xlu0 %v1349, 16
      %v1392 = vpop.permute.xlu0 %1391
      %1395 = vrot.lane.b32.xlu0 %v1351, 32
      %v1396 = vpop.permute.xlu0 %1395
      %1399 = vrot.lane.b32.xlu0 %v1353, 48
      %v1400 = vpop.permute.xlu0 %1399
      %1403 = vrot.lane.b32.xlu0 %v1355, 64
      %v1404 = vpop.permute.xlu0 %1403
      %1407 = vrot.lane.b32.xlu0 %v1357, 80
      %v1408 = vpop.permute.xlu0 %1407
      %1411 = vrot.lane.b32.xlu0 %v1359, 96
      %v1412 = vpop.permute.xlu0 %1411
      %1415 = vrot.lane.b32.xlu0 %v1361, 112
      %v1416 = vpop.permute.xlu0 %1415
      %vm1418 = vcmask 130048
      %v1419 = vsel %vm1418, %v1235, %v1364
      %vm1420 = vcmask 261120
      %v1421 = vsel %vm1420, %v1419, %v1368
      %vm1422 = vcmask 392192
      %v1423 = vsel %vm1422, %v1421, %v1372
      %vm1424 = vcmask 523264
      %v1425 = vsel %vm1424, %v1423, %v1376
      %vm1426 = vcmask 654336
      %v1427 = vsel %vm1426, %v1425, %v1380
      %vm1428 = vcmask 785408
      %v1429 = vsel %vm1428, %v1427, %v1384
      %vm1430 = vcmask 916480
      %v1431 = vsel %vm1430, %v1429, %v1388
      %v1432 = vsel %vm1418, %v1347, %v1392
      %v1433 = vsel %vm1420, %v1432, %v1396
      %v1434 = vsel %vm1422, %v1433, %v1400
      %v1435 = vsel %vm1424, %v1434, %v1404
      %v1436 = vsel %vm1426, %v1435, %v1408
      %v1437 = vsel %vm1428, %v1436, %v1412
      %v1438 = vsel %vm1430, %v1437, %v1416
      %1439 = vst [vmem:[#allocation3] sm:$0xff] %v1431
      %1440 = vst [vmem:[#allocation3 + $0x8] sm:$0xff] %v1438
      %v1441 = vld [vmem:[#allocation2] sm:$0xff]
      %v1442 = vld [vmem:[#allocation2 + $0x8] sm:$0xff]
      %v1443 = vld [vmem:[#allocation2 + $0x18] sm:$0xff]
      %v1444 = vld [vmem:[#allocation2 + $0x20] sm:$0xff]
      %v1445 = vld [vmem:[#allocation2 + $0x30] sm:$0xff]
      %v1446 = vld [vmem:[#allocation2 + $0x38] sm:$0xff]
      %v1447 = vld [vmem:[#allocation2 + $0x48] sm:$0xff]
      %v1448 = vld [vmem:[#allocation2 + $0x50] sm:$0xff]
      %v1449 = vld [vmem:[#allocation2 + $0x60] sm:$0xff]
      %v1450 = vld [vmem:[#allocation2 + $0x68] sm:$0xff]
      %v1451 = vld [vmem:[#allocation2 + $0x78] sm:$0xff]
      %v1452 = vld [vmem:[#allocation2 + $0x80] sm:$0xff]
      %v1453 = vld [vmem:[#allocation2 + $0x90] sm:$0xff]
      %v1454 = vld [vmem:[#allocation2 + $0x98] sm:$0xff]
      %v1455 = vld [vmem:[#allocation2 + $0xa8] sm:$0xff]
      %v1456 = vld [vmem:[#allocation2 + $0xb0] sm:$0xff]
      %1473 = vrot.lane.b32.xlu0 %v1441, 127
      %v1474 = vpop.permute.xlu0 %1473
      %1475 = vrot.lane.b32.xlu0 %v1442, 127
      %v1476 = vpop.permute.xlu0 %1475
      %1477 = vrot.lane.b32.xlu0 %v1443, 127
      %v1478 = vpop.permute.xlu0 %1477
      %1479 = vrot.lane.b32.xlu0 %v1444, 127
      %v1480 = vpop.permute.xlu0 %1479
      %1481 = vrot.lane.b32.xlu0 %v1445, 127
      %v1482 = vpop.permute.xlu0 %1481
      %1483 = vrot.lane.b32.xlu0 %v1446, 127
      %v1484 = vpop.permute.xlu0 %1483
      %1485 = vrot.lane.b32.xlu0 %v1447, 127
      %v1486 = vpop.permute.xlu0 %1485
      %1487 = vrot.lane.b32.xlu0 %v1448, 127
      %v1488 = vpop.permute.xlu0 %1487
      %1489 = vrot.lane.b32.xlu0 %v1449, 127
      %v1490 = vpop.permute.xlu0 %1489
      %1491 = vrot.lane.b32.xlu0 %v1450, 127
      %v1492 = vpop.permute.xlu0 %1491
      %1493 = vrot.lane.b32.xlu0 %v1451, 127
      %v1494 = vpop.permute.xlu0 %1493
      %1495 = vrot.lane.b32.xlu0 %v1452, 127
      %v1496 = vpop.permute.xlu0 %1495
      %1497 = vrot.lane.b32.xlu0 %v1453, 127
      %v1498 = vpop.permute.xlu0 %1497
      %1499 = vrot.lane.b32.xlu0 %v1454, 127
      %v1500 = vpop.permute.xlu0 %1499
      %1501 = vrot.lane.b32.xlu0 %v1455, 127
      %v1502 = vpop.permute.xlu0 %1501
      %1503 = vrot.lane.b32.xlu0 %v1456, 127
      %v1504 = vpop.permute.xlu0 %1503
      %v1521 = vrot.slane %v1482, 4
      %v1522 = vsel %vm507, %v1521, %v1474
      %v1523 = vrot.slane %v1474, 4
      %v1524 = vsel %vm507, %v1482, %v1523
      %v1526 = vunpack.c.l.s4 1983009808
      %v1527 = vunpack.c.0.s8 %v1526
      %v1528 = vperm.slane %v1522, %v1527
      %v1530 = vunpack.c.l.s4 1983009808
      %v1531 = vunpack.c.0.s8 %v1530
      %v1532 = vperm.slane %v1524, %v1531
      %v1533 = vrot.slane %v1486, 4
      %v1534 = vsel %vm507, %v1533, %v1478
      %v1535 = vrot.slane %v1478, 4
      %v1536 = vsel %vm507, %v1486, %v1535
      %v1538 = vunpack.c.l.s4 1983009808
      %v1539 = vunpack.c.0.s8 %v1538
      %v1540 = vperm.slane %v1534, %v1539
      %v1542 = vunpack.c.l.s4 1983009808
      %v1543 = vunpack.c.0.s8 %v1542
      %v1544 = vperm.slane %v1536, %v1543
      %v1545 = vrot.slane %v1498, 4
      %v1546 = vsel %vm507, %v1545, %v1490
      %v1547 = vrot.slane %v1490, 4
      %v1548 = vsel %vm507, %v1498, %v1547
      %v1550 = vunpack.c.l.s4 1983009808
      %v1551 = vunpack.c.0.s8 %v1550
      %v1552 = vperm.slane %v1546, %v1551
      %v1554 = vunpack.c.l.s4 1983009808
      %v1555 = vunpack.c.0.s8 %v1554
      %v1556 = vperm.slane %v1548, %v1555
      %v1557 = vrot.slane %v1502, 4
      %v1558 = vsel %vm507, %v1557, %v1494
      %v1559 = vrot.slane %v1494, 4
      %v1560 = vsel %vm507, %v1502, %v1559
      %v1562 = vunpack.c.l.s4 1983009808
      %v1563 = vunpack.c.0.s8 %v1562
      %v1564 = vperm.slane %v1558, %v1563
      %v1566 = vunpack.c.l.s4 1983009808
      %v1567 = vunpack.c.0.s8 %v1566
      %v1568 = vperm.slane %v1560, %v1567
      %v1569 = vrot.slane %v1540, 4
      %v1570 = vsel %vm507, %v1569, %v1528
      %v1571 = vrot.slane %v1528, 4
      %v1572 = vsel %vm507, %v1540, %v1571
      %v1574 = vunpack.c.l.s4 1934713408
      %v1575 = vunpack.c.0.s8 %v1574
      %v1576 = vperm.slane %v1570, %v1575
      %v1578 = vunpack.c.l.s4 1934713408
      %v1579 = vunpack.c.0.s8 %v1578
      %v1580 = vperm.slane %v1572, %v1579
      %v1581 = vrot.slane %v1544, 4
      %v1582 = vsel %vm507, %v1581, %v1532
      %v1583 = vrot.slane %v1532, 4
      %v1584 = vsel %vm507, %v1544, %v1583
      %v1586 = vunpack.c.l.s4 1934713408
      %v1587 = vunpack.c.0.s8 %v1586
      %v1588 = vperm.slane %v1582, %v1587
      %v1590 = vunpack.c.l.s4 1934713408
      %v1591 = vunpack.c.0.s8 %v1590
      %v1592 = vperm.slane %v1584, %v1591
      %v1593 = vrot.slane %v1564, 4
      %v1594 = vsel %vm507, %v1593, %v1552
      %v1595 = vrot.slane %v1552, 4
      %v1596 = vsel %vm507, %v1564, %v1595
      %v1598 = vunpack.c.l.s4 1934713408
      %v1599 = vunpack.c.0.s8 %v1598
      %v1600 = vperm.slane %v1594, %v1599
      %v1602 = vunpack.c.l.s4 1934713408
      %v1603 = vunpack.c.0.s8 %v1602
      %v1604 = vperm.slane %v1596, %v1603
      %v1605 = vrot.slane %v1568, 4
      %v1606 = vsel %vm507, %v1605, %v1556
      %v1607 = vrot.slane %v1556, 4
      %v1608 = vsel %vm507, %v1568, %v1607
      %v1610 = vunpack.c.l.s4 1934713408
      %v1611 = vunpack.c.0.s8 %v1610
      %v1612 = vperm.slane %v1606, %v1611
      %v1614 = vunpack.c.l.s4 1934713408
      %v1615 = vunpack.c.0.s8 %v1614
      %v1616 = vperm.slane %v1608, %v1615
      %v1617 = vrot.slane %v1600, 4
      %v1618 = vsel %vm507, %v1617, %v1576
      %v1619 = vrot.slane %v1576, 4
      %v1620 = vsel %vm507, %v1600, %v1619
      %v1621 = vrot.slane %v1604, 4
      %v1622 = vsel %vm507, %v1621, %v1580
      %v1623 = vrot.slane %v1580, 4
      %v1624 = vsel %vm507, %v1604, %v1623
      %v1625 = vrot.slane %v1612, 4
      %v1626 = vsel %vm507, %v1625, %v1588
      %v1627 = vrot.slane %v1588, 4
      %v1628 = vsel %vm507, %v1612, %v1627
      %v1629 = vrot.slane %v1616, 4
      %v1630 = vsel %vm507, %v1629, %v1592
      %v1631 = vrot.slane %v1592, 4
      %v1632 = vsel %vm507, %v1616, %v1631
      %v1633 = vrot.slane %v1484, 4
      %v1634 = vsel %vm507, %v1633, %v1476
      %v1635 = vrot.slane %v1476, 4
      %v1636 = vsel %vm507, %v1484, %v1635
      %v1638 = vunpack.c.l.s4 1983009808
      %v1639 = vunpack.c.0.s8 %v1638
      %v1640 = vperm.slane %v1634, %v1639
      %v1642 = vunpack.c.l.s4 1983009808
      %v1643 = vunpack.c.0.s8 %v1642
      %v1644 = vperm.slane %v1636, %v1643
      %v1645 = vrot.slane %v1488, 4
      %v1646 = vsel %vm507, %v1645, %v1480
      %v1647 = vrot.slane %v1480, 4
      %v1648 = vsel %vm507, %v1488, %v1647
      %v1650 = vunpack.c.l.s4 1983009808
      %v1651 = vunpack.c.0.s8 %v1650
      %v1652 = vperm.slane %v1646, %v1651
      %v1654 = vunpack.c.l.s4 1983009808
      %v1655 = vunpack.c.0.s8 %v1654
      %v1656 = vperm.slane %v1648, %v1655
      %v1657 = vrot.slane %v1500, 4
      %v1658 = vsel %vm507, %v1657, %v1492
      %v1659 = vrot.slane %v1492, 4
      %v1660 = vsel %vm507, %v1500, %v1659
      %v1662 = vunpack.c.l.s4 1983009808
      %v1663 = vunpack.c.0.s8 %v1662
      %v1664 = vperm.slane %v1658, %v1663
      %v1666 = vunpack.c.l.s4 1983009808
      %v1667 = vunpack.c.0.s8 %v1666
      %v1668 = vperm.slane %v1660, %v1667
      %v1669 = vrot.slane %v1504, 4
      %v1670 = vsel %vm507, %v1669, %v1496
      %v1671 = vrot.slane %v1496, 4
      %v1672 = vsel %vm507, %v1504, %v1671
      %v1674 = vunpack.c.l.s4 1983009808
      %v1675 = vunpack.c.0.s8 %v1674
      %v1676 = vperm.slane %v1670, %v1675
      %v1678 = vunpack.c.l.s4 1983009808
      %v1679 = vunpack.c.0.s8 %v1678
      %v1680 = vperm.slane %v1672, %v1679
      %v1681 = vrot.slane %v1652, 4
      %v1682 = vsel %vm507, %v1681, %v1640
      %v1683 = vrot.slane %v1640, 4
      %v1684 = vsel %vm507, %v1652, %v1683
      %v1686 = vunpack.c.l.s4 1934713408
      %v1687 = vunpack.c.0.s8 %v1686
      %v1688 = vperm.slane %v1682, %v1687
      %v1690 = vunpack.c.l.s4 1934713408
      %v1691 = vunpack.c.0.s8 %v1690
      %v1692 = vperm.slane %v1684, %v1691
      %v1693 = vrot.slane %v1656, 4
      %v1694 = vsel %vm507, %v1693, %v1644
      %v1695 = vrot.slane %v1644, 4
      %v1696 = vsel %vm507, %v1656, %v1695
      %v1698 = vunpack.c.l.s4 1934713408
      %v1699 = vunpack.c.0.s8 %v1698
      %v1700 = vperm.slane %v1694, %v1699
      %v1702 = vunpack.c.l.s4 1934713408
      %v1703 = vunpack.c.0.s8 %v1702
      %v1704 = vperm.slane %v1696, %v1703
      %v1705 = vrot.slane %v1676, 4
      %v1706 = vsel %vm507, %v1705, %v1664
      %v1707 = vrot.slane %v1664, 4
      %v1708 = vsel %vm507, %v1676, %v1707
      %v1710 = vunpack.c.l.s4 1934713408
      %v1711 = vunpack.c.0.s8 %v1710
      %v1712 = vperm.slane %v1706, %v1711
      %v1714 = vunpack.c.l.s4 1934713408
      %v1715 = vunpack.c.0.s8 %v1714
      %v1716 = vperm.slane %v1708, %v1715
      %v1717 = vrot.slane %v1680, 4
      %v1718 = vsel %vm507, %v1717, %v1668
      %v1719 = vrot.slane %v1668, 4
      %v1720 = vsel %vm507, %v1680, %v1719
      %v1722 = vunpack.c.l.s4 1934713408
      %v1723 = vunpack.c.0.s8 %v1722
      %v1724 = vperm.slane %v1718, %v1723
      %v1726 = vunpack.c.l.s4 1934713408
      %v1727 = vunpack.c.0.s8 %v1726
      %v1728 = vperm.slane %v1720, %v1727
      %v1729 = vrot.slane %v1712, 4
      %v1730 = vsel %vm507, %v1729, %v1688
      %v1731 = vrot.slane %v1688, 4
      %v1732 = vsel %vm507, %v1712, %v1731
      %v1733 = vrot.slane %v1716, 4
      %v1734 = vsel %vm507, %v1733, %v1692
      %v1735 = vrot.slane %v1692, 4
      %v1736 = vsel %vm507, %v1716, %v1735
      %v1737 = vrot.slane %v1724, 4
      %v1738 = vsel %vm507, %v1737, %v1700
      %v1739 = vrot.slane %v1700, 4
      %v1740 = vsel %vm507, %v1724, %v1739
      %v1741 = vrot.slane %v1728, 4
      %v1742 = vsel %vm507, %v1741, %v1704
      %v1743 = vrot.slane %v1704, 4
      %v1744 = vsel %vm507, %v1728, %v1743
      %1746 = vrot.lane.b32.xlu0 %v1620, 16
      %v1747 = vpop.permute.xlu0 %1746
      %1750 = vrot.lane.b32.xlu0 %v1622, 32
      %v1751 = vpop.permute.xlu0 %1750
      %1754 = vrot.lane.b32.xlu0 %v1624, 48
      %v1755 = vpop.permute.xlu0 %1754
      %1758 = vrot.lane.b32.xlu0 %v1626, 64
      %v1759 = vpop.permute.xlu0 %1758
      %1762 = vrot.lane.b32.xlu0 %v1628, 80
      %v1763 = vpop.permute.xlu0 %1762
      %1766 = vrot.lane.b32.xlu0 %v1630, 96
      %v1767 = vpop.permute.xlu0 %1766
      %1770 = vrot.lane.b32.xlu0 %v1632, 112
      %v1771 = vpop.permute.xlu0 %1770
      %1774 = vrot.lane.b32.xlu0 %v1732, 16
      %v1775 = vpop.permute.xlu0 %1774
      %1778 = vrot.lane.b32.xlu0 %v1734, 32
      %v1779 = vpop.permute.xlu0 %1778
      %1782 = vrot.lane.b32.xlu0 %v1736, 48
      %v1783 = vpop.permute.xlu0 %1782
      %1786 = vrot.lane.b32.xlu0 %v1738, 64
      %v1787 = vpop.permute.xlu0 %1786
      %1790 = vrot.lane.b32.xlu0 %v1740, 80
      %v1791 = vpop.permute.xlu0 %1790
      %1794 = vrot.lane.b32.xlu0 %v1742, 96
      %v1795 = vpop.permute.xlu0 %1794
      %1798 = vrot.lane.b32.xlu0 %v1744, 112
      %v1799 = vpop.permute.xlu0 %1798
      %v1801 = vsel %vm1418, %v1618, %v1747
      %v1802 = vsel %vm1420, %v1801, %v1751
      %v1803 = vsel %vm1422, %v1802, %v1755
      %v1804 = vsel %vm1424, %v1803, %v1759
      %v1805 = vsel %vm1426, %v1804, %v1763
      %v1806 = vsel %vm1428, %v1805, %v1767
      %v1807 = vsel %vm1430, %v1806, %v1771
      %v1808 = vsel %vm1418, %v1730, %v1775
      %v1809 = vsel %vm1420, %v1808, %v1779
      %v1810 = vsel %vm1422, %v1809, %v1783
      %v1811 = vsel %vm1424, %v1810, %v1787
      %v1812 = vsel %vm1426, %v1811, %v1791
      %v1813 = vsel %vm1428, %v1812, %v1795
      %v1814 = vsel %vm1430, %v1813, %v1799
      %1815 = vst [vmem:[#allocation3 + $0x10] sm:$0xff] %v1807
      %1816 = vst [vmem:[#allocation3 + $0x18] sm:$0xff] %v1814
      %v1817 = vld [vmem:[#allocation2] sm:$0xff]
      %v1818 = vld [vmem:[#allocation2 + $0x8] sm:$0xff]
      %v1819 = vld [vmem:[#allocation2 + $0x18] sm:$0xff]
      %v1820 = vld [vmem:[#allocation2 + $0x20] sm:$0xff]
      %v1821 = vld [vmem:[#allocation2 + $0x30] sm:$0xff]
      %v1822 = vld [vmem:[#allocation2 + $0x38] sm:$0xff]
      %v1823 = vld [vmem:[#allocation2 + $0x48] sm:$0xff]
      %v1824 = vld [vmem:[#allocation2 + $0x50] sm:$0xff]
      %v1825 = vld [vmem:[#allocation2 + $0x60] sm:$0xff]
      %v1826 = vld [vmem:[#allocation2 + $0x68] sm:$0xff]
      %v1827 = vld [vmem:[#allocation2 + $0x78] sm:$0xff]
      %v1828 = vld [vmem:[#allocation2 + $0x80] sm:$0xff]
      %v1829 = vld [vmem:[#allocation2 + $0x90] sm:$0xff]
      %v1830 = vld [vmem:[#allocation2 + $0x98] sm:$0xff]
      %v1831 = vld [vmem:[#allocation2 + $0xa8] sm:$0xff]
      %v1832 = vld [vmem:[#allocation2 + $0xb0] sm:$0xff]
      %1849 = vrot.lane.b32.xlu0 %v1817, 126
      %v1850 = vpop.permute.xlu0 %1849
      %1851 = vrot.lane.b32.xlu0 %v1818, 126
      %v1852 = vpop.permute.xlu0 %1851
      %1853 = vrot.lane.b32.xlu0 %v1819, 126
      %v1854 = vpop.permute.xlu0 %1853
      %1855 = vrot.lane.b32.xlu0 %v1820, 126
      %v1856 = vpop.permute.xlu0 %1855
      %1857 = vrot.lane.b32.xlu0 %v1821, 126
      %v1858 = vpop.permute.xlu0 %1857
      %1859 = vrot.lane.b32.xlu0 %v1822, 126
      %v1860 = vpop.permute.xlu0 %1859
      %1861 = vrot.lane.b32.xlu0 %v1823, 126
      %v1862 = vpop.permute.xlu0 %1861
      %1863 = vrot.lane.b32.xlu0 %v1824, 126
      %v1864 = vpop.permute.xlu0 %1863
      %1865 = vrot.lane.b32.xlu0 %v1825, 126
      %v1866 = vpop.permute.xlu0 %1865
      %1867 = vrot.lane.b32.xlu0 %v1826, 126
      %v1868 = vpop.permute.xlu0 %1867
      %1869 = vrot.lane.b32.xlu0 %v1827, 126
      %v1870 = vpop.permute.xlu0 %1869
      %1871 = vrot.lane.b32.xlu0 %v1828, 126
      %v1872 = vpop.permute.xlu0 %1871
      %1873 = vrot.lane.b32.xlu0 %v1829, 126
      %v1874 = vpop.permute.xlu0 %1873
      %1875 = vrot.lane.b32.xlu0 %v1830, 126
      %v1876 = vpop.permute.xlu0 %1875
      %1877 = vrot.lane.b32.xlu0 %v1831, 126
      %v1878 = vpop.permute.xlu0 %1877
      %1879 = vrot.lane.b32.xlu0 %v1832, 126
      %v1880 = vpop.permute.xlu0 %1879
      %v1897 = vrot.slane %v1858, 4
      %v1898 = vsel %vm507, %v1897, %v1850
      %v1899 = vrot.slane %v1850, 4
      %v1900 = vsel %vm507, %v1858, %v1899
      %v1902 = vunpack.c.l.s4 1983009808
      %v1903 = vunpack.c.0.s8 %v1902
      %v1904 = vperm.slane %v1898, %v1903
      %v1906 = vunpack.c.l.s4 1983009808
      %v1907 = vunpack.c.0.s8 %v1906
      %v1908 = vperm.slane %v1900, %v1907
      %v1909 = vrot.slane %v1862, 4
      %v1910 = vsel %vm507, %v1909, %v1854
      %v1911 = vrot.slane %v1854, 4
      %v1912 = vsel %vm507, %v1862, %v1911
      %v1914 = vunpack.c.l.s4 1983009808
      %v1915 = vunpack.c.0.s8 %v1914
      %v1916 = vperm.slane %v1910, %v1915
      %v1918 = vunpack.c.l.s4 1983009808
      %v1919 = vunpack.c.0.s8 %v1918
      %v1920 = vperm.slane %v1912, %v1919
      %v1921 = vrot.slane %v1874, 4
      %v1922 = vsel %vm507, %v1921, %v1866
      %v1923 = vrot.slane %v1866, 4
      %v1924 = vsel %vm507, %v1874, %v1923
      %v1926 = vunpack.c.l.s4 1983009808
      %v1927 = vunpack.c.0.s8 %v1926
      %v1928 = vperm.slane %v1922, %v1927
      %v1930 = vunpack.c.l.s4 1983009808
      %v1931 = vunpack.c.0.s8 %v1930
      %v1932 = vperm.slane %v1924, %v1931
      %v1933 = vrot.slane %v1878, 4
      %v1934 = vsel %vm507, %v1933, %v1870
      %v1935 = vrot.slane %v1870, 4
      %v1936 = vsel %vm507, %v1878, %v1935
      %v1938 = vunpack.c.l.s4 1983009808
      %v1939 = vunpack.c.0.s8 %v1938
      %v1940 = vperm.slane %v1934, %v1939
      %v1942 = vunpack.c.l.s4 1983009808
      %v1943 = vunpack.c.0.s8 %v1942
      %v1944 = vperm.slane %v1936, %v1943
      %v1945 = vrot.slane %v1916, 4
      %v1946 = vsel %vm507, %v1945, %v1904
      %v1947 = vrot.slane %v1904, 4
      %v1948 = vsel %vm507, %v1916, %v1947
      %v1950 = vunpack.c.l.s4 1934713408
      %v1951 = vunpack.c.0.s8 %v1950
      %v1952 = vperm.slane %v1946, %v1951
      %v1954 = vunpack.c.l.s4 1934713408
      %v1955 = vunpack.c.0.s8 %v1954
      %v1956 = vperm.slane %v1948, %v1955
      %v1957 = vrot.slane %v1920, 4
      %v1958 = vsel %vm507, %v1957, %v1908
      %v1959 = vrot.slane %v1908, 4
      %v1960 = vsel %vm507, %v1920, %v1959
      %v1962 = vunpack.c.l.s4 1934713408
      %v1963 = vunpack.c.0.s8 %v1962
      %v1964 = vperm.slane %v1958, %v1963
      %v1966 = vunpack.c.l.s4 1934713408
      %v1967 = vunpack.c.0.s8 %v1966
      %v1968 = vperm.slane %v1960, %v1967
      %v1969 = vrot.slane %v1940, 4
      %v1970 = vsel %vm507, %v1969, %v1928
      %v1971 = vrot.slane %v1928, 4
      %v1972 = vsel %vm507, %v1940, %v1971
      %v1974 = vunpack.c.l.s4 1934713408
      %v1975 = vunpack.c.0.s8 %v1974
      %v1976 = vperm.slane %v1970, %v1975
      %v1978 = vunpack.c.l.s4 1934713408
      %v1979 = vunpack.c.0.s8 %v1978
      %v1980 = vperm.slane %v1972, %v1979
      %v1981 = vrot.slane %v1944, 4
      %v1982 = vsel %vm507, %v1981, %v1932
      %v1983 = vrot.slane %v1932, 4
      %v1984 = vsel %vm507, %v1944, %v1983
      %v1986 = vunpack.c.l.s4 1934713408
      %v1987 = vunpack.c.0.s8 %v1986
      %v1988 = vperm.slane %v1982, %v1987
      %v1990 = vunpack.c.l.s4 1934713408
      %v1991 = vunpack.c.0.s8 %v1990
      %v1992 = vperm.slane %v1984, %v1991
      %v1993 = vrot.slane %v1976, 4
      %v1994 = vsel %vm507, %v1993, %v1952
      %v1995 = vrot.slane %v1952, 4
      %v1996 = vsel %vm507, %v1976, %v1995
      %v1997 = vrot.slane %v1980, 4
      %v1998 = vsel %vm507, %v1997, %v1956
      %v1999 = vrot.slane %v1956, 4
      %v2000 = vsel %vm507, %v1980, %v1999
      %v2001 = vrot.slane %v1988, 4
      %v2002 = vsel %vm507, %v2001, %v1964
      %v2003 = vrot.slane %v1964, 4
      %v2004 = vsel %vm507, %v1988, %v2003
      %v2005 = vrot.slane %v1992, 4
      %v2006 = vsel %vm507, %v2005, %v1968
      %v2007 = vrot.slane %v1968, 4
      %v2008 = vsel %vm507, %v1992, %v2007
      %v2009 = vrot.slane %v1860, 4
      %v2010 = vsel %vm507, %v2009, %v1852
      %v2011 = vrot.slane %v1852, 4
      %v2012 = vsel %vm507, %v1860, %v2011
      %v2014 = vunpack.c.l.s4 1983009808
      %v2015 = vunpack.c.0.s8 %v2014
      %v2016 = vperm.slane %v2010, %v2015
      %v2018 = vunpack.c.l.s4 1983009808
      %v2019 = vunpack.c.0.s8 %v2018
      %v2020 = vperm.slane %v2012, %v2019
      %v2021 = vrot.slane %v1864, 4
      %v2022 = vsel %vm507, %v2021, %v1856
      %v2023 = vrot.slane %v1856, 4
      %v2024 = vsel %vm507, %v1864, %v2023
      %v2026 = vunpack.c.l.s4 1983009808
      %v2027 = vunpack.c.0.s8 %v2026
      %v2028 = vperm.slane %v2022, %v2027
      %v2030 = vunpack.c.l.s4 1983009808
      %v2031 = vunpack.c.0.s8 %v2030
      %v2032 = vperm.slane %v2024, %v2031
      %v2033 = vrot.slane %v1876, 4
      %v2034 = vsel %vm507, %v2033, %v1868
      %v2035 = vrot.slane %v1868, 4
      %v2036 = vsel %vm507, %v1876, %v2035
      %v2038 = vunpack.c.l.s4 1983009808
      %v2039 = vunpack.c.0.s8 %v2038
      %v2040 = vperm.slane %v2034, %v2039
      %v2042 = vunpack.c.l.s4 1983009808
      %v2043 = vunpack.c.0.s8 %v2042
      %v2044 = vperm.slane %v2036, %v2043
      %v2045 = vrot.slane %v1880, 4
      %v2046 = vsel %vm507, %v2045, %v1872
      %v2047 = vrot.slane %v1872, 4
      %v2048 = vsel %vm507, %v1880, %v2047
      %v2050 = vunpack.c.l.s4 1983009808
      %v2051 = vunpack.c.0.s8 %v2050
      %v2052 = vperm.slane %v2046, %v2051
      %v2054 = vunpack.c.l.s4 1983009808
      %v2055 = vunpack.c.0.s8 %v2054
      %v2056 = vperm.slane %v2048, %v2055
      %v2057 = vrot.slane %v2028, 4
      %v2058 = vsel %vm507, %v2057, %v2016
      %v2059 = vrot.slane %v2016, 4
      %v2060 = vsel %vm507, %v2028, %v2059
      %v2062 = vunpack.c.l.s4 1934713408
      %v2063 = vunpack.c.0.s8 %v2062
      %v2064 = vperm.slane %v2058, %v2063
      %v2066 = vunpack.c.l.s4 1934713408
      %v2067 = vunpack.c.0.s8 %v2066
      %v2068 = vperm.slane %v2060, %v2067
      %v2069 = vrot.slane %v2032, 4
      %v2070 = vsel %vm507, %v2069, %v2020
      %v2071 = vrot.slane %v2020, 4
      %v2072 = vsel %vm507, %v2032, %v2071
      %v2074 = vunpack.c.l.s4 1934713408
      %v2075 = vunpack.c.0.s8 %v2074
      %v2076 = vperm.slane %v2070, %v2075
      %v2078 = vunpack.c.l.s4 1934713408
      %v2079 = vunpack.c.0.s8 %v2078
      %v2080 = vperm.slane %v2072, %v2079
      %v2081 = vrot.slane %v2052, 4
      %v2082 = vsel %vm507, %v2081, %v2040
      %v2083 = vrot.slane %v2040, 4
      %v2084 = vsel %vm507, %v2052, %v2083
      %v2086 = vunpack.c.l.s4 1934713408
      %v2087 = vunpack.c.0.s8 %v2086
      %v2088 = vperm.slane %v2082, %v2087
      %v2090 = vunpack.c.l.s4 1934713408
      %v2091 = vunpack.c.0.s8 %v2090
      %v2092 = vperm.slane %v2084, %v2091
      %v2093 = vrot.slane %v2056, 4
      %v2094 = vsel %vm507, %v2093, %v2044
      %v2095 = vrot.slane %v2044, 4
      %v2096 = vsel %vm507, %v2056, %v2095
      %v2098 = vunpack.c.l.s4 1934713408
      %v2099 = vunpack.c.0.s8 %v2098
      %v2100 = vperm.slane %v2094, %v2099
      %v2102 = vunpack.c.l.s4 1934713408
      %v2103 = vunpack.c.0.s8 %v2102
      %v2104 = vperm.slane %v2096, %v2103
      %v2105 = vrot.slane %v2088, 4
      %v2106 = vsel %vm507, %v2105, %v2064
      %v2107 = vrot.slane %v2064, 4
      %v2108 = vsel %vm507, %v2088, %v2107
      %v2109 = vrot.slane %v2092, 4
      %v2110 = vsel %vm507, %v2109, %v2068
      %v2111 = vrot.slane %v2068, 4
      %v2112 = vsel %vm507, %v2092, %v2111
      %v2113 = vrot.slane %v2100, 4
      %v2114 = vsel %vm507, %v2113, %v2076
      %v2115 = vrot.slane %v2076, 4
      %v2116 = vsel %vm507, %v2100, %v2115
      %v2117 = vrot.slane %v2104, 4
      %v2118 = vsel %vm507, %v2117, %v2080
      %v2119 = vrot.slane %v2080, 4
      %v2120 = vsel %vm507, %v2104, %v2119
      %2122 = vrot.lane.b32.xlu0 %v1996, 16
      %v2123 = vpop.permute.xlu0 %2122
      %2126 = vrot.lane.b32.xlu0 %v1998, 32
      %v2127 = vpop.permute.xlu0 %2126
      %2130 = vrot.lane.b32.xlu0 %v2000, 48
      %v2131 = vpop.permute.xlu0 %2130
      %2134 = vrot.lane.b32.xlu0 %v2002, 64
      %v2135 = vpop.permute.xlu0 %2134
      %2138 = vrot.lane.b32.xlu0 %v2004, 80
      %v2139 = vpop.permute.xlu0 %2138
      %2142 = vrot.lane.b32.xlu0 %v2006, 96
      %v2143 = vpop.permute.xlu0 %2142
      %2146 = vrot.lane.b32.xlu0 %v2008, 112
      %v2147 = vpop.permute.xlu0 %2146
      %2150 = vrot.lane.b32.xlu0 %v2108, 16
      %v2151 = vpop.permute.xlu0 %2150
      %2154 = vrot.lane.b32.xlu0 %v2110, 32
      %v2155 = vpop.permute.xlu0 %2154
      %2158 = vrot.lane.b32.xlu0 %v2112, 48
      %v2159 = vpop.permute.xlu0 %2158
      %2162 = vrot.lane.b32.xlu0 %v2114, 64
      %v2163 = vpop.permute.xlu0 %2162
      %2166 = vrot.lane.b32.xlu0 %v2116, 80
      %v2167 = vpop.permute.xlu0 %2166
      %2170 = vrot.lane.b32.xlu0 %v2118, 96
      %v2171 = vpop.permute.xlu0 %2170
      %2174 = vrot.lane.b32.xlu0 %v2120, 112
      %v2175 = vpop.permute.xlu0 %2174
      %v2177 = vsel %vm1418, %v1994, %v2123
      %v2178 = vsel %vm1420, %v2177, %v2127
      %v2179 = vsel %vm1422, %v2178, %v2131
      %v2180 = vsel %vm1424, %v2179, %v2135
      %v2181 = vsel %vm1426, %v2180, %v2139
      %v2182 = vsel %vm1428, %v2181, %v2143
      %v2183 = vsel %vm1430, %v2182, %v2147
      %v2184 = vsel %vm1418, %v2106, %v2151
      %v2185 = vsel %vm1420, %v2184, %v2155
      %v2186 = vsel %vm1422, %v2185, %v2159
      %v2187 = vsel %vm1424, %v2186, %v2163
      %v2188 = vsel %vm1426, %v2187, %v2167
      %v2189 = vsel %vm1428, %v2188, %v2171
      %v2190 = vsel %vm1430, %v2189, %v2175
      %2191 = vst [vmem:[#allocation3 + $0x20] sm:$0xff] %v2183
      %2192 = vst [vmem:[#allocation3 + $0x28] sm:$0xff] %v2190
      %v2193 = vld [vmem:[#allocation2 + $0x1] sm:$0xff]
      %v2194 = vld [vmem:[#allocation2 + $0x9] sm:$0xff]
      %v2195 = vld [vmem:[#allocation2 + $0x19] sm:$0xff]
      %v2196 = vld [vmem:[#allocation2 + $0x21] sm:$0xff]
      %v2197 = vld [vmem:[#allocation2 + $0x31] sm:$0xff]
      %v2198 = vld [vmem:[#allocation2 + $0x39] sm:$0xff]
      %v2199 = vld [vmem:[#allocation2 + $0x49] sm:$0xff]
      %v2200 = vld [vmem:[#allocation2 + $0x51] sm:$0xff]
      %v2201 = vld [vmem:[#allocation2 + $0x61] sm:$0xff]
      %v2202 = vld [vmem:[#allocation2 + $0x69] sm:$0xff]
      %v2203 = vld [vmem:[#allocation2 + $0x79] sm:$0xff]
      %v2204 = vld [vmem:[#allocation2 + $0x81] sm:$0xff]
      %v2205 = vld [vmem:[#allocation2 + $0x91] sm:$0xff]
      %v2206 = vld [vmem:[#allocation2 + $0x99] sm:$0xff]
      %v2207 = vld [vmem:[#allocation2 + $0xa9] sm:$0xff]
      %v2208 = vld [vmem:[#allocation2 + $0xb1] sm:$0xff]
      %v2209 = vrot.slane %v2197, 4
      %v2210 = vsel %vm507, %v2209, %v2193
      %v2211 = vrot.slane %v2193, 4
      %v2212 = vsel %vm507, %v2197, %v2211
      %v2214 = vunpack.c.l.s4 1983009808
      %v2215 = vunpack.c.0.s8 %v2214
      %v2216 = vperm.slane %v2210, %v2215
      %v2218 = vunpack.c.l.s4 1983009808
      %v2219 = vunpack.c.0.s8 %v2218
      %v2220 = vperm.slane %v2212, %v2219
      %v2221 = vrot.slane %v2199, 4
      %v2222 = vsel %vm507, %v2221, %v2195
      %v2223 = vrot.slane %v2195, 4
      %v2224 = vsel %vm507, %v2199, %v2223
      %v2226 = vunpack.c.l.s4 1983009808
      %v2227 = vunpack.c.0.s8 %v2226
      %v2228 = vperm.slane %v2222, %v2227
      %v2230 = vunpack.c.l.s4 1983009808
      %v2231 = vunpack.c.0.s8 %v2230
      %v2232 = vperm.slane %v2224, %v2231
      %v2233 = vrot.slane %v2205, 4
      %v2234 = vsel %vm507, %v2233, %v2201
      %v2235 = vrot.slane %v2201, 4
      %v2236 = vsel %vm507, %v2205, %v2235
      %v2238 = vunpack.c.l.s4 1983009808
      %v2239 = vunpack.c.0.s8 %v2238
      %v2240 = vperm.slane %v2234, %v2239
      %v2242 = vunpack.c.l.s4 1983009808
      %v2243 = vunpack.c.0.s8 %v2242
      %v2244 = vperm.slane %v2236, %v2243
      %v2245 = vrot.slane %v2207, 4
      %v2246 = vsel %vm507, %v2245, %v2203
      %v2247 = vrot.slane %v2203, 4
      %v2248 = vsel %vm507, %v2207, %v2247
      %v2250 = vunpack.c.l.s4 1983009808
      %v2251 = vunpack.c.0.s8 %v2250
      %v2252 = vperm.slane %v2246, %v2251
      %v2254 = vunpack.c.l.s4 1983009808
      %v2255 = vunpack.c.0.s8 %v2254
      %v2256 = vperm.slane %v2248, %v2255
      %v2257 = vrot.slane %v2228, 4
      %v2258 = vsel %vm507, %v2257, %v2216
      %v2259 = vrot.slane %v2216, 4
      %v2260 = vsel %vm507, %v2228, %v2259
      %v2262 = vunpack.c.l.s4 1934713408
      %v2263 = vunpack.c.0.s8 %v2262
      %v2264 = vperm.slane %v2258, %v2263
      %v2266 = vunpack.c.l.s4 1934713408
      %v2267 = vunpack.c.0.s8 %v2266
      %v2268 = vperm.slane %v2260, %v2267
      %v2269 = vrot.slane %v2232, 4
      %v2270 = vsel %vm507, %v2269, %v2220
      %v2271 = vrot.slane %v2220, 4
      %v2272 = vsel %vm507, %v2232, %v2271
      %v2274 = vunpack.c.l.s4 1934713408
      %v2275 = vunpack.c.0.s8 %v2274
      %v2276 = vperm.slane %v2270, %v2275
      %v2278 = vunpack.c.l.s4 1934713408
      %v2279 = vunpack.c.0.s8 %v2278
      %v2280 = vperm.slane %v2272, %v2279
      %v2281 = vrot.slane %v2252, 4
      %v2282 = vsel %vm507, %v2281, %v2240
      %v2283 = vrot.slane %v2240, 4
      %v2284 = vsel %vm507, %v2252, %v2283
      %v2286 = vunpack.c.l.s4 1934713408
      %v2287 = vunpack.c.0.s8 %v2286
      %v2288 = vperm.slane %v2282, %v2287
      %v2290 = vunpack.c.l.s4 1934713408
      %v2291 = vunpack.c.0.s8 %v2290
      %v2292 = vperm.slane %v2284, %v2291
      %v2293 = vrot.slane %v2256, 4
      %v2294 = vsel %vm507, %v2293, %v2244
      %v2295 = vrot.slane %v2244, 4
      %v2296 = vsel %vm507, %v2256, %v2295
      %v2298 = vunpack.c.l.s4 1934713408
      %v2299 = vunpack.c.0.s8 %v2298
      %v2300 = vperm.slane %v2294, %v2299
      %v2302 = vunpack.c.l.s4 1934713408
      %v2303 = vunpack.c.0.s8 %v2302
      %v2304 = vperm.slane %v2296, %v2303
      %v2305 = vrot.slane %v2288, 4
      %v2306 = vsel %vm507, %v2305, %v2264
      %v2307 = vrot.slane %v2264, 4
      %v2308 = vsel %vm507, %v2288, %v2307
      %v2309 = vrot.slane %v2292, 4
      %v2310 = vsel %vm507, %v2309, %v2268
      %v2311 = vrot.slane %v2268, 4
      %v2312 = vsel %vm507, %v2292, %v2311
      %v2313 = vrot.slane %v2300, 4
      %v2314 = vsel %vm507, %v2313, %v2276
      %v2315 = vrot.slane %v2276, 4
      %v2316 = vsel %vm507, %v2300, %v2315
      %v2317 = vrot.slane %v2304, 4
      %v2318 = vsel %vm507, %v2317, %v2280
      %v2319 = vrot.slane %v2280, 4
      %v2320 = vsel %vm507, %v2304, %v2319
      %v2321 = vrot.slane %v2198, 4
      %v2322 = vsel %vm507, %v2321, %v2194
      %v2323 = vrot.slane %v2194, 4
      %v2324 = vsel %vm507, %v2198, %v2323
      %v2326 = vunpack.c.l.s4 1983009808
      %v2327 = vunpack.c.0.s8 %v2326
      %v2328 = vperm.slane %v2322, %v2327
      %v2330 = vunpack.c.l.s4 1983009808
      %v2331 = vunpack.c.0.s8 %v2330
      %v2332 = vperm.slane %v2324, %v2331
      %v2333 = vrot.slane %v2200, 4
      %v2334 = vsel %vm507, %v2333, %v2196
      %v2335 = vrot.slane %v2196, 4
      %v2336 = vsel %vm507, %v2200, %v2335
      %v2338 = vunpack.c.l.s4 1983009808
      %v2339 = vunpack.c.0.s8 %v2338
      %v2340 = vperm.slane %v2334, %v2339
      %v2342 = vunpack.c.l.s4 1983009808
      %v2343 = vunpack.c.0.s8 %v2342
      %v2344 = vperm.slane %v2336, %v2343
      %v2345 = vrot.slane %v2206, 4
      %v2346 = vsel %vm507, %v2345, %v2202
      %v2347 = vrot.slane %v2202, 4
      %v2348 = vsel %vm507, %v2206, %v2347
      %v2350 = vunpack.c.l.s4 1983009808
      %v2351 = vunpack.c.0.s8 %v2350
      %v2352 = vperm.slane %v2346, %v2351
      %v2354 = vunpack.c.l.s4 1983009808
      %v2355 = vunpack.c.0.s8 %v2354
      %v2356 = vperm.slane %v2348, %v2355
      %v2357 = vrot.slane %v2208, 4
      %v2358 = vsel %vm507, %v2357, %v2204
      %v2359 = vrot.slane %v2204, 4
      %v2360 = vsel %vm507, %v2208, %v2359
      %v2362 = vunpack.c.l.s4 1983009808
      %v2363 = vunpack.c.0.s8 %v2362
      %v2364 = vperm.slane %v2358, %v2363
      %v2366 = vunpack.c.l.s4 1983009808
      %v2367 = vunpack.c.0.s8 %v2366
      %v2368 = vperm.slane %v2360, %v2367
      %v2369 = vrot.slane %v2340, 4
      %v2370 = vsel %vm507, %v2369, %v2328
      %v2371 = vrot.slane %v2328, 4
      %v2372 = vsel %vm507, %v2340, %v2371
      %v2374 = vunpack.c.l.s4 1934713408
      %v2375 = vunpack.c.0.s8 %v2374
      %v2376 = vperm.slane %v2370, %v2375
      %v2378 = vunpack.c.l.s4 1934713408
      %v2379 = vunpack.c.0.s8 %v2378
      %v2380 = vperm.slane %v2372, %v2379
      %v2381 = vrot.slane %v2344, 4
      %v2382 = vsel %vm507, %v2381, %v2332
      %v2383 = vrot.slane %v2332, 4
      %v2384 = vsel %vm507, %v2344, %v2383
      %v2386 = vunpack.c.l.s4 1934713408
      %v2387 = vunpack.c.0.s8 %v2386
      %v2388 = vperm.slane %v2382, %v2387
      %v2390 = vunpack.c.l.s4 1934713408
      %v2391 = vunpack.c.0.s8 %v2390
      %v2392 = vperm.slane %v2384, %v2391
      %v2393 = vrot.slane %v2364, 4
      %v2394 = vsel %vm507, %v2393, %v2352
      %v2395 = vrot.slane %v2352, 4
      %v2396 = vsel %vm507, %v2364, %v2395
      %v2398 = vunpack.c.l.s4 1934713408
      %v2399 = vunpack.c.0.s8 %v2398
      %v2400 = vperm.slane %v2394, %v2399
      %v2402 = vunpack.c.l.s4 1934713408
      %v2403 = vunpack.c.0.s8 %v2402
      %v2404 = vperm.slane %v2396, %v2403
      %v2405 = vrot.slane %v2368, 4
      %v2406 = vsel %vm507, %v2405, %v2356
      %v2407 = vrot.slane %v2356, 4
      %v2408 = vsel %vm507, %v2368, %v2407
      %v2410 = vunpack.c.l.s4 1934713408
      %v2411 = vunpack.c.0.s8 %v2410
      %v2412 = vperm.slane %v2406, %v2411
      %v2414 = vunpack.c.l.s4 1934713408
      %v2415 = vunpack.c.0.s8 %v2414
      %v2416 = vperm.slane %v2408, %v2415
      %v2417 = vrot.slane %v2400, 4
      %v2418 = vsel %vm507, %v2417, %v2376
      %v2419 = vrot.slane %v2376, 4
      %v2420 = vsel %vm507, %v2400, %v2419
      %v2421 = vrot.slane %v2404, 4
      %v2422 = vsel %vm507, %v2421, %v2380
      %v2423 = vrot.slane %v2380, 4
      %v2424 = vsel %vm507, %v2404, %v2423
      %v2425 = vrot.slane %v2412, 4
      %v2426 = vsel %vm507, %v2425, %v2388
      %v2427 = vrot.slane %v2388, 4
      %v2428 = vsel %vm507, %v2412, %v2427
      %v2429 = vrot.slane %v2416, 4
      %v2430 = vsel %vm507, %v2429, %v2392
      %v2431 = vrot.slane %v2392, 4
      %v2432 = vsel %vm507, %v2416, %v2431
      %2434 = vrot.lane.b32.xlu0 %v2308, 16
      %v2435 = vpop.permute.xlu0 %2434
      %2438 = vrot.lane.b32.xlu0 %v2310, 32
      %v2439 = vpop.permute.xlu0 %2438
      %2442 = vrot.lane.b32.xlu0 %v2312, 48
      %v2443 = vpop.permute.xlu0 %2442
      %2446 = vrot.lane.b32.xlu0 %v2314, 64
      %v2447 = vpop.permute.xlu0 %2446
      %2450 = vrot.lane.b32.xlu0 %v2316, 80
      %v2451 = vpop.permute.xlu0 %2450
      %2454 = vrot.lane.b32.xlu0 %v2318, 96
      %v2455 = vpop.permute.xlu0 %2454
      %2458 = vrot.lane.b32.xlu0 %v2320, 112
      %v2459 = vpop.permute.xlu0 %2458
      %2462 = vrot.lane.b32.xlu0 %v2420, 16
      %v2463 = vpop.permute.xlu0 %2462
      %2466 = vrot.lane.b32.xlu0 %v2422, 32
      %v2467 = vpop.permute.xlu0 %2466
      %2470 = vrot.lane.b32.xlu0 %v2424, 48
      %v2471 = vpop.permute.xlu0 %2470
      %2474 = vrot.lane.b32.xlu0 %v2426, 64
      %v2475 = vpop.permute.xlu0 %2474
      %2478 = vrot.lane.b32.xlu0 %v2428, 80
      %v2479 = vpop.permute.xlu0 %2478
      %2482 = vrot.lane.b32.xlu0 %v2430, 96
      %v2483 = vpop.permute.xlu0 %2482
      %2486 = vrot.lane.b32.xlu0 %v2432, 112
      %v2487 = vpop.permute.xlu0 %2486
      %v2489 = vsel %vm1418, %v2306, %v2435
      %v2490 = vsel %vm1420, %v2489, %v2439
      %v2491 = vsel %vm1422, %v2490, %v2443
      %v2492 = vsel %vm1424, %v2491, %v2447
      %v2493 = vsel %vm1426, %v2492, %v2451
      %v2494 = vsel %vm1428, %v2493, %v2455
      %v2495 = vsel %vm1430, %v2494, %v2459
      %v2496 = vsel %vm1418, %v2418, %v2463
      %v2497 = vsel %vm1420, %v2496, %v2467
      %v2498 = vsel %vm1422, %v2497, %v2471
      %v2499 = vsel %vm1424, %v2498, %v2475
      %v2500 = vsel %vm1426, %v2499, %v2479
      %v2501 = vsel %vm1428, %v2500, %v2483
      %v2502 = vsel %vm1430, %v2501, %v2487
      %2503 = vst [vmem:[#allocation3 + $0x30] sm:$0xff] %v2495
      %2504 = vst [vmem:[#allocation3 + $0x38] sm:$0xff] %v2502
      %v2505 = vld [vmem:[#allocation2 + $0x1] sm:$0xff]
      %v2506 = vld [vmem:[#allocation2 + $0x9] sm:$0xff]
      %v2507 = vld [vmem:[#allocation2 + $0x19] sm:$0xff]
      %v2508 = vld [vmem:[#allocation2 + $0x21] sm:$0xff]
      %v2509 = vld [vmem:[#allocation2 + $0x31] sm:$0xff]
      %v2510 = vld [vmem:[#allocation2 + $0x39] sm:$0xff]
      %v2511 = vld [vmem:[#allocation2 + $0x49] sm:$0xff]
      %v2512 = vld [vmem:[#allocation2 + $0x51] sm:$0xff]
      %v2513 = vld [vmem:[#allocation2 + $0x61] sm:$0xff]
      %v2514 = vld [vmem:[#allocation2 + $0x69] sm:$0xff]
      %v2515 = vld [vmem:[#allocation2 + $0x79] sm:$0xff]
      %v2516 = vld [vmem:[#allocation2 + $0x81] sm:$0xff]
      %v2517 = vld [vmem:[#allocation2 + $0x91] sm:$0xff]
      %v2518 = vld [vmem:[#allocation2 + $0x99] sm:$0xff]
      %v2519 = vld [vmem:[#allocation2 + $0xa9] sm:$0xff]
      %v2520 = vld [vmem:[#allocation2 + $0xb1] sm:$0xff]
      %2537 = vrot.lane.b32.xlu0 %v2505, 127
      %v2538 = vpop.permute.xlu0 %2537
      %2539 = vrot.lane.b32.xlu0 %v2506, 127
      %v2540 = vpop.permute.xlu0 %2539
      %2541 = vrot.lane.b32.xlu0 %v2507, 127
      %v2542 = vpop.permute.xlu0 %2541
      %2543 = vrot.lane.b32.xlu0 %v2508, 127
      %v2544 = vpop.permute.xlu0 %2543
      %2545 = vrot.lane.b32.xlu0 %v2509, 127
      %v2546 = vpop.permute.xlu0 %2545
      %2547 = vrot.lane.b32.xlu0 %v2510, 127
      %v2548 = vpop.permute.xlu0 %2547
      %2549 = vrot.lane.b32.xlu0 %v2511, 127
      %v2550 = vpop.permute.xlu0 %2549
      %2551 = vrot.lane.b32.xlu0 %v2512, 127
      %v2552 = vpop.permute.xlu0 %2551
      %2553 = vrot.lane.b32.xlu0 %v2513, 127
      %v2554 = vpop.permute.xlu0 %2553
      %2555 = vrot.lane.b32.xlu0 %v2514, 127
      %v2556 = vpop.permute.xlu0 %2555
      %2557 = vrot.lane.b32.xlu0 %v2515, 127
      %v2558 = vpop.permute.xlu0 %2557
      %2559 = vrot.lane.b32.xlu0 %v2516, 127
      %v2560 = vpop.permute.xlu0 %2559
      %2561 = vrot.lane.b32.xlu0 %v2517, 127
      %v2562 = vpop.permute.xlu0 %2561
      %2563 = vrot.lane.b32.xlu0 %v2518, 127
      %v2564 = vpop.permute.xlu0 %2563
      %2565 = vrot.lane.b32.xlu0 %v2519, 127
      %v2566 = vpop.permute.xlu0 %2565
      %2567 = vrot.lane.b32.xlu0 %v2520, 127
      %v2568 = vpop.permute.xlu0 %2567
      %v2585 = vrot.slane %v2546, 4
      %v2586 = vsel %vm507, %v2585, %v2538
      %v2587 = vrot.slane %v2538, 4
      %v2588 = vsel %vm507, %v2546, %v2587
      %v2590 = vunpack.c.l.s4 1983009808
      %v2591 = vunpack.c.0.s8 %v2590
      %v2592 = vperm.slane %v2586, %v2591
      %v2594 = vunpack.c.l.s4 1983009808
      %v2595 = vunpack.c.0.s8 %v2594
      %v2596 = vperm.slane %v2588, %v2595
      %v2597 = vrot.slane %v2550, 4
      %v2598 = vsel %vm507, %v2597, %v2542
      %v2599 = vrot.slane %v2542, 4
      %v2600 = vsel %vm507, %v2550, %v2599
      %v2602 = vunpack.c.l.s4 1983009808
      %v2603 = vunpack.c.0.s8 %v2602
      %v2604 = vperm.slane %v2598, %v2603
      %v2606 = vunpack.c.l.s4 1983009808
      %v2607 = vunpack.c.0.s8 %v2606
      %v2608 = vperm.slane %v2600, %v2607
      %v2609 = vrot.slane %v2562, 4
      %v2610 = vsel %vm507, %v2609, %v2554
      %v2611 = vrot.slane %v2554, 4
      %v2612 = vsel %vm507, %v2562, %v2611
      %v2614 = vunpack.c.l.s4 1983009808
      %v2615 = vunpack.c.0.s8 %v2614
      %v2616 = vperm.slane %v2610, %v2615
      %v2618 = vunpack.c.l.s4 1983009808
      %v2619 = vunpack.c.0.s8 %v2618
      %v2620 = vperm.slane %v2612, %v2619
      %v2621 = vrot.slane %v2566, 4
      %v2622 = vsel %vm507, %v2621, %v2558
      %v2623 = vrot.slane %v2558, 4
      %v2624 = vsel %vm507, %v2566, %v2623
      %v2626 = vunpack.c.l.s4 1983009808
      %v2627 = vunpack.c.0.s8 %v2626
      %v2628 = vperm.slane %v2622, %v2627
      %v2630 = vunpack.c.l.s4 1983009808
      %v2631 = vunpack.c.0.s8 %v2630
      %v2632 = vperm.slane %v2624, %v2631
      %v2633 = vrot.slane %v2604, 4
      %v2634 = vsel %vm507, %v2633, %v2592
      %v2635 = vrot.slane %v2592, 4
      %v2636 = vsel %vm507, %v2604, %v2635
      %v2638 = vunpack.c.l.s4 1934713408
      %v2639 = vunpack.c.0.s8 %v2638
      %v2640 = vperm.slane %v2634, %v2639
      %v2642 = vunpack.c.l.s4 1934713408
      %v2643 = vunpack.c.0.s8 %v2642
      %v2644 = vperm.slane %v2636, %v2643
      %v2645 = vrot.slane %v2608, 4
      %v2646 = vsel %vm507, %v2645, %v2596
      %v2647 = vrot.slane %v2596, 4
      %v2648 = vsel %vm507, %v2608, %v2647
      %v2650 = vunpack.c.l.s4 1934713408
      %v2651 = vunpack.c.0.s8 %v2650
      %v2652 = vperm.slane %v2646, %v2651
      %v2654 = vunpack.c.l.s4 1934713408
      %v2655 = vunpack.c.0.s8 %v2654
      %v2656 = vperm.slane %v2648, %v2655
      %v2657 = vrot.slane %v2628, 4
      %v2658 = vsel %vm507, %v2657, %v2616
      %v2659 = vrot.slane %v2616, 4
      %v2660 = vsel %vm507, %v2628, %v2659
      %v2662 = vunpack.c.l.s4 1934713408
      %v2663 = vunpack.c.0.s8 %v2662
      %v2664 = vperm.slane %v2658, %v2663
      %v2666 = vunpack.c.l.s4 1934713408
      %v2667 = vunpack.c.0.s8 %v2666
      %v2668 = vperm.slane %v2660, %v2667
      %v2669 = vrot.slane %v2632, 4
      %v2670 = vsel %vm507, %v2669, %v2620
      %v2671 = vrot.slane %v2620, 4
      %v2672 = vsel %vm507, %v2632, %v2671
      %v2674 = vunpack.c.l.s4 1934713408
      %v2675 = vunpack.c.0.s8 %v2674
      %v2676 = vperm.slane %v2670, %v2675
      %v2678 = vunpack.c.l.s4 1934713408
      %v2679 = vunpack.c.0.s8 %v2678
      %v2680 = vperm.slane %v2672, %v2679
      %v2681 = vrot.slane %v2664, 4
      %v2682 = vsel %vm507, %v2681, %v2640
      %v2683 = vrot.slane %v2640, 4
      %v2684 = vsel %vm507, %v2664, %v2683
      %v2685 = vrot.slane %v2668, 4
      %v2686 = vsel %vm507, %v2685, %v2644
      %v2687 = vrot.slane %v2644, 4
      %v2688 = vsel %vm507, %v2668, %v2687
      %v2689 = vrot.slane %v2676, 4
      %v2690 = vsel %vm507, %v2689, %v2652
      %v2691 = vrot.slane %v2652, 4
      %v2692 = vsel %vm507, %v2676, %v2691
      %v2693 = vrot.slane %v2680, 4
      %v2694 = vsel %vm507, %v2693, %v2656
      %v2695 = vrot.slane %v2656, 4
      %v2696 = vsel %vm507, %v2680, %v2695
      %v2697 = vrot.slane %v2548, 4
      %v2698 = vsel %vm507, %v2697, %v2540
      %v2699 = vrot.slane %v2540, 4
      %v2700 = vsel %vm507, %v2548, %v2699
      %v2702 = vunpack.c.l.s4 1983009808
      %v2703 = vunpack.c.0.s8 %v2702
      %v2704 = vperm.slane %v2698, %v2703
      %v2706 = vunpack.c.l.s4 1983009808
      %v2707 = vunpack.c.0.s8 %v2706
      %v2708 = vperm.slane %v2700, %v2707
      %v2709 = vrot.slane %v2552, 4
      %v2710 = vsel %vm507, %v2709, %v2544
      %v2711 = vrot.slane %v2544, 4
      %v2712 = vsel %vm507, %v2552, %v2711
      %v2714 = vunpack.c.l.s4 1983009808
      %v2715 = vunpack.c.0.s8 %v2714
      %v2716 = vperm.slane %v2710, %v2715
      %v2718 = vunpack.c.l.s4 1983009808
      %v2719 = vunpack.c.0.s8 %v2718
      %v2720 = vperm.slane %v2712, %v2719
      %v2721 = vrot.slane %v2564, 4
      %v2722 = vsel %vm507, %v2721, %v2556
      %v2723 = vrot.slane %v2556, 4
      %v2724 = vsel %vm507, %v2564, %v2723
      %v2726 = vunpack.c.l.s4 1983009808
      %v2727 = vunpack.c.0.s8 %v2726
      %v2728 = vperm.slane %v2722, %v2727
      %v2730 = vunpack.c.l.s4 1983009808
      %v2731 = vunpack.c.0.s8 %v2730
      %v2732 = vperm.slane %v2724, %v2731
      %v2733 = vrot.slane %v2568, 4
      %v2734 = vsel %vm507, %v2733, %v2560
      %v2735 = vrot.slane %v2560, 4
      %v2736 = vsel %vm507, %v2568, %v2735
      %v2738 = vunpack.c.l.s4 1983009808
      %v2739 = vunpack.c.0.s8 %v2738
      %v2740 = vperm.slane %v2734, %v2739
      %v2742 = vunpack.c.l.s4 1983009808
      %v2743 = vunpack.c.0.s8 %v2742
      %v2744 = vperm.slane %v2736, %v2743
      %v2745 = vrot.slane %v2716, 4
      %v2746 = vsel %vm507, %v2745, %v2704
      %v2747 = vrot.slane %v2704, 4
      %v2748 = vsel %vm507, %v2716, %v2747
      %v2750 = vunpack.c.l.s4 1934713408
      %v2751 = vunpack.c.0.s8 %v2750
      %v2752 = vperm.slane %v2746, %v2751
      %v2754 = vunpack.c.l.s4 1934713408
      %v2755 = vunpack.c.0.s8 %v2754
      %v2756 = vperm.slane %v2748, %v2755
      %v2757 = vrot.slane %v2720, 4
      %v2758 = vsel %vm507, %v2757, %v2708
      %v2759 = vrot.slane %v2708, 4
      %v2760 = vsel %vm507, %v2720, %v2759
      %v2762 = vunpack.c.l.s4 1934713408
      %v2763 = vunpack.c.0.s8 %v2762
      %v2764 = vperm.slane %v2758, %v2763
      %v2766 = vunpack.c.l.s4 1934713408
      %v2767 = vunpack.c.0.s8 %v2766
      %v2768 = vperm.slane %v2760, %v2767
      %v2769 = vrot.slane %v2740, 4
      %v2770 = vsel %vm507, %v2769, %v2728
      %v2771 = vrot.slane %v2728, 4
      %v2772 = vsel %vm507, %v2740, %v2771
      %v2774 = vunpack.c.l.s4 1934713408
      %v2775 = vunpack.c.0.s8 %v2774
      %v2776 = vperm.slane %v2770, %v2775
      %v2778 = vunpack.c.l.s4 1934713408
      %v2779 = vunpack.c.0.s8 %v2778
      %v2780 = vperm.slane %v2772, %v2779
      %v2781 = vrot.slane %v2744, 4
      %v2782 = vsel %vm507, %v2781, %v2732
      %v2783 = vrot.slane %v2732, 4
      %v2784 = vsel %vm507, %v2744, %v2783
      %v2786 = vunpack.c.l.s4 1934713408
      %v2787 = vunpack.c.0.s8 %v2786
      %v2788 = vperm.slane %v2782, %v2787
      %v2790 = vunpack.c.l.s4 1934713408
      %v2791 = vunpack.c.0.s8 %v2790
      %v2792 = vperm.slane %v2784, %v2791
      %v2793 = vrot.slane %v2776, 4
      %v2794 = vsel %vm507, %v2793, %v2752
      %v2795 = vrot.slane %v2752, 4
      %v2796 = vsel %vm507, %v2776, %v2795
      %v2797 = vrot.slane %v2780, 4
      %v2798 = vsel %vm507, %v2797, %v2756
      %v2799 = vrot.slane %v2756, 4
      %v2800 = vsel %vm507, %v2780, %v2799
      %v2801 = vrot.slane %v2788, 4
      %v2802 = vsel %vm507, %v2801, %v2764
      %v2803 = vrot.slane %v2764, 4
      %v2804 = vsel %vm507, %v2788, %v2803
      %v2805 = vrot.slane %v2792, 4
      %v2806 = vsel %vm507, %v2805, %v2768
      %v2807 = vrot.slane %v2768, 4
      %v2808 = vsel %vm507, %v2792, %v2807
      %2810 = vrot.lane.b32.xlu0 %v2684, 16
      %v2811 = vpop.permute.xlu0 %2810
      %2814 = vrot.lane.b32.xlu0 %v2686, 32
      %v2815 = vpop.permute.xlu0 %2814
      %2818 = vrot.lane.b32.xlu0 %v2688, 48
      %v2819 = vpop.permute.xlu0 %2818
      %2822 = vrot.lane.b32.xlu0 %v2690, 64
      %v2823 = vpop.permute.xlu0 %2822
      %2826 = vrot.lane.b32.xlu0 %v2692, 80
      %v2827 = vpop.permute.xlu0 %2826
      %2830 = vrot.lane.b32.xlu0 %v2694, 96
      %v2831 = vpop.permute.xlu0 %2830
      %2834 = vrot.lane.b32.xlu0 %v2696, 112
      %v2835 = vpop.permute.xlu0 %2834
      %2838 = vrot.lane.b32.xlu0 %v2796, 16
      %v2839 = vpop.permute.xlu0 %2838
      %2842 = vrot.lane.b32.xlu0 %v2798, 32
      %v2843 = vpop.permute.xlu0 %2842
      %2846 = vrot.lane.b32.xlu0 %v2800, 48
      %v2847 = vpop.permute.xlu0 %2846
      %2850 = vrot.lane.b32.xlu0 %v2802, 64
      %v2851 = vpop.permute.xlu0 %2850
      %2854 = vrot.lane.b32.xlu0 %v2804, 80
      %v2855 = vpop.permute.xlu0 %2854
      %2858 = vrot.lane.b32.xlu0 %v2806, 96
      %v2859 = vpop.permute.xlu0 %2858
      %2862 = vrot.lane.b32.xlu0 %v2808, 112
      %v2863 = vpop.permute.xlu0 %2862
      %v2865 = vsel %vm1418, %v2682, %v2811
      %v2866 = vsel %vm1420, %v2865, %v2815
      %v2867 = vsel %vm1422, %v2866, %v2819
      %v2868 = vsel %vm1424, %v2867, %v2823
      %v2869 = vsel %vm1426, %v2868, %v2827
      %v2870 = vsel %vm1428, %v2869, %v2831
      %v2871 = vsel %vm1430, %v2870, %v2835
      %v2872 = vsel %vm1418, %v2794, %v2839
      %v2873 = vsel %vm1420, %v2872, %v2843
      %v2874 = vsel %vm1422, %v2873, %v2847
      %v2875 = vsel %vm1424, %v2874, %v2851
      %v2876 = vsel %vm1426, %v2875, %v2855
      %v2877 = vsel %vm1428, %v2876, %v2859
      %v2878 = vsel %vm1430, %v2877, %v2863
      %2879 = vst [vmem:[#allocation3 + $0x40] sm:$0xff] %v2871
      %2880 = vst [vmem:[#allocation3 + $0x48] sm:$0xff] %v2878
      %v2881 = vld [vmem:[#allocation2 + $0x1] sm:$0xff]
      %v2882 = vld [vmem:[#allocation2 + $0x9] sm:$0xff]
      %v2883 = vld [vmem:[#allocation2 + $0x19] sm:$0xff]
      %v2884 = vld [vmem:[#allocation2 + $0x21] sm:$0xff]
      %v2885 = vld [vmem:[#allocation2 + $0x31] sm:$0xff]
      %v2886 = vld [vmem:[#allocation2 + $0x39] sm:$0xff]
      %v2887 = vld [vmem:[#allocation2 + $0x49] sm:$0xff]
      %v2888 = vld [vmem:[#allocation2 + $0x51] sm:$0xff]
      %v2889 = vld [vmem:[#allocation2 + $0x61] sm:$0xff]
      %v2890 = vld [vmem:[#allocation2 + $0x69] sm:$0xff]
      %v2891 = vld [vmem:[#allocation2 + $0x79] sm:$0xff]
      %v2892 = vld [vmem:[#allocation2 + $0x81] sm:$0xff]
      %v2893 = vld [vmem:[#allocation2 + $0x91] sm:$0xff]
      %v2894 = vld [vmem:[#allocation2 + $0x99] sm:$0xff]
      %v2895 = vld [vmem:[#allocation2 + $0xa9] sm:$0xff]
      %v2896 = vld [vmem:[#allocation2 + $0xb1] sm:$0xff]
      %2913 = vrot.lane.b32.xlu0 %v2881, 126
      %v2914 = vpop.permute.xlu0 %2913
      %2915 = vrot.lane.b32.xlu0 %v2882, 126
      %v2916 = vpop.permute.xlu0 %2915
      %2917 = vrot.lane.b32.xlu0 %v2883, 126
      %v2918 = vpop.permute.xlu0 %2917
      %2919 = vrot.lane.b32.xlu0 %v2884, 126
      %v2920 = vpop.permute.xlu0 %2919
      %2921 = vrot.lane.b32.xlu0 %v2885, 126
      %v2922 = vpop.permute.xlu0 %2921
      %2923 = vrot.lane.b32.xlu0 %v2886, 126
      %v2924 = vpop.permute.xlu0 %2923
      %2925 = vrot.lane.b32.xlu0 %v2887, 126
      %v2926 = vpop.permute.xlu0 %2925
      %2927 = vrot.lane.b32.xlu0 %v2888, 126
      %v2928 = vpop.permute.xlu0 %2927
      %2929 = vrot.lane.b32.xlu0 %v2889, 126
      %v2930 = vpop.permute.xlu0 %2929
      %2931 = vrot.lane.b32.xlu0 %v2890, 126
      %v2932 = vpop.permute.xlu0 %2931
      %2933 = vrot.lane.b32.xlu0 %v2891, 126
      %v2934 = vpop.permute.xlu0 %2933
      %2935 = vrot.lane.b32.xlu0 %v2892, 126
      %v2936 = vpop.permute.xlu0 %2935
      %2937 = vrot.lane.b32.xlu0 %v2893, 126
      %v2938 = vpop.permute.xlu0 %2937
      %2939 = vrot.lane.b32.xlu0 %v2894, 126
      %v2940 = vpop.permute.xlu0 %2939
      %2941 = vrot.lane.b32.xlu0 %v2895, 126
      %v2942 = vpop.permute.xlu0 %2941
      %2943 = vrot.lane.b32.xlu0 %v2896, 126
      %v2944 = vpop.permute.xlu0 %2943
      %v2961 = vrot.slane %v2922, 4
      %v2962 = vsel %vm507, %v2961, %v2914
      %v2963 = vrot.slane %v2914, 4
      %v2964 = vsel %vm507, %v2922, %v2963
      %v2966 = vunpack.c.l.s4 1983009808
      %v2967 = vunpack.c.0.s8 %v2966
      %v2968 = vperm.slane %v2962, %v2967
      %v2970 = vunpack.c.l.s4 1983009808
      %v2971 = vunpack.c.0.s8 %v2970
      %v2972 = vperm.slane %v2964, %v2971
      %v2973 = vrot.slane %v2926, 4
      %v2974 = vsel %vm507, %v2973, %v2918
      %v2975 = vrot.slane %v2918, 4
      %v2976 = vsel %vm507, %v2926, %v2975
      %v2978 = vunpack.c.l.s4 1983009808
      %v2979 = vunpack.c.0.s8 %v2978
      %v2980 = vperm.slane %v2974, %v2979
      %v2982 = vunpack.c.l.s4 1983009808
      %v2983 = vunpack.c.0.s8 %v2982
      %v2984 = vperm.slane %v2976, %v2983
      %v2985 = vrot.slane %v2938, 4
      %v2986 = vsel %vm507, %v2985, %v2930
      %v2987 = vrot.slane %v2930, 4
      %v2988 = vsel %vm507, %v2938, %v2987
      %v2990 = vunpack.c.l.s4 1983009808
      %v2991 = vunpack.c.0.s8 %v2990
      %v2992 = vperm.slane %v2986, %v2991
      %v2994 = vunpack.c.l.s4 1983009808
      %v2995 = vunpack.c.0.s8 %v2994
      %v2996 = vperm.slane %v2988, %v2995
      %v2997 = vrot.slane %v2942, 4
      %v2998 = vsel %vm507, %v2997, %v2934
      %v2999 = vrot.slane %v2934, 4
      %v3000 = vsel %vm507, %v2942, %v2999
      %v3002 = vunpack.c.l.s4 1983009808
      %v3003 = vunpack.c.0.s8 %v3002
      %v3004 = vperm.slane %v2998, %v3003
      %v3006 = vunpack.c.l.s4 1983009808
      %v3007 = vunpack.c.0.s8 %v3006
      %v3008 = vperm.slane %v3000, %v3007
      %v3009 = vrot.slane %v2980, 4
      %v3010 = vsel %vm507, %v3009, %v2968
      %v3011 = vrot.slane %v2968, 4
      %v3012 = vsel %vm507, %v2980, %v3011
      %v3014 = vunpack.c.l.s4 1934713408
      %v3015 = vunpack.c.0.s8 %v3014
      %v3016 = vperm.slane %v3010, %v3015
      %v3018 = vunpack.c.l.s4 1934713408
      %v3019 = vunpack.c.0.s8 %v3018
      %v3020 = vperm.slane %v3012, %v3019
      %v3021 = vrot.slane %v2984, 4
      %v3022 = vsel %vm507, %v3021, %v2972
      %v3023 = vrot.slane %v2972, 4
      %v3024 = vsel %vm507, %v2984, %v3023
      %v3026 = vunpack.c.l.s4 1934713408
      %v3027 = vunpack.c.0.s8 %v3026
      %v3028 = vperm.slane %v3022, %v3027
      %v3030 = vunpack.c.l.s4 1934713408
      %v3031 = vunpack.c.0.s8 %v3030
      %v3032 = vperm.slane %v3024, %v3031
      %v3033 = vrot.slane %v3004, 4
      %v3034 = vsel %vm507, %v3033, %v2992
      %v3035 = vrot.slane %v2992, 4
      %v3036 = vsel %vm507, %v3004, %v3035
      %v3038 = vunpack.c.l.s4 1934713408
      %v3039 = vunpack.c.0.s8 %v3038
      %v3040 = vperm.slane %v3034, %v3039
      %v3042 = vunpack.c.l.s4 1934713408
      %v3043 = vunpack.c.0.s8 %v3042
      %v3044 = vperm.slane %v3036, %v3043
      %v3045 = vrot.slane %v3008, 4
      %v3046 = vsel %vm507, %v3045, %v2996
      %v3047 = vrot.slane %v2996, 4
      %v3048 = vsel %vm507, %v3008, %v3047
      %v3050 = vunpack.c.l.s4 1934713408
      %v3051 = vunpack.c.0.s8 %v3050
      %v3052 = vperm.slane %v3046, %v3051
      %v3054 = vunpack.c.l.s4 1934713408
      %v3055 = vunpack.c.0.s8 %v3054
      %v3056 = vperm.slane %v3048, %v3055
      %v3057 = vrot.slane %v3040, 4
      %v3058 = vsel %vm507, %v3057, %v3016
      %v3059 = vrot.slane %v3016, 4
      %v3060 = vsel %vm507, %v3040, %v3059
      %v3061 = vrot.slane %v3044, 4
      %v3062 = vsel %vm507, %v3061, %v3020
      %v3063 = vrot.slane %v3020, 4
      %v3064 = vsel %vm507, %v3044, %v3063
      %v3065 = vrot.slane %v3052, 4
      %v3066 = vsel %vm507, %v3065, %v3028
      %v3067 = vrot.slane %v3028, 4
      %v3068 = vsel %vm507, %v3052, %v3067
      %v3069 = vrot.slane %v3056, 4
      %v3070 = vsel %vm507, %v3069, %v3032
      %v3071 = vrot.slane %v3032, 4
      %v3072 = vsel %vm507, %v3056, %v3071
      %v3073 = vrot.slane %v2924, 4
      %v3074 = vsel %vm507, %v3073, %v2916
      %v3075 = vrot.slane %v2916, 4
      %v3076 = vsel %vm507, %v2924, %v3075
      %v3078 = vunpack.c.l.s4 1983009808
      %v3079 = vunpack.c.0.s8 %v3078
      %v3080 = vperm.slane %v3074, %v3079
      %v3082 = vunpack.c.l.s4 1983009808
      %v3083 = vunpack.c.0.s8 %v3082
      %v3084 = vperm.slane %v3076, %v3083
      %v3085 = vrot.slane %v2928, 4
      %v3086 = vsel %vm507, %v3085, %v2920
      %v3087 = vrot.slane %v2920, 4
      %v3088 = vsel %vm507, %v2928, %v3087
      %v3090 = vunpack.c.l.s4 1983009808
      %v3091 = vunpack.c.0.s8 %v3090
      %v3092 = vperm.slane %v3086, %v3091
      %v3094 = vunpack.c.l.s4 1983009808
      %v3095 = vunpack.c.0.s8 %v3094
      %v3096 = vperm.slane %v3088, %v3095
      %v3097 = vrot.slane %v2940, 4
      %v3098 = vsel %vm507, %v3097, %v2932
      %v3099 = vrot.slane %v2932, 4
      %v3100 = vsel %vm507, %v2940, %v3099
      %v3102 = vunpack.c.l.s4 1983009808
      %v3103 = vunpack.c.0.s8 %v3102
      %v3104 = vperm.slane %v3098, %v3103
      %v3106 = vunpack.c.l.s4 1983009808
      %v3107 = vunpack.c.0.s8 %v3106
      %v3108 = vperm.slane %v3100, %v3107
      %v3109 = vrot.slane %v2944, 4
      %v3110 = vsel %vm507, %v3109, %v2936
      %v3111 = vrot.slane %v2936, 4
      %v3112 = vsel %vm507, %v2944, %v3111
      %v3114 = vunpack.c.l.s4 1983009808
      %v3115 = vunpack.c.0.s8 %v3114
      %v3116 = vperm.slane %v3110, %v3115
      %v3118 = vunpack.c.l.s4 1983009808
      %v3119 = vunpack.c.0.s8 %v3118
      %v3120 = vperm.slane %v3112, %v3119
      %v3121 = vrot.slane %v3092, 4
      %v3122 = vsel %vm507, %v3121, %v3080
      %v3123 = vrot.slane %v3080, 4
      %v3124 = vsel %vm507, %v3092, %v3123
      %v3126 = vunpack.c.l.s4 1934713408
      %v3127 = vunpack.c.0.s8 %v3126
      %v3128 = vperm.slane %v3122, %v3127
      %v3130 = vunpack.c.l.s4 1934713408
      %v3131 = vunpack.c.0.s8 %v3130
      %v3132 = vperm.slane %v3124, %v3131
      %v3133 = vrot.slane %v3096, 4
      %v3134 = vsel %vm507, %v3133, %v3084
      %v3135 = vrot.slane %v3084, 4
      %v3136 = vsel %vm507, %v3096, %v3135
      %v3138 = vunpack.c.l.s4 1934713408
      %v3139 = vunpack.c.0.s8 %v3138
      %v3140 = vperm.slane %v3134, %v3139
      %v3142 = vunpack.c.l.s4 1934713408
      %v3143 = vunpack.c.0.s8 %v3142
      %v3144 = vperm.slane %v3136, %v3143
      %v3145 = vrot.slane %v3116, 4
      %v3146 = vsel %vm507, %v3145, %v3104
      %v3147 = vrot.slane %v3104, 4
      %v3148 = vsel %vm507, %v3116, %v3147
      %v3150 = vunpack.c.l.s4 1934713408
      %v3151 = vunpack.c.0.s8 %v3150
      %v3152 = vperm.slane %v3146, %v3151
      %v3154 = vunpack.c.l.s4 1934713408
      %v3155 = vunpack.c.0.s8 %v3154
      %v3156 = vperm.slane %v3148, %v3155
      %v3157 = vrot.slane %v3120, 4
      %v3158 = vsel %vm507, %v3157, %v3108
      %v3159 = vrot.slane %v3108, 4
      %v3160 = vsel %vm507, %v3120, %v3159
      %v3162 = vunpack.c.l.s4 1934713408
      %v3163 = vunpack.c.0.s8 %v3162
      %v3164 = vperm.slane %v3158, %v3163
      %v3166 = vunpack.c.l.s4 1934713408
      %v3167 = vunpack.c.0.s8 %v3166
      %v3168 = vperm.slane %v3160, %v3167
      %v3169 = vrot.slane %v3152, 4
      %v3170 = vsel %vm507, %v3169, %v3128
      %v3171 = vrot.slane %v3128, 4
      %v3172 = vsel %vm507, %v3152, %v3171
      %v3173 = vrot.slane %v3156, 4
      %v3174 = vsel %vm507, %v3173, %v3132
      %v3175 = vrot.slane %v3132, 4
      %v3176 = vsel %vm507, %v3156, %v3175
      %v3177 = vrot.slane %v3164, 4
      %v3178 = vsel %vm507, %v3177, %v3140
      %v3179 = vrot.slane %v3140, 4
      %v3180 = vsel %vm507, %v3164, %v3179
      %v3181 = vrot.slane %v3168, 4
      %v3182 = vsel %vm507, %v3181, %v3144
      %v3183 = vrot.slane %v3144, 4
      %v3184 = vsel %vm507, %v3168, %v3183
      %3186 = vrot.lane.b32.xlu0 %v3060, 16
      %v3187 = vpop.permute.xlu0 %3186
      %3190 = vrot.lane.b32.xlu0 %v3062, 32
      %v3191 = vpop.permute.xlu0 %3190
      %3194 = vrot.lane.b32.xlu0 %v3064, 48
      %v3195 = vpop.permute.xlu0 %3194
      %3198 = vrot.lane.b32.xlu0 %v3066, 64
      %v3199 = vpop.permute.xlu0 %3198
      %3202 = vrot.lane.b32.xlu0 %v3068, 80
      %v3203 = vpop.permute.xlu0 %3202
      %3206 = vrot.lane.b32.xlu0 %v3070, 96
      %v3207 = vpop.permute.xlu0 %3206
      %3210 = vrot.lane.b32.xlu0 %v3072, 112
      %v3211 = vpop.permute.xlu0 %3210
      %3214 = vrot.lane.b32.xlu0 %v3172, 16
      %v3215 = vpop.permute.xlu0 %3214
      %3218 = vrot.lane.b32.xlu0 %v3174, 32
      %v3219 = vpop.permute.xlu0 %3218
      %3222 = vrot.lane.b32.xlu0 %v3176, 48
      %v3223 = vpop.permute.xlu0 %3222
      %3226 = vrot.lane.b32.xlu0 %v3178, 64
      %v3227 = vpop.permute.xlu0 %3226
      %3230 = vrot.lane.b32.xlu0 %v3180, 80
      %v3231 = vpop.permute.xlu0 %3230
      %3234 = vrot.lane.b32.xlu0 %v3182, 96
      %v3235 = vpop.permute.xlu0 %3234
      %3238 = vrot.lane.b32.xlu0 %v3184, 112
      %v3239 = vpop.permute.xlu0 %3238
      %v3241 = vsel %vm1418, %v3058, %v3187
      %v3242 = vsel %vm1420, %v3241, %v3191
      %v3243 = vsel %vm1422, %v3242, %v3195
      %v3244 = vsel %vm1424, %v3243, %v3199
      %v3245 = vsel %vm1426, %v3244, %v3203
      %v3246 = vsel %vm1428, %v3245, %v3207
      %v3247 = vsel %vm1430, %v3246, %v3211
      %v3248 = vsel %vm1418, %v3170, %v3215
      %v3249 = vsel %vm1420, %v3248, %v3219
      %v3250 = vsel %vm1422, %v3249, %v3223
      %v3251 = vsel %vm1424, %v3250, %v3227
      %v3252 = vsel %vm1426, %v3251, %v3231
      %v3253 = vsel %vm1428, %v3252, %v3235
      %v3254 = vsel %vm1430, %v3253, %v3239
      %3255 = vst [vmem:[#allocation3 + $0x50] sm:$0xff] %v3247
      %3256 = vst [vmem:[#allocation3 + $0x58] sm:$0xff] %v3254
      %v3257 = vld [vmem:[#allocation2 + $0x2] sm:$0xff]
      %v3258 = vld [vmem:[#allocation2 + $0xa] sm:$0xff]
      %v3259 = vld [vmem:[#allocation2 + $0x1a] sm:$0xff]
      %v3260 = vld [vmem:[#allocation2 + $0x22] sm:$0xff]
      %v3261 = vld [vmem:[#allocation2 + $0x32] sm:$0xff]
      %v3262 = vld [vmem:[#allocation2 + $0x3a] sm:$0xff]
      %v3263 = vld [vmem:[#allocation2 + $0x4a] sm:$0xff]
      %v3264 = vld [vmem:[#allocation2 + $0x52] sm:$0xff]
      %v3265 = vld [vmem:[#allocation2 + $0x62] sm:$0xff]
      %v3266 = vld [vmem:[#allocation2 + $0x6a] sm:$0xff]
      %v3267 = vld [vmem:[#allocation2 + $0x7a] sm:$0xff]
      %v3268 = vld [vmem:[#allocation2 + $0x82] sm:$0xff]
      %v3269 = vld [vmem:[#allocation2 + $0x92] sm:$0xff]
      %v3270 = vld [vmem:[#allocation2 + $0x9a] sm:$0xff]
      %v3271 = vld [vmem:[#allocation2 + $0xaa] sm:$0xff]
      %v3272 = vld [vmem:[#allocation2 + $0xb2] sm:$0xff]
      %v3273 = vrot.slane %v3261, 4
      %v3274 = vsel %vm507, %v3273, %v3257
      %v3275 = vrot.slane %v3257, 4
      %v3276 = vsel %vm507, %v3261, %v3275
      %v3278 = vunpack.c.l.s4 1983009808
      %v3279 = vunpack.c.0.s8 %v3278
      %v3280 = vperm.slane %v3274, %v3279
      %v3282 = vunpack.c.l.s4 1983009808
      %v3283 = vunpack.c.0.s8 %v3282
      %v3284 = vperm.slane %v3276, %v3283
      %v3285 = vrot.slane %v3263, 4
      %v3286 = vsel %vm507, %v3285, %v3259
      %v3287 = vrot.slane %v3259, 4
      %v3288 = vsel %vm507, %v3263, %v3287
      %v3290 = vunpack.c.l.s4 1983009808
      %v3291 = vunpack.c.0.s8 %v3290
      %v3292 = vperm.slane %v3286, %v3291
      %v3294 = vunpack.c.l.s4 1983009808
      %v3295 = vunpack.c.0.s8 %v3294
      %v3296 = vperm.slane %v3288, %v3295
      %v3297 = vrot.slane %v3269, 4
      %v3298 = vsel %vm507, %v3297, %v3265
      %v3299 = vrot.slane %v3265, 4
      %v3300 = vsel %vm507, %v3269, %v3299
      %v3302 = vunpack.c.l.s4 1983009808
      %v3303 = vunpack.c.0.s8 %v3302
      %v3304 = vperm.slane %v3298, %v3303
      %v3306 = vunpack.c.l.s4 1983009808
      %v3307 = vunpack.c.0.s8 %v3306
      %v3308 = vperm.slane %v3300, %v3307
      %v3309 = vrot.slane %v3271, 4
      %v3310 = vsel %vm507, %v3309, %v3267
      %v3311 = vrot.slane %v3267, 4
      %v3312 = vsel %vm507, %v3271, %v3311
      %v3314 = vunpack.c.l.s4 1983009808
      %v3315 = vunpack.c.0.s8 %v3314
      %v3316 = vperm.slane %v3310, %v3315
      %v3318 = vunpack.c.l.s4 1983009808
      %v3319 = vunpack.c.0.s8 %v3318
      %v3320 = vperm.slane %v3312, %v3319
      %v3321 = vrot.slane %v3292, 4
      %v3322 = vsel %vm507, %v3321, %v3280
      %v3323 = vrot.slane %v3280, 4
      %v3324 = vsel %vm507, %v3292, %v3323
      %v3326 = vunpack.c.l.s4 1934713408
      %v3327 = vunpack.c.0.s8 %v3326
      %v3328 = vperm.slane %v3322, %v3327
      %v3330 = vunpack.c.l.s4 1934713408
      %v3331 = vunpack.c.0.s8 %v3330
      %v3332 = vperm.slane %v3324, %v3331
      %v3333 = vrot.slane %v3296, 4
      %v3334 = vsel %vm507, %v3333, %v3284
      %v3335 = vrot.slane %v3284, 4
      %v3336 = vsel %vm507, %v3296, %v3335
      %v3338 = vunpack.c.l.s4 1934713408
      %v3339 = vunpack.c.0.s8 %v3338
      %v3340 = vperm.slane %v3334, %v3339
      %v3342 = vunpack.c.l.s4 1934713408
      %v3343 = vunpack.c.0.s8 %v3342
      %v3344 = vperm.slane %v3336, %v3343
      %v3345 = vrot.slane %v3316, 4
      %v3346 = vsel %vm507, %v3345, %v3304
      %v3347 = vrot.slane %v3304, 4
      %v3348 = vsel %vm507, %v3316, %v3347
      %v3350 = vunpack.c.l.s4 1934713408
      %v3351 = vunpack.c.0.s8 %v3350
      %v3352 = vperm.slane %v3346, %v3351
      %v3354 = vunpack.c.l.s4 1934713408
      %v3355 = vunpack.c.0.s8 %v3354
      %v3356 = vperm.slane %v3348, %v3355
      %v3357 = vrot.slane %v3320, 4
      %v3358 = vsel %vm507, %v3357, %v3308
      %v3359 = vrot.slane %v3308, 4
      %v3360 = vsel %vm507, %v3320, %v3359
      %v3362 = vunpack.c.l.s4 1934713408
      %v3363 = vunpack.c.0.s8 %v3362
      %v3364 = vperm.slane %v3358, %v3363
      %v3366 = vunpack.c.l.s4 1934713408
      %v3367 = vunpack.c.0.s8 %v3366
      %v3368 = vperm.slane %v3360, %v3367
      %v3369 = vrot.slane %v3352, 4
      %v3370 = vsel %vm507, %v3369, %v3328
      %v3371 = vrot.slane %v3328, 4
      %v3372 = vsel %vm507, %v3352, %v3371
      %v3373 = vrot.slane %v3356, 4
      %v3374 = vsel %vm507, %v3373, %v3332
      %v3375 = vrot.slane %v3332, 4
      %v3376 = vsel %vm507, %v3356, %v3375
      %v3377 = vrot.slane %v3364, 4
      %v3378 = vsel %vm507, %v3377, %v3340
      %v3379 = vrot.slane %v3340, 4
      %v3380 = vsel %vm507, %v3364, %v3379
      %v3381 = vrot.slane %v3368, 4
      %v3382 = vsel %vm507, %v3381, %v3344
      %v3383 = vrot.slane %v3344, 4
      %v3384 = vsel %vm507, %v3368, %v3383
      %v3385 = vrot.slane %v3262, 4
      %v3386 = vsel %vm507, %v3385, %v3258
      %v3387 = vrot.slane %v3258, 4
      %v3388 = vsel %vm507, %v3262, %v3387
      %v3390 = vunpack.c.l.s4 1983009808
      %v3391 = vunpack.c.0.s8 %v3390
      %v3392 = vperm.slane %v3386, %v3391
      %v3394 = vunpack.c.l.s4 1983009808
      %v3395 = vunpack.c.0.s8 %v3394
      %v3396 = vperm.slane %v3388, %v3395
      %v3397 = vrot.slane %v3264, 4
      %v3398 = vsel %vm507, %v3397, %v3260
      %v3399 = vrot.slane %v3260, 4
      %v3400 = vsel %vm507, %v3264, %v3399
      %v3402 = vunpack.c.l.s4 1983009808
      %v3403 = vunpack.c.0.s8 %v3402
      %v3404 = vperm.slane %v3398, %v3403
      %v3406 = vunpack.c.l.s4 1983009808
      %v3407 = vunpack.c.0.s8 %v3406
      %v3408 = vperm.slane %v3400, %v3407
      %v3409 = vrot.slane %v3270, 4
      %v3410 = vsel %vm507, %v3409, %v3266
      %v3411 = vrot.slane %v3266, 4
      %v3412 = vsel %vm507, %v3270, %v3411
      %v3414 = vunpack.c.l.s4 1983009808
      %v3415 = vunpack.c.0.s8 %v3414
      %v3416 = vperm.slane %v3410, %v3415
      %v3418 = vunpack.c.l.s4 1983009808
      %v3419 = vunpack.c.0.s8 %v3418
      %v3420 = vperm.slane %v3412, %v3419
      %v3421 = vrot.slane %v3272, 4
      %v3422 = vsel %vm507, %v3421, %v3268
      %v3423 = vrot.slane %v3268, 4
      %v3424 = vsel %vm507, %v3272, %v3423
      %v3426 = vunpack.c.l.s4 1983009808
      %v3427 = vunpack.c.0.s8 %v3426
      %v3428 = vperm.slane %v3422, %v3427
      %v3430 = vunpack.c.l.s4 1983009808
      %v3431 = vunpack.c.0.s8 %v3430
      %v3432 = vperm.slane %v3424, %v3431
      %v3433 = vrot.slane %v3404, 4
      %v3434 = vsel %vm507, %v3433, %v3392
      %v3435 = vrot.slane %v3392, 4
      %v3436 = vsel %vm507, %v3404, %v3435
      %v3438 = vunpack.c.l.s4 1934713408
      %v3439 = vunpack.c.0.s8 %v3438
      %v3440 = vperm.slane %v3434, %v3439
      %v3442 = vunpack.c.l.s4 1934713408
      %v3443 = vunpack.c.0.s8 %v3442
      %v3444 = vperm.slane %v3436, %v3443
      %v3445 = vrot.slane %v3408, 4
      %v3446 = vsel %vm507, %v3445, %v3396
      %v3447 = vrot.slane %v3396, 4
      %v3448 = vsel %vm507, %v3408, %v3447
      %v3450 = vunpack.c.l.s4 1934713408
      %v3451 = vunpack.c.0.s8 %v3450
      %v3452 = vperm.slane %v3446, %v3451
      %v3454 = vunpack.c.l.s4 1934713408
      %v3455 = vunpack.c.0.s8 %v3454
      %v3456 = vperm.slane %v3448, %v3455
      %v3457 = vrot.slane %v3428, 4
      %v3458 = vsel %vm507, %v3457, %v3416
      %v3459 = vrot.slane %v3416, 4
      %v3460 = vsel %vm507, %v3428, %v3459
      %v3462 = vunpack.c.l.s4 1934713408
      %v3463 = vunpack.c.0.s8 %v3462
      %v3464 = vperm.slane %v3458, %v3463
      %v3466 = vunpack.c.l.s4 1934713408
      %v3467 = vunpack.c.0.s8 %v3466
      %v3468 = vperm.slane %v3460, %v3467
      %v3469 = vrot.slane %v3432, 4
      %v3470 = vsel %vm507, %v3469, %v3420
      %v3471 = vrot.slane %v3420, 4
      %v3472 = vsel %vm507, %v3432, %v3471
      %v3474 = vunpack.c.l.s4 1934713408
      %v3475 = vunpack.c.0.s8 %v3474
      %v3476 = vperm.slane %v3470, %v3475
      %v3478 = vunpack.c.l.s4 1934713408
      %v3479 = vunpack.c.0.s8 %v3478
      %v3480 = vperm.slane %v3472, %v3479
      %v3481 = vrot.slane %v3464, 4
      %v3482 = vsel %vm507, %v3481, %v3440
      %v3483 = vrot.slane %v3440, 4
      %v3484 = vsel %vm507, %v3464, %v3483
      %v3485 = vrot.slane %v3468, 4
      %v3486 = vsel %vm507, %v3485, %v3444
      %v3487 = vrot.slane %v3444, 4
      %v3488 = vsel %vm507, %v3468, %v3487
      %v3489 = vrot.slane %v3476, 4
      %v3490 = vsel %vm507, %v3489, %v3452
      %v3491 = vrot.slane %v3452, 4
      %v3492 = vsel %vm507, %v3476, %v3491
      %v3493 = vrot.slane %v3480, 4
      %v3494 = vsel %vm507, %v3493, %v3456
      %v3495 = vrot.slane %v3456, 4
      %v3496 = vsel %vm507, %v3480, %v3495
      %3498 = vrot.lane.b32.xlu0 %v3372, 16
      %v3499 = vpop.permute.xlu0 %3498
      %3502 = vrot.lane.b32.xlu0 %v3374, 32
      %v3503 = vpop.permute.xlu0 %3502
      %3506 = vrot.lane.b32.xlu0 %v3376, 48
      %v3507 = vpop.permute.xlu0 %3506
      %3510 = vrot.lane.b32.xlu0 %v3378, 64
      %v3511 = vpop.permute.xlu0 %3510
      %3514 = vrot.lane.b32.xlu0 %v3380, 80
      %v3515 = vpop.permute.xlu0 %3514
      %3518 = vrot.lane.b32.xlu0 %v3382, 96
      %v3519 = vpop.permute.xlu0 %3518
      %3522 = vrot.lane.b32.xlu0 %v3384, 112
      %v3523 = vpop.permute.xlu0 %3522
      %3526 = vrot.lane.b32.xlu0 %v3484, 16
      %v3527 = vpop.permute.xlu0 %3526
      %3530 = vrot.lane.b32.xlu0 %v3486, 32
      %v3531 = vpop.permute.xlu0 %3530
      %3534 = vrot.lane.b32.xlu0 %v3488, 48
      %v3535 = vpop.permute.xlu0 %3534
      %3538 = vrot.lane.b32.xlu0 %v3490, 64
      %v3539 = vpop.permute.xlu0 %3538
      %3542 = vrot.lane.b32.xlu0 %v3492, 80
      %v3543 = vpop.permute.xlu0 %3542
      %3546 = vrot.lane.b32.xlu0 %v3494, 96
      %v3547 = vpop.permute.xlu0 %3546
      %3550 = vrot.lane.b32.xlu0 %v3496, 112
      %v3551 = vpop.permute.xlu0 %3550
      %v3553 = vsel %vm1418, %v3370, %v3499
      %v3554 = vsel %vm1420, %v3553, %v3503
      %v3555 = vsel %vm1422, %v3554, %v3507
      %v3556 = vsel %vm1424, %v3555, %v3511
      %v3557 = vsel %vm1426, %v3556, %v3515
      %v3558 = vsel %vm1428, %v3557, %v3519
      %v3559 = vsel %vm1430, %v3558, %v3523
      %v3560 = vsel %vm1418, %v3482, %v3527
      %v3561 = vsel %vm1420, %v3560, %v3531
      %v3562 = vsel %vm1422, %v3561, %v3535
      %v3563 = vsel %vm1424, %v3562, %v3539
      %v3564 = vsel %vm1426, %v3563, %v3543
      %v3565 = vsel %vm1428, %v3564, %v3547
      %v3566 = vsel %vm1430, %v3565, %v3551
      %3567 = vst [vmem:[#allocation3 + $0x60] sm:$0xff] %v3559
      %3568 = vst [vmem:[#allocation3 + $0x68] sm:$0xff] %v3566
      %v3569 = vld [vmem:[#allocation2 + $0x2] sm:$0xff]
      %v3570 = vld [vmem:[#allocation2 + $0xa] sm:$0xff]
      %v3571 = vld [vmem:[#allocation2 + $0x1a] sm:$0xff]
      %v3572 = vld [vmem:[#allocation2 + $0x22] sm:$0xff]
      %v3573 = vld [vmem:[#allocation2 + $0x32] sm:$0xff]
      %v3574 = vld [vmem:[#allocation2 + $0x3a] sm:$0xff]
      %v3575 = vld [vmem:[#allocation2 + $0x4a] sm:$0xff]
      %v3576 = vld [vmem:[#allocation2 + $0x52] sm:$0xff]
      %v3577 = vld [vmem:[#allocation2 + $0x62] sm:$0xff]
      %v3578 = vld [vmem:[#allocation2 + $0x6a] sm:$0xff]
      %v3579 = vld [vmem:[#allocation2 + $0x7a] sm:$0xff]
      %v3580 = vld [vmem:[#allocation2 + $0x82] sm:$0xff]
      %v3581 = vld [vmem:[#allocation2 + $0x92] sm:$0xff]
      %v3582 = vld [vmem:[#allocation2 + $0x9a] sm:$0xff]
      %v3583 = vld [vmem:[#allocation2 + $0xaa] sm:$0xff]
      %v3584 = vld [vmem:[#allocation2 + $0xb2] sm:$0xff]
      %3601 = vrot.lane.b32.xlu0 %v3569, 127
      %v3602 = vpop.permute.xlu0 %3601
      %3603 = vrot.lane.b32.xlu0 %v3570, 127
      %v3604 = vpop.permute.xlu0 %3603
      %3605 = vrot.lane.b32.xlu0 %v3571, 127
      %v3606 = vpop.permute.xlu0 %3605
      %3607 = vrot.lane.b32.xlu0 %v3572, 127
      %v3608 = vpop.permute.xlu0 %3607
      %3609 = vrot.lane.b32.xlu0 %v3573, 127
      %v3610 = vpop.permute.xlu0 %3609
      %3611 = vrot.lane.b32.xlu0 %v3574, 127
      %v3612 = vpop.permute.xlu0 %3611
      %3613 = vrot.lane.b32.xlu0 %v3575, 127
      %v3614 = vpop.permute.xlu0 %3613
      %3615 = vrot.lane.b32.xlu0 %v3576, 127
      %v3616 = vpop.permute.xlu0 %3615
      %3617 = vrot.lane.b32.xlu0 %v3577, 127
      %v3618 = vpop.permute.xlu0 %3617
      %3619 = vrot.lane.b32.xlu0 %v3578, 127
      %v3620 = vpop.permute.xlu0 %3619
      %3621 = vrot.lane.b32.xlu0 %v3579, 127
      %v3622 = vpop.permute.xlu0 %3621
      %3623 = vrot.lane.b32.xlu0 %v3580, 127
      %v3624 = vpop.permute.xlu0 %3623
      %3625 = vrot.lane.b32.xlu0 %v3581, 127
      %v3626 = vpop.permute.xlu0 %3625
      %3627 = vrot.lane.b32.xlu0 %v3582, 127
      %v3628 = vpop.permute.xlu0 %3627
      %3629 = vrot.lane.b32.xlu0 %v3583, 127
      %v3630 = vpop.permute.xlu0 %3629
      %3631 = vrot.lane.b32.xlu0 %v3584, 127
      %v3632 = vpop.permute.xlu0 %3631
      %v3649 = vrot.slane %v3610, 4
      %v3650 = vsel %vm507, %v3649, %v3602
      %v3651 = vrot.slane %v3602, 4
      %v3652 = vsel %vm507, %v3610, %v3651
      %v3654 = vunpack.c.l.s4 1983009808
      %v3655 = vunpack.c.0.s8 %v3654
      %v3656 = vperm.slane %v3650, %v3655
      %v3658 = vunpack.c.l.s4 1983009808
      %v3659 = vunpack.c.0.s8 %v3658
      %v3660 = vperm.slane %v3652, %v3659
      %v3661 = vrot.slane %v3614, 4
      %v3662 = vsel %vm507, %v3661, %v3606
      %v3663 = vrot.slane %v3606, 4
      %v3664 = vsel %vm507, %v3614, %v3663
      %v3666 = vunpack.c.l.s4 1983009808
      %v3667 = vunpack.c.0.s8 %v3666
      %v3668 = vperm.slane %v3662, %v3667
      %v3670 = vunpack.c.l.s4 1983009808
      %v3671 = vunpack.c.0.s8 %v3670
      %v3672 = vperm.slane %v3664, %v3671
      %v3673 = vrot.slane %v3626, 4
      %v3674 = vsel %vm507, %v3673, %v3618
      %v3675 = vrot.slane %v3618, 4
      %v3676 = vsel %vm507, %v3626, %v3675
      %v3678 = vunpack.c.l.s4 1983009808
      %v3679 = vunpack.c.0.s8 %v3678
      %v3680 = vperm.slane %v3674, %v3679
      %v3682 = vunpack.c.l.s4 1983009808
      %v3683 = vunpack.c.0.s8 %v3682
      %v3684 = vperm.slane %v3676, %v3683
      %v3685 = vrot.slane %v3630, 4
      %v3686 = vsel %vm507, %v3685, %v3622
      %v3687 = vrot.slane %v3622, 4
      %v3688 = vsel %vm507, %v3630, %v3687
      %v3690 = vunpack.c.l.s4 1983009808
      %v3691 = vunpack.c.0.s8 %v3690
      %v3692 = vperm.slane %v3686, %v3691
      %v3694 = vunpack.c.l.s4 1983009808
      %v3695 = vunpack.c.0.s8 %v3694
      %v3696 = vperm.slane %v3688, %v3695
      %v3697 = vrot.slane %v3668, 4
      %v3698 = vsel %vm507, %v3697, %v3656
      %v3699 = vrot.slane %v3656, 4
      %v3700 = vsel %vm507, %v3668, %v3699
      %v3702 = vunpack.c.l.s4 1934713408
      %v3703 = vunpack.c.0.s8 %v3702
      %v3704 = vperm.slane %v3698, %v3703
      %v3706 = vunpack.c.l.s4 1934713408
      %v3707 = vunpack.c.0.s8 %v3706
      %v3708 = vperm.slane %v3700, %v3707
      %v3709 = vrot.slane %v3672, 4
      %v3710 = vsel %vm507, %v3709, %v3660
      %v3711 = vrot.slane %v3660, 4
      %v3712 = vsel %vm507, %v3672, %v3711
      %v3714 = vunpack.c.l.s4 1934713408
      %v3715 = vunpack.c.0.s8 %v3714
      %v3716 = vperm.slane %v3710, %v3715
      %v3718 = vunpack.c.l.s4 1934713408
      %v3719 = vunpack.c.0.s8 %v3718
      %v3720 = vperm.slane %v3712, %v3719
      %v3721 = vrot.slane %v3692, 4
      %v3722 = vsel %vm507, %v3721, %v3680
      %v3723 = vrot.slane %v3680, 4
      %v3724 = vsel %vm507, %v3692, %v3723
      %v3726 = vunpack.c.l.s4 1934713408
      %v3727 = vunpack.c.0.s8 %v3726
      %v3728 = vperm.slane %v3722, %v3727
      %v3730 = vunpack.c.l.s4 1934713408
      %v3731 = vunpack.c.0.s8 %v3730
      %v3732 = vperm.slane %v3724, %v3731
      %v3733 = vrot.slane %v3696, 4
      %v3734 = vsel %vm507, %v3733, %v3684
      %v3735 = vrot.slane %v3684, 4
      %v3736 = vsel %vm507, %v3696, %v3735
      %v3738 = vunpack.c.l.s4 1934713408
      %v3739 = vunpack.c.0.s8 %v3738
      %v3740 = vperm.slane %v3734, %v3739
      %v3742 = vunpack.c.l.s4 1934713408
      %v3743 = vunpack.c.0.s8 %v3742
      %v3744 = vperm.slane %v3736, %v3743
      %v3745 = vrot.slane %v3728, 4
      %v3746 = vsel %vm507, %v3745, %v3704
      %v3747 = vrot.slane %v3704, 4
      %v3748 = vsel %vm507, %v3728, %v3747
      %v3749 = vrot.slane %v3732, 4
      %v3750 = vsel %vm507, %v3749, %v3708
      %v3751 = vrot.slane %v3708, 4
      %v3752 = vsel %vm507, %v3732, %v3751
      %v3753 = vrot.slane %v3740, 4
      %v3754 = vsel %vm507, %v3753, %v3716
      %v3755 = vrot.slane %v3716, 4
      %v3756 = vsel %vm507, %v3740, %v3755
      %v3757 = vrot.slane %v3744, 4
      %v3758 = vsel %vm507, %v3757, %v3720
      %v3759 = vrot.slane %v3720, 4
      %v3760 = vsel %vm507, %v3744, %v3759
      %v3761 = vrot.slane %v3612, 4
      %v3762 = vsel %vm507, %v3761, %v3604
      %v3763 = vrot.slane %v3604, 4
      %v3764 = vsel %vm507, %v3612, %v3763
      %v3766 = vunpack.c.l.s4 1983009808
      %v3767 = vunpack.c.0.s8 %v3766
      %v3768 = vperm.slane %v3762, %v3767
      %v3770 = vunpack.c.l.s4 1983009808
      %v3771 = vunpack.c.0.s8 %v3770
      %v3772 = vperm.slane %v3764, %v3771
      %v3773 = vrot.slane %v3616, 4
      %v3774 = vsel %vm507, %v3773, %v3608
      %v3775 = vrot.slane %v3608, 4
      %v3776 = vsel %vm507, %v3616, %v3775
      %v3778 = vunpack.c.l.s4 1983009808
      %v3779 = vunpack.c.0.s8 %v3778
      %v3780 = vperm.slane %v3774, %v3779
      %v3782 = vunpack.c.l.s4 1983009808
      %v3783 = vunpack.c.0.s8 %v3782
      %v3784 = vperm.slane %v3776, %v3783
      %v3785 = vrot.slane %v3628, 4
      %v3786 = vsel %vm507, %v3785, %v3620
      %v3787 = vrot.slane %v3620, 4
      %v3788 = vsel %vm507, %v3628, %v3787
      %v3790 = vunpack.c.l.s4 1983009808
      %v3791 = vunpack.c.0.s8 %v3790
      %v3792 = vperm.slane %v3786, %v3791
      %v3794 = vunpack.c.l.s4 1983009808
      %v3795 = vunpack.c.0.s8 %v3794
      %v3796 = vperm.slane %v3788, %v3795
      %v3797 = vrot.slane %v3632, 4
      %v3798 = vsel %vm507, %v3797, %v3624
      %v3799 = vrot.slane %v3624, 4
      %v3800 = vsel %vm507, %v3632, %v3799
      %v3802 = vunpack.c.l.s4 1983009808
      %v3803 = vunpack.c.0.s8 %v3802
      %v3804 = vperm.slane %v3798, %v3803
      %v3806 = vunpack.c.l.s4 1983009808
      %v3807 = vunpack.c.0.s8 %v3806
      %v3808 = vperm.slane %v3800, %v3807
      %v3809 = vrot.slane %v3780, 4
      %v3810 = vsel %vm507, %v3809, %v3768
      %v3811 = vrot.slane %v3768, 4
      %v3812 = vsel %vm507, %v3780, %v3811
      %v3814 = vunpack.c.l.s4 1934713408
      %v3815 = vunpack.c.0.s8 %v3814
      %v3816 = vperm.slane %v3810, %v3815
      %v3818 = vunpack.c.l.s4 1934713408
      %v3819 = vunpack.c.0.s8 %v3818
      %v3820 = vperm.slane %v3812, %v3819
      %v3821 = vrot.slane %v3784, 4
      %v3822 = vsel %vm507, %v3821, %v3772
      %v3823 = vrot.slane %v3772, 4
      %v3824 = vsel %vm507, %v3784, %v3823
      %v3826 = vunpack.c.l.s4 1934713408
      %v3827 = vunpack.c.0.s8 %v3826
      %v3828 = vperm.slane %v3822, %v3827
      %v3830 = vunpack.c.l.s4 1934713408
      %v3831 = vunpack.c.0.s8 %v3830
      %v3832 = vperm.slane %v3824, %v3831
      %v3833 = vrot.slane %v3804, 4
      %v3834 = vsel %vm507, %v3833, %v3792
      %v3835 = vrot.slane %v3792, 4
      %v3836 = vsel %vm507, %v3804, %v3835
      %v3838 = vunpack.c.l.s4 1934713408
      %v3839 = vunpack.c.0.s8 %v3838
      %v3840 = vperm.slane %v3834, %v3839
      %v3842 = vunpack.c.l.s4 1934713408
      %v3843 = vunpack.c.0.s8 %v3842
      %v3844 = vperm.slane %v3836, %v3843
      %v3845 = vrot.slane %v3808, 4
      %v3846 = vsel %vm507, %v3845, %v3796
      %v3847 = vrot.slane %v3796, 4
      %v3848 = vsel %vm507, %v3808, %v3847
      %v3850 = vunpack.c.l.s4 1934713408
      %v3851 = vunpack.c.0.s8 %v3850
      %v3852 = vperm.slane %v3846, %v3851
      %v3854 = vunpack.c.l.s4 1934713408
      %v3855 = vunpack.c.0.s8 %v3854
      %v3856 = vperm.slane %v3848, %v3855
      %v3857 = vrot.slane %v3840, 4
      %v3858 = vsel %vm507, %v3857, %v3816
      %v3859 = vrot.slane %v3816, 4
      %v3860 = vsel %vm507, %v3840, %v3859
      %v3861 = vrot.slane %v3844, 4
      %v3862 = vsel %vm507, %v3861, %v3820
      %v3863 = vrot.slane %v3820, 4
      %v3864 = vsel %vm507, %v3844, %v3863
      %v3865 = vrot.slane %v3852, 4
      %v3866 = vsel %vm507, %v3865, %v3828
      %v3867 = vrot.slane %v3828, 4
      %v3868 = vsel %vm507, %v3852, %v3867
      %v3869 = vrot.slane %v3856, 4
      %v3870 = vsel %vm507, %v3869, %v3832
      %v3871 = vrot.slane %v3832, 4
      %v3872 = vsel %vm507, %v3856, %v3871
      %3874 = vrot.lane.b32.xlu0 %v3748, 16
      %v3875 = vpop.permute.xlu0 %3874
      %3878 = vrot.lane.b32.xlu0 %v3750, 32
      %v3879 = vpop.permute.xlu0 %3878
      %3882 = vrot.lane.b32.xlu0 %v3752, 48
      %v3883 = vpop.permute.xlu0 %3882
      %3886 = vrot.lane.b32.xlu0 %v3754, 64
      %v3887 = vpop.permute.xlu0 %3886
      %3890 = vrot.lane.b32.xlu0 %v3756, 80
      %v3891 = vpop.permute.xlu0 %3890
      %3894 = vrot.lane.b32.xlu0 %v3758, 96
      %v3895 = vpop.permute.xlu0 %3894
      %3898 = vrot.lane.b32.xlu0 %v3760, 112
      %v3899 = vpop.permute.xlu0 %3898
      %3902 = vrot.lane.b32.xlu0 %v3860, 16
      %v3903 = vpop.permute.xlu0 %3902
      %3906 = vrot.lane.b32.xlu0 %v3862, 32
      %v3907 = vpop.permute.xlu0 %3906
      %3910 = vrot.lane.b32.xlu0 %v3864, 48
      %v3911 = vpop.permute.xlu0 %3910
      %3914 = vrot.lane.b32.xlu0 %v3866, 64
      %v3915 = vpop.permute.xlu0 %3914
      %3918 = vrot.lane.b32.xlu0 %v3868, 80
      %v3919 = vpop.permute.xlu0 %3918
      %3922 = vrot.lane.b32.xlu0 %v3870, 96
      %v3923 = vpop.permute.xlu0 %3922
      %3926 = vrot.lane.b32.xlu0 %v3872, 112
      %v3927 = vpop.permute.xlu0 %3926
      %v3929 = vsel %vm1418, %v3746, %v3875
      %v3930 = vsel %vm1420, %v3929, %v3879
      %v3931 = vsel %vm1422, %v3930, %v3883
      %v3932 = vsel %vm1424, %v3931, %v3887
      %v3933 = vsel %vm1426, %v3932, %v3891
      %v3934 = vsel %vm1428, %v3933, %v3895
      %v3935 = vsel %vm1430, %v3934, %v3899
      %v3936 = vsel %vm1418, %v3858, %v3903
      %v3937 = vsel %vm1420, %v3936, %v3907
      %v3938 = vsel %vm1422, %v3937, %v3911
      %v3939 = vsel %vm1424, %v3938, %v3915
      %v3940 = vsel %vm1426, %v3939, %v3919
      %v3941 = vsel %vm1428, %v3940, %v3923
      %v3942 = vsel %vm1430, %v3941, %v3927
      %3943 = vst [vmem:[#allocation3 + $0x70] sm:$0xff] %v3935
      %3944 = vst [vmem:[#allocation3 + $0x78] sm:$0xff] %v3942
      %v3945 = vld [vmem:[#allocation2 + $0x2] sm:$0xff]
      %v3946 = vld [vmem:[#allocation2 + $0xa] sm:$0xff]
      %v3947 = vld [vmem:[#allocation2 + $0x1a] sm:$0xff]
      %v3948 = vld [vmem:[#allocation2 + $0x22] sm:$0xff]
      %v3949 = vld [vmem:[#allocation2 + $0x32] sm:$0xff]
      %v3950 = vld [vmem:[#allocation2 + $0x3a] sm:$0xff]
      %v3951 = vld [vmem:[#allocation2 + $0x4a] sm:$0xff]
      %v3952 = vld [vmem:[#allocation2 + $0x52] sm:$0xff]
      %v3953 = vld [vmem:[#allocation2 + $0x62] sm:$0xff]
      %v3954 = vld [vmem:[#allocation2 + $0x6a] sm:$0xff]
      %v3955 = vld [vmem:[#allocation2 + $0x7a] sm:$0xff]
      %v3956 = vld [vmem:[#allocation2 + $0x82] sm:$0xff]
      %v3957 = vld [vmem:[#allocation2 + $0x92] sm:$0xff]
      %v3958 = vld [vmem:[#allocation2 + $0x9a] sm:$0xff]
      %v3959 = vld [vmem:[#allocation2 + $0xaa] sm:$0xff]
      %v3960 = vld [vmem:[#allocation2 + $0xb2] sm:$0xff]
      %3977 = vrot.lane.b32.xlu0 %v3945, 126
      %v3978 = vpop.permute.xlu0 %3977
      %3979 = vrot.lane.b32.xlu0 %v3946, 126
      %v3980 = vpop.permute.xlu0 %3979
      %3981 = vrot.lane.b32.xlu0 %v3947, 126
      %v3982 = vpop.permute.xlu0 %3981
      %3983 = vrot.lane.b32.xlu0 %v3948, 126
      %v3984 = vpop.permute.xlu0 %3983
      %3985 = vrot.lane.b32.xlu0 %v3949, 126
      %v3986 = vpop.permute.xlu0 %3985
      %3987 = vrot.lane.b32.xlu0 %v3950, 126
      %v3988 = vpop.permute.xlu0 %3987
      %3989 = vrot.lane.b32.xlu0 %v3951, 126
      %v3990 = vpop.permute.xlu0 %3989
      %3991 = vrot.lane.b32.xlu0 %v3952, 126
      %v3992 = vpop.permute.xlu0 %3991
      %3993 = vrot.lane.b32.xlu0 %v3953, 126
      %v3994 = vpop.permute.xlu0 %3993
      %3995 = vrot.lane.b32.xlu0 %v3954, 126
      %v3996 = vpop.permute.xlu0 %3995
      %3997 = vrot.lane.b32.xlu0 %v3955, 126
      %v3998 = vpop.permute.xlu0 %3997
      %3999 = vrot.lane.b32.xlu0 %v3956, 126
      %v4000 = vpop.permute.xlu0 %3999
      %4001 = vrot.lane.b32.xlu0 %v3957, 126
      %v4002 = vpop.permute.xlu0 %4001
      %4003 = vrot.lane.b32.xlu0 %v3958, 126
      %v4004 = vpop.permute.xlu0 %4003
      %4005 = vrot.lane.b32.xlu0 %v3959, 126
      %v4006 = vpop.permute.xlu0 %4005
      %4007 = vrot.lane.b32.xlu0 %v3960, 126
      %v4008 = vpop.permute.xlu0 %4007
      %v4025 = vrot.slane %v3986, 4
      %v4026 = vsel %vm507, %v4025, %v3978
      %v4027 = vrot.slane %v3978, 4
      %v4028 = vsel %vm507, %v3986, %v4027
      %v4030 = vunpack.c.l.s4 1983009808
      %v4031 = vunpack.c.0.s8 %v4030
      %v4032 = vperm.slane %v4026, %v4031
      %v4034 = vunpack.c.l.s4 1983009808
      %v4035 = vunpack.c.0.s8 %v4034
      %v4036 = vperm.slane %v4028, %v4035
      %v4037 = vrot.slane %v3990, 4
      %v4038 = vsel %vm507, %v4037, %v3982
      %v4039 = vrot.slane %v3982, 4
      %v4040 = vsel %vm507, %v3990, %v4039
      %v4042 = vunpack.c.l.s4 1983009808
      %v4043 = vunpack.c.0.s8 %v4042
      %v4044 = vperm.slane %v4038, %v4043
      %v4046 = vunpack.c.l.s4 1983009808
      %v4047 = vunpack.c.0.s8 %v4046
      %v4048 = vperm.slane %v4040, %v4047
      %v4049 = vrot.slane %v4002, 4
      %v4050 = vsel %vm507, %v4049, %v3994
      %v4051 = vrot.slane %v3994, 4
      %v4052 = vsel %vm507, %v4002, %v4051
      %v4054 = vunpack.c.l.s4 1983009808
      %v4055 = vunpack.c.0.s8 %v4054
      %v4056 = vperm.slane %v4050, %v4055
      %v4058 = vunpack.c.l.s4 1983009808
      %v4059 = vunpack.c.0.s8 %v4058
      %v4060 = vperm.slane %v4052, %v4059
      %v4061 = vrot.slane %v4006, 4
      %v4062 = vsel %vm507, %v4061, %v3998
      %v4063 = vrot.slane %v3998, 4
      %v4064 = vsel %vm507, %v4006, %v4063
      %v4066 = vunpack.c.l.s4 1983009808
      %v4067 = vunpack.c.0.s8 %v4066
      %v4068 = vperm.slane %v4062, %v4067
      %v4070 = vunpack.c.l.s4 1983009808
      %v4071 = vunpack.c.0.s8 %v4070
      %v4072 = vperm.slane %v4064, %v4071
      %v4073 = vrot.slane %v4044, 4
      %v4074 = vsel %vm507, %v4073, %v4032
      %v4075 = vrot.slane %v4032, 4
      %v4076 = vsel %vm507, %v4044, %v4075
      %v4078 = vunpack.c.l.s4 1934713408
      %v4079 = vunpack.c.0.s8 %v4078
      %v4080 = vperm.slane %v4074, %v4079
      %v4082 = vunpack.c.l.s4 1934713408
      %v4083 = vunpack.c.0.s8 %v4082
      %v4084 = vperm.slane %v4076, %v4083
      %v4085 = vrot.slane %v4048, 4
      %v4086 = vsel %vm507, %v4085, %v4036
      %v4087 = vrot.slane %v4036, 4
      %v4088 = vsel %vm507, %v4048, %v4087
      %v4090 = vunpack.c.l.s4 1934713408
      %v4091 = vunpack.c.0.s8 %v4090
      %v4092 = vperm.slane %v4086, %v4091
      %v4094 = vunpack.c.l.s4 1934713408
      %v4095 = vunpack.c.0.s8 %v4094
      %v4096 = vperm.slane %v4088, %v4095
      %v4097 = vrot.slane %v4068, 4
      %v4098 = vsel %vm507, %v4097, %v4056
      %v4099 = vrot.slane %v4056, 4
      %v4100 = vsel %vm507, %v4068, %v4099
      %v4102 = vunpack.c.l.s4 1934713408
      %v4103 = vunpack.c.0.s8 %v4102
      %v4104 = vperm.slane %v4098, %v4103
      %v4106 = vunpack.c.l.s4 1934713408
      %v4107 = vunpack.c.0.s8 %v4106
      %v4108 = vperm.slane %v4100, %v4107
      %v4109 = vrot.slane %v4072, 4
      %v4110 = vsel %vm507, %v4109, %v4060
      %v4111 = vrot.slane %v4060, 4
      %v4112 = vsel %vm507, %v4072, %v4111
      %v4114 = vunpack.c.l.s4 1934713408
      %v4115 = vunpack.c.0.s8 %v4114
      %v4116 = vperm.slane %v4110, %v4115
      %v4118 = vunpack.c.l.s4 1934713408
      %v4119 = vunpack.c.0.s8 %v4118
      %v4120 = vperm.slane %v4112, %v4119
      %v4121 = vrot.slane %v4104, 4
      %v4122 = vsel %vm507, %v4121, %v4080
      %v4123 = vrot.slane %v4080, 4
      %v4124 = vsel %vm507, %v4104, %v4123
      %v4125 = vrot.slane %v4108, 4
      %v4126 = vsel %vm507, %v4125, %v4084
      %v4127 = vrot.slane %v4084, 4
      %v4128 = vsel %vm507, %v4108, %v4127
      %v4129 = vrot.slane %v4116, 4
      %v4130 = vsel %vm507, %v4129, %v4092
      %v4131 = vrot.slane %v4092, 4
      %v4132 = vsel %vm507, %v4116, %v4131
      %v4133 = vrot.slane %v4120, 4
      %v4134 = vsel %vm507, %v4133, %v4096
      %v4135 = vrot.slane %v4096, 4
      %v4136 = vsel %vm507, %v4120, %v4135
      %v4137 = vrot.slane %v3988, 4
      %v4138 = vsel %vm507, %v4137, %v3980
      %v4139 = vrot.slane %v3980, 4
      %v4140 = vsel %vm507, %v3988, %v4139
      %v4142 = vunpack.c.l.s4 1983009808
      %v4143 = vunpack.c.0.s8 %v4142
      %v4144 = vperm.slane %v4138, %v4143
      %v4146 = vunpack.c.l.s4 1983009808
      %v4147 = vunpack.c.0.s8 %v4146
      %v4148 = vperm.slane %v4140, %v4147
      %v4149 = vrot.slane %v3992, 4
      %v4150 = vsel %vm507, %v4149, %v3984
      %v4151 = vrot.slane %v3984, 4
      %v4152 = vsel %vm507, %v3992, %v4151
      %v4154 = vunpack.c.l.s4 1983009808
      %v4155 = vunpack.c.0.s8 %v4154
      %v4156 = vperm.slane %v4150, %v4155
      %v4158 = vunpack.c.l.s4 1983009808
      %v4159 = vunpack.c.0.s8 %v4158
      %v4160 = vperm.slane %v4152, %v4159
      %v4161 = vrot.slane %v4004, 4
      %v4162 = vsel %vm507, %v4161, %v3996
      %v4163 = vrot.slane %v3996, 4
      %v4164 = vsel %vm507, %v4004, %v4163
      %v4166 = vunpack.c.l.s4 1983009808
      %v4167 = vunpack.c.0.s8 %v4166
      %v4168 = vperm.slane %v4162, %v4167
      %v4170 = vunpack.c.l.s4 1983009808
      %v4171 = vunpack.c.0.s8 %v4170
      %v4172 = vperm.slane %v4164, %v4171
      %v4173 = vrot.slane %v4008, 4
      %v4174 = vsel %vm507, %v4173, %v4000
      %v4175 = vrot.slane %v4000, 4
      %v4176 = vsel %vm507, %v4008, %v4175
      %v4178 = vunpack.c.l.s4 1983009808
      %v4179 = vunpack.c.0.s8 %v4178
      %v4180 = vperm.slane %v4174, %v4179
      %v4182 = vunpack.c.l.s4 1983009808
      %v4183 = vunpack.c.0.s8 %v4182
      %v4184 = vperm.slane %v4176, %v4183
      %v4185 = vrot.slane %v4156, 4
      %v4186 = vsel %vm507, %v4185, %v4144
      %v4187 = vrot.slane %v4144, 4
      %v4188 = vsel %vm507, %v4156, %v4187
      %v4190 = vunpack.c.l.s4 1934713408
      %v4191 = vunpack.c.0.s8 %v4190
      %v4192 = vperm.slane %v4186, %v4191
      %v4194 = vunpack.c.l.s4 1934713408
      %v4195 = vunpack.c.0.s8 %v4194
      %v4196 = vperm.slane %v4188, %v4195
      %v4197 = vrot.slane %v4160, 4
      %v4198 = vsel %vm507, %v4197, %v4148
      %v4199 = vrot.slane %v4148, 4
      %v4200 = vsel %vm507, %v4160, %v4199
      %v4202 = vunpack.c.l.s4 1934713408
      %v4203 = vunpack.c.0.s8 %v4202
      %v4204 = vperm.slane %v4198, %v4203
      %v4206 = vunpack.c.l.s4 1934713408
      %v4207 = vunpack.c.0.s8 %v4206
      %v4208 = vperm.slane %v4200, %v4207
      %v4209 = vrot.slane %v4180, 4
      %v4210 = vsel %vm507, %v4209, %v4168
      %v4211 = vrot.slane %v4168, 4
      %v4212 = vsel %vm507, %v4180, %v4211
      %v4214 = vunpack.c.l.s4 1934713408
      %v4215 = vunpack.c.0.s8 %v4214
      %v4216 = vperm.slane %v4210, %v4215
      %v4218 = vunpack.c.l.s4 1934713408
      %v4219 = vunpack.c.0.s8 %v4218
      %v4220 = vperm.slane %v4212, %v4219
      %v4221 = vrot.slane %v4184, 4
      %v4222 = vsel %vm507, %v4221, %v4172
      %v4223 = vrot.slane %v4172, 4
      %v4224 = vsel %vm507, %v4184, %v4223
      %v4226 = vunpack.c.l.s4 1934713408
      %v4227 = vunpack.c.0.s8 %v4226
      %v4228 = vperm.slane %v4222, %v4227
      %v4230 = vunpack.c.l.s4 1934713408
      %v4231 = vunpack.c.0.s8 %v4230
      %v4232 = vperm.slane %v4224, %v4231
      %v4233 = vrot.slane %v4216, 4
      %v4234 = vsel %vm507, %v4233, %v4192
      %v4235 = vrot.slane %v4192, 4
      %v4236 = vsel %vm507, %v4216, %v4235
      %v4237 = vrot.slane %v4220, 4
      %v4238 = vsel %vm507, %v4237, %v4196
      %v4239 = vrot.slane %v4196, 4
      %v4240 = vsel %vm507, %v4220, %v4239
      %v4241 = vrot.slane %v4228, 4
      %v4242 = vsel %vm507, %v4241, %v4204
      %v4243 = vrot.slane %v4204, 4
      %v4244 = vsel %vm507, %v4228, %v4243
      %v4245 = vrot.slane %v4232, 4
      %v4246 = vsel %vm507, %v4245, %v4208
      %v4247 = vrot.slane %v4208, 4
      %v4248 = vsel %vm507, %v4232, %v4247
      %4250 = vrot.lane.b32.xlu0 %v4124, 16
      %v4251 = vpop.permute.xlu0 %4250
      %4254 = vrot.lane.b32.xlu0 %v4126, 32
      %v4255 = vpop.permute.xlu0 %4254
      %4258 = vrot.lane.b32.xlu0 %v4128, 48
      %v4259 = vpop.permute.xlu0 %4258
      %4262 = vrot.lane.b32.xlu0 %v4130, 64
      %v4263 = vpop.permute.xlu0 %4262
      %4266 = vrot.lane.b32.xlu0 %v4132, 80
      %v4267 = vpop.permute.xlu0 %4266
      %4270 = vrot.lane.b32.xlu0 %v4134, 96
      %v4271 = vpop.permute.xlu0 %4270
      %4274 = vrot.lane.b32.xlu0 %v4136, 112
      %v4275 = vpop.permute.xlu0 %4274
      %4278 = vrot.lane.b32.xlu0 %v4236, 16
      %v4279 = vpop.permute.xlu0 %4278
      %4282 = vrot.lane.b32.xlu0 %v4238, 32
      %v4283 = vpop.permute.xlu0 %4282
      %4286 = vrot.lane.b32.xlu0 %v4240, 48
      %v4287 = vpop.permute.xlu0 %4286
      %4290 = vrot.lane.b32.xlu0 %v4242, 64
      %v4291 = vpop.permute.xlu0 %4290
      %4294 = vrot.lane.b32.xlu0 %v4244, 80
      %v4295 = vpop.permute.xlu0 %4294
      %4298 = vrot.lane.b32.xlu0 %v4246, 96
      %v4299 = vpop.permute.xlu0 %4298
      %4302 = vrot.lane.b32.xlu0 %v4248, 112
      %v4303 = vpop.permute.xlu0 %4302
      %v4305 = vsel %vm1418, %v4122, %v4251
      %v4306 = vsel %vm1420, %v4305, %v4255
      %v4307 = vsel %vm1422, %v4306, %v4259
      %v4308 = vsel %vm1424, %v4307, %v4263
      %v4309 = vsel %vm1426, %v4308, %v4267
      %v4310 = vsel %vm1428, %v4309, %v4271
      %v4311 = vsel %vm1430, %v4310, %v4275
      %v4312 = vsel %vm1418, %v4234, %v4279
      %v4313 = vsel %vm1420, %v4312, %v4283
      %v4314 = vsel %vm1422, %v4313, %v4287
      %v4315 = vsel %vm1424, %v4314, %v4291
      %v4316 = vsel %vm1426, %v4315, %v4295
      %v4317 = vsel %vm1428, %v4316, %v4299
      %v4318 = vsel %vm1430, %v4317, %v4303
      %4319 = vst [vmem:[#allocation3 + $0x80] sm:$0xff] %v4311
      %4320 = vst [vmem:[#allocation3 + $0x88] sm:$0xff] %v4318
      %v4321 = vld [vmem:[%s3] sm:$0xf]
      %v4322 = vld [vmem:[#allocation3] sm:$0xff]
      %v4323 = vld [vmem:[#allocation3 + $0x8] sm:$0xff]
      %v4324 = vld [vmem:[#allocation3 + $0x10] sm:$0xff]
      %v4325 = vld [vmem:[#allocation3 + $0x18] sm:$0xff]
      %v4326 = vld [vmem:[#allocation3 + $0x20] sm:$0xff]
      %v4327 = vld [vmem:[#allocation3 + $0x28] sm:$0xff]
      %v4328 = vld [vmem:[#allocation3 + $0x30] sm:$0xff]
      %v4329 = vld [vmem:[#allocation3 + $0x38] sm:$0xff]
      %v4330 = vld [vmem:[#allocation3 + $0x40] sm:$0xff]
      %v4331 = vld [vmem:[#allocation3 + $0x48] sm:$0xff]
      %v4332 = vld [vmem:[#allocation3 + $0x50] sm:$0xff]
      %v4333 = vld [vmem:[#allocation3 + $0x58] sm:$0xff]
      %v4334 = vld [vmem:[#allocation3 + $0x60] sm:$0xff]
      %v4335 = vld [vmem:[#allocation3 + $0x68] sm:$0xff]
      %v4336 = vld [vmem:[#allocation3 + $0x70] sm:$0xff]
      %v4337 = vld [vmem:[#allocation3 + $0x78] sm:$0xff]
      %v4338 = vld [vmem:[#allocation3 + $0x80] sm:$0xff]
      %v4339 = vld [vmem:[#allocation3 + $0x88] sm:$0xff]
      %v4340 = vpack.c.bf16 %v4324, %v4322
      %v4341 = vpack.c.bf16 %v4325, %v4323
      %v4342 = vpack.c.bf16 %v4328, %v4326
      %v4343 = vpack.c.bf16 %v4329, %v4327
      %v4344 = vpack.c.bf16 %v4332, %v4330
      %v4345 = vpack.c.bf16 %v4333, %v4331
      %v4346 = vpack.c.bf16 %v4336, %v4334
      %v4347 = vpack.c.bf16 %v4337, %v4335
      %v4348 = vpack.c.bf16 %v4338, %v4338
      %v4349 = vpack.c.bf16 %v4339, %v4339
      %v4351 = vsel %vm382, %v4321, 0
      %v4354 = vsel %vm386, %v4348, 0
      %v4357 = vsel %vm386, %v4349, 0
      %4359 = vmatpush.bf16.msra.mxu0 0
      %4360 = vmatpush.bf16.msra.mxu0 0
      %4361 = vmatpush.bf16.msra.mxu0 0
      %4362 = vmatpush.bf16.msra.mxu0 %v4354
      %4363 = vmatpush.bf16.msra.mxu0 %v4346
      %4364 = vmatpush.bf16.msra.mxu0 %v4344
      %4365 = vmatpush.bf16.msra.mxu0 %v4342
      %4366 = vmatpush.bf16.msra.mxu0 %v4340
      %4367 = vmatmul.bf16.gmra.mxu0 %v4351
      %v4368 = vpop.f32.mrf.mxu0
      %v4369 = vadd.f32 0.0, %v4368
      %v4370 = vpop.f32.mrf.mxu0
      %4371 = vdwg.mxu0
      %4372 = vmatpush.bf16.msra.mxu0 0
      %4373 = vmatpush.bf16.msra.mxu0 0
      %4374 = vmatpush.bf16.msra.mxu0 0
      %4375 = vmatpush.bf16.msra.mxu0 %v4357
      %4376 = vmatpush.bf16.msra.mxu0 %v4347
      %4377 = vmatpush.bf16.msra.mxu0 %v4345
      %4378 = vmatpush.bf16.msra.mxu0 %v4343
      %4379 = vmatpush.bf16.msra.mxu0 %v4341
      %4380 = vmatmul.bf16.gmra.mxu0 %v4351
      %v4381 = vpop.f32.mrf.mxu0
      %v4382 = vadd.f32 0.0, %v4381
      %v4383 = vpop.f32.mrf.mxu0
      %4384 = vdwg.mxu0
      %v4385 = vld [vmem:[%s6] sm:$0xff]
      %v4386 = vld [vmem:[%s7] sm:$0xff]
      %v4387 = vadd.f32 %v4369, %v4382
      %4388 = vadd.xlane.f32.xlu0 %v4387
      %v4389 = vpop.xlane.xlu0 %4388
      %v4390 = vmul.f32 %v4389, 0.00390625
      %v4391 = vsub.f32 %v4369, %v4390
      %v4392 = vsub.f32 %v4382, %v4390
      %v4393 = vmul.f32 %v4391, %v4391
      %v4394 = vmul.f32 %v4392, %v4392
      %v4395 = vadd.f32 %v4393, %v4394
      %4396 = vadd.xlane.f32.xlu0 %v4395
      %v4397 = vpop.xlane.xlu0 %4396
      %v4398 = vmul.f32 %v4397, 0.00390625
      %v4399 = vadd.f32 %v4398, 1e-05
      %v4400 = vrsqrt.pop %v4399
      %v4401 = vmul.f32 %v4400, %v4399
      %v4402 = vmul.f32 %v4401, %v4400
      %v4403 = vmul.f32 0.5, %v4402
      %v4404 = vsub.f32 1.5, %v4403
      %v4405 = vmul.f32 %v4400, %v4404
      %vm4406 = vweird.f32 %v4399
      %vm4407 = vweird.f32 %v4400
      %vm4408 = vmor %vm4406, %vm4407
      %v4409 = vsel %vm4408, %v4400, %v4405
      %v4410 = vmul.f32 %v4391, %v4409
      %v4411 = vmul.f32 %v4392, %v4409
      %4413 = vset.pattern.permute.xlu0 0
      %4414 = vperm.xlu0 %4413, %v4385
      %v4415 = vpop.permute.xlu0 %4414
      %v4417 = vmul.f32 %v4410, %v4415
      %v4418 = vmul.f32 %v4411, %v4415
      %4420 = vset.pattern.permute.xlu0 0
      %4421 = vperm.xlu0 %4420, %v4386
      %v4422 = vpop.permute.xlu0 %4421
      %v4424 = vadd.f32 %v4417, %v4422
      %v4425 = vadd.f32 %v4418, %v4422
      %v4426 = vld [vmem:[%s320] sm:$0xff]
      %v4427 = vld [vmem:[%s320 + $0x8] sm:$0xff]
      %v4428 = vadd.f32 %v4424, %v4426
      %v4429 = vadd.f32 %v4425, %v4427
      %4430 = vst [vmem:[%s325] sm:$0xff] %v4428
      %4431 = vst [vmem:[%s325 + $0x8] sm:$0xff] %v4429
      %p4432 = scmp.lt.s32.totalorder %s19, 1
      %s4433 = scalar_select %p4432, %s19, 1
      %s4434 = smul.addr %s4433, 2
      %s4435 = smul.addr %s4434, 8
      %s4436 = scalar_lea.vmem %s8, %s4435
      // Predicated region
      $region53: #{residential_forward.1} parent=51 // pred_check
        %p4437 = pneg %p215
      $region54: #{residential_forward.1} parent=51 // pred_check_branch
        %4439 = sbr.rel (%p4437) target = $region56
      $region55: #{residential_forward.1} parent=51 // pred_region
        _
      $region56: #{residential_forward.1} parent=51 // pred_fallthru
        _
    $region52: #{residential_forward.1} parent=5 // pred_fallthru
      _
    %p4440 = scmp.le.s32.totalorder 2, %s14
    // Predicated region
    $region57: #{residential_forward.1} parent=5 // pred_check
      %p4441 = pneg %p4440
    $region58: #{residential_forward.1} parent=5 // pred_check_branch
      %4443 = sbr.rel (%p4441) target = $region60
    $region59: #{residential_forward.1} parent=5 // pred_region
      %s4444 = ssub.s32 %s14, 2
      // Predicated region
      $region61: #{residential_forward.1} parent=59 // pred_check
        %p4445 = pneg %p221
      $region62: #{residential_forward.1} parent=59 // pred_check_branch
        %4447 = sbr.rel (%p4445) target = $region64
      $region63: #{residential_forward.1} parent=59 // pred_region
        %p4448 = scmp.lt.s32.totalorder %s20, 1
        %s4449 = scalar_select %p4448, %s20, 1
        %s4450 = smul.addr %s4449, 2
        %s4451 = smul.addr %s4450, 8
        %s4452 = scalar_lea.vmem %s8, %s4451
      $region64: #{residential_forward.1} parent=59 // pred_fallthru
        _
    $region60: #{residential_forward.1} parent=5 // pred_fallthru
      _
  $region6: #{residential_forward.1} parent=0 // loop_footer
    %s18 = sadd.s32 1, %s14
  $region7: #{residential_forward.1} parent=0 // loop_footer_branch
    %13 = sbr.rel target = $region3
  $region8: #{residential_forward.1} parent=0 // loop_exit
    _

</llo_original>
